<compile_context>
chip_gen: v7x
topology: tpu7x:2x2x1
jax: 0.10.0
libtpu: 0.0.40
codegen_flags: <defaults>
</compile_context>

<pallas_src>
import numpy as np
import jax
import jax.numpy as jnp
from jax.experimental import pallas as pl
from jax.experimental.pallas import tpu as pltpu

# ---------------------------------------------------------------------------
# Static hierarchy (PASCAL-Part): 108 part classes -> 21 high-level classes.
# ---------------------------------------------------------------------------
HIERA_HIGH = {
    'background': [0, 1], 'aero': [1, 6], 'bike': [6, 10], 'birds': [10, 18],
    'boat': [18, 19], 'bottle': [19, 21], 'bus': [21, 29], 'car': [29, 36],
    'cat': [36, 45], 'chair': [45, 46], 'cow': [46, 54], 'dining table': [54, 55],
    'dog': [55, 65], 'horse': [65, 73], 'mbike': [73, 77], 'person': [77, 89],
    'pplant': [89, 91], 'sheep': [91, 99], 'sofa': [99, 100], 'train': [100, 107],
    'tv screen': [107, 108],
}
GROUPS = [tuple(v) for v in HIERA_HIGH.values()]
NUM_PARTS = GROUPS[-1][1]            # 108
NUM_HIGH = len(GROUPS)               # 21
C_TOT = NUM_PARTS + NUM_HIGH         # 129
_GROUP_STARTS = [lo for lo, _ in GROUPS]

_CLASS_TO_HIGH = np.zeros((NUM_PARTS,), dtype=np.int32)
for _g, (_lo, _hi) in enumerate(GROUPS):
    _CLASS_TO_HIGH[_lo:_hi] = _g

# Constant select matrix: row c (c < 108) is one-hot at column 108 + high(c);
# rows >= 108 are zero.  gath = MSEL @ q broadcasts each group's high-level
# probability to its part channels in a single MXU matmul.
_MSEL = np.zeros((C_TOT, C_TOT), dtype=np.float32)
for _c in range(NUM_PARTS):
    _MSEL[_c, NUM_PARTS + _CLASS_TO_HIGH[_c]] = 1.0

EPS = 1e-8
ALPHA = 0.5          # focal alpha; gamma=2, p(c,d)=5, p(e)=3 are multiply chains.


def _sigmoid(x):
    # tanh form: one EUP op instead of exp + divide (equal to within ~1 ulp).
    return 0.5 * jnp.tanh(0.5 * x) + 0.5


def _round_up(v, m):
    return ((v + m - 1) // m) * m


# ---------------------------------------------------------------------------
# Kernel
# ---------------------------------------------------------------------------
def _make_kernel(tile, hw):
    """Kernel over one (batch, pixel-tile) grid point.

    Refs:
      msel_ref : (129, 129) f32 constant select matrix
      x_ref    : (129, tile) cls_score logits       (channels on sublanes)
      y_ref    : (129, tile) cls_score_ori logits
      lab_ref  : (1, tile)   int32 part label (255 = void)
      out_ref  : (8, tile)   f32 per-lane partial sums for this tile
    """

    def kernel(msel_ref, x_ref, y_ref, lab_ref, out_ref):
        ti = pl.program_id(1)

        lab = lab_ref[...]                                       # (1, tile) int32
        lane = jax.lax.broadcasted_iota(jnp.int32, (1, tile), 1)
        inb = ((ti * tile + lane) < hw).astype(jnp.float32)      # real (non-pad) pixel
        valid = inb * (lab != 255).astype(jnp.float32)           # non-void & real

        lab0 = jnp.where(lab == 255, 0, lab)
        labh = jnp.zeros_like(lab0)                              # high-level label
        for lo in _GROUP_STARTS[1:]:                             # 20 compares
            labh = labh + (lab0 >= lo).astype(jnp.int32)

        iota_c = jax.lax.broadcasted_iota(jnp.int32, (C_TOT, tile), 0)
        part_m = iota_c < NUM_PARTS                              # (129, tile) bool
        hot_a_m = iota_c == lab0                                 # one-hot part channel
        hot_b_m = iota_c == labh + NUM_PARTS                     # one-hot high channel

        def srow(v):                                             # channel (sublane) reduce
            return jnp.sum(v, axis=0, keepdims=True)

        def psum(v):                                             # part-channel masked reduce
            return srow(jnp.where(part_m, v, 0.0))

        # ---------------- focal BCE vs hierarchical one-hot targets ----------
        x = x_ref[...].astype(jnp.float32)
        p = _sigmoid(x)
        # "cold" term needs log(1-p) on every channel; the "hot" term only at the
        # two one-hot channels, gathered with masked reductions (halves the logs).
        cold_all = srow(p * p * jnp.log((1.0 - p) + EPS))
        p_hot_a = srow(jnp.where(hot_a_m, p, 0.0))
        p_hot_b = srow(jnp.where(hot_b_m, p, 0.0))

        def _hot(ph):
            one_m = 1.0 - ph
            return one_m * one_m * jnp.log(ph + EPS)

        def _cold(ph):
            return ph * ph * jnp.log((1.0 - ph) + EPS)

        hot = ALPHA * (_hot(p_hot_a) + _hot(p_hot_b))
        cold = (1.0 - ALPHA) * (cold_all - _cold(p_hot_a) - _cold(p_hot_b))
        focal_row = -(hot + cold) * valid                         # (1, tile)

        # ---------------- rule losses on original scores ---------------------
        q = _sigmoid(y_ref[...].astype(jnp.float32))              # (129, tile)

        # loss_c: expand high-level probs to part channels with the constant
        # one-hot matmul (MXU), then one full-lane-width ^5 chain.
        gath = jnp.dot(msel_ref[...], q, preferred_element_type=jnp.float32)
        pc = jnp.where(part_m, q * (1.0 - gath), 0.0)
        pc2 = pc * pc
        c_row = srow(pc2 * pc2 * pc) * inb

        # loss_d: per-group max (21 small sublane slices), ^5 chain.
        d_row = jnp.zeros((1, tile), jnp.float32)
        for g, (lo, hi) in enumerate(GROUPS):                     # static, unrolled
            gmax = jnp.max(q[lo:hi, :], axis=0, keepdims=True)
            pd = q[NUM_PARTS + g:NUM_PARTS + g + 1, :] * (1.0 - gmax)
            pd2 = pd * pd
            d_row = d_row + pd2 * pd2 * pd
        d_row = d_row * inb

        # loss_e (pairwise exclusion, closed form):
        #   sum_{i!=j}(q_i q_j)^3 = (sum q^3)^2 - sum q^6
        q3 = q * q * q
        q6 = q3 * q3
        gt = (q > 0.7).astype(jnp.float32)
        lt = (q < 0.3).astype(jnp.float32)

        # "high" (B) sums via full-sum minus part-sum: one masked reduce each.
        pos_a = psum(gt); pos_b = srow(gt) - pos_a
        neg_a = psum(lt); neg_b = srow(lt) - neg_a
        s3a = psum(q3);   s3b = srow(q3) - s3a
        s6a = psum(q6);   s6b = srow(q6) - s6a

        easy_a = jnp.logical_and(pos_a == 1.0,
                                 neg_a == float(NUM_PARTS - 1)).astype(jnp.float32)
        easy_b = jnp.logical_and(pos_b == 1.0,
                                 neg_b == float(NUM_HIGH - 1)).astype(jnp.float32)
        hard_a = (1.0 - easy_a) * inb
        hard_b = (1.0 - easy_b) * inb
        e_a_row = hard_a * (s3a * s3a - s6a)
        e_b_row = hard_b * (s3b * s3b - s6b)

        out_ref[...] = jnp.concatenate(
            [focal_row, valid, c_row, d_row, e_a_row, hard_a, e_b_row, hard_b],
            axis=0)                                               # (8, tile)

    return kernel


# ---------------------------------------------------------------------------
# Wrapper (glue: tiling, final scalar math)
# ---------------------------------------------------------------------------
def hiera_loss_pascal_part(cls_score, label, cls_score_ori, step, tile_hw=1024):
    b, c_tot, h, w = cls_score.shape
    assert c_tot == C_TOT, "expected num_classes(108) + 21 channels"
    hw = h * w
    n = b * hw

    # --- tiling: keep NCHW (channels on sublanes, pixels on lanes) ----------
    tile = min(_round_up(tile_hw, 128), _round_up(hw, 128))
    hw_pad = _round_up(hw, tile)
    if hw_pad != hw and hw % 128 == 0:
        # shrink the tile to a divisor of hw so no padding copy is needed
        units = hw // 128
        for d in range(tile // 128, 0, -1):
            if units % d == 0:
                tile = d * 128
                hw_pad = hw
                break

    x = cls_score.reshape(b, C_TOT, hw)            # free reshape, no transpose
    y = cls_score_ori.reshape(b, C_TOT, hw)
    lab = label.astype(jnp.int32).reshape(b, 1, hw)
    if hw_pad != hw:
        pad = hw_pad - hw
        x = jnp.pad(x, ((0, 0), (0, 0), (0, pad)))
        y = jnp.pad(y, ((0, 0), (0, 0), (0, pad)))
        lab = jnp.pad(lab, ((0, 0), (0, 0), (0, pad)), constant_values=255)
    nt = hw_pad // tile

    msel = jnp.asarray(_MSEL)

    grid_spec = pltpu.PrefetchScalarGridSpec(
        num_scalar_prefetch=0,
        grid=(b, nt),
        in_specs=[
            pl.BlockSpec((C_TOT, C_TOT), lambda bi, ti: (0, 0)),       # constant
            pl.BlockSpec((None, C_TOT, tile), lambda bi, ti: (bi, 0, ti)),
            pl.BlockSpec((None, C_TOT, tile), lambda bi, ti: (bi, 0, ti)),
            pl.BlockSpec((None, 1, tile), lambda bi, ti: (bi, 0, ti)),
        ],
        out_specs=pl.BlockSpec((None, None, 8, tile), lambda bi, ti: (bi, ti, 0, 0)),
    )
    partials = pl.pallas_call(
        _make_kernel(tile, hw),
        out_shape=jax.ShapeDtypeStruct((b, nt, 8, tile), jnp.float32),
        grid_spec=grid_spec,
        compiler_params=pltpu.CompilerParams(
            dimension_semantics=("parallel", "parallel"),
            vmem_limit_bytes=40 * 1024 * 1024),
    )(msel, x, y, lab)

    sums = jnp.sum(partials, axis=(0, 1, 3))       # (8,) totals
    focal_sum, valid_cnt = sums[0], sums[1]
    c_sum, d_sum = sums[2], sums[3]
    ea_sum, ha_cnt, eb_sum, hb_cnt = sums[4], sums[5], sums[6], sums[7]

    hiera_loss = focal_sum / valid_cnt
    c_rule = (c_sum / (n * NUM_PARTS)) ** (1.0 / 5.0)
    d_rule = (d_sum / (n * NUM_HIGH)) ** (1.0 / 5.0)
    # NOTE: like the PyTorch reference, ha_cnt/hb_cnt == 0 (every pixel "easy")
    # would give NaN here; semantics kept identical to the reference.
    all_a = (ea_sum / (ha_cnt * NUM_PARTS * NUM_PARTS)) ** (1.0 / 3.0)
    all_b = (eb_sum / (hb_cnt * NUM_HIGH * NUM_HIGH)) ** (1.0 / 3.0)
    denom = NUM_PARTS * NUM_PARTS + NUM_HIGH * NUM_HIGH
    e_rule = (all_a * (NUM_PARTS * NUM_PARTS / denom)
              + all_b * (NUM_HIGH * NUM_HIGH / denom))

    if step < 20000:
        factor = 0.0
    elif step < 50000:
        factor = float(step - 20000) / 30000.0
    else:
        factor = 1.0
    # (loss_weight is stored but unused in the reference forward.)
    return 0.5 * hiera_loss + 0.3 * factor * (c_rule + d_rule + e_rule * 2.0 / 3.0)


# ---------------------------------------------------------------------------
# Pure-JAX reference (same math, no Pallas) for a correctness check.
# ---------------------------------------------------------------------------
def _reference_loss(cls_score, label, cls_score_ori, step):
    b, c_tot, h, w = cls_score.shape
    n = b * h * w
    lut = jnp.asarray(_CLASS_TO_HIGH)
    void = label == 255
    lab = jnp.where(void, 0, label).astype(jnp.int32)
    labh = lut[lab]
    ta = jax.nn.one_hot(lab, NUM_PARTS, dtype=jnp.float32)
    tb = jax.nn.one_hot(labh, NUM_HIGH, dtype=jnp.float32)
    t = jnp.concatenate([ta, tb], axis=-1)
    valid = (~void).astype(jnp.float32)[..., None]
    p = 1.0 / (1.0 + jnp.exp(-jnp.transpose(cls_score, (0, 2, 3, 1)).astype(jnp.float32)))
    f = (-ALPHA * t * (1 - p) ** 2 * jnp.log(p + EPS)
         - (1 - ALPHA) * (1 - t) * p ** 2 * jnp.log(1 - p + EPS))
    hiera_loss = (f * valid).sum() / valid.sum()

    q = 1.0 / (1.0 + jnp.exp(-jnp.transpose(cls_score_ori, (0, 2, 3, 1))
                             .reshape(n, c_tot).astype(jnp.float32)))
    qa, qb = q[:, :NUM_PARTS], q[:, NUM_PARTS:]
    gath = qb[:, lut]
    c_rule = ((qa * (1 - gath)) ** 5).mean() ** (1.0 / 5.0)
    gmax = jnp.stack([qa[:, lo:hi].max(axis=1) for lo, hi in GROUPS], axis=1)
    d_rule = ((qb * (1 - gmax)) ** 5).mean() ** (1.0 / 5.0)

    def e_part(qm, n_ch):
        pos = (qm > 0.7).sum(-1)
        neg = (qm < 0.3).sum(-1)
        hard = 1.0 - ((pos == 1) & (neg == n_ch - 1)).astype(jnp.float32)
        s3 = (qm ** 3).sum(-1)
        s6 = (qm ** 6).sum(-1)
        return (hard * (s3 ** 2 - s6)).sum() / (hard.sum() * n_ch * n_ch)

    all_a = e_part(qa, NUM_PARTS) ** (1.0 / 3.0)
    all_b = e_part(qb, NUM_HIGH) ** (1.0 / 3.0)
    denom = NUM_PARTS * NUM_PARTS + NUM_HIGH * NUM_HIGH
    e_rule = all_a * (NUM_PARTS * NUM_PARTS / denom) + all_b * (NUM_HIGH * NUM_HIGH / denom)

    if step < 20000:
        factor = 0.0
    elif step < 50000:
        factor = float(step - 20000) / 30000.0
    else:
        factor = 1.0
    return 0.5 * hiera_loss + 0.3 * factor * (c_rule + d_rule + e_rule * 2.0 / 3.0)


if __name__ == "__main__":
    b, h, w = 2, 16, 16
    key = jax.random.PRNGKey(0)
    k1, k2, k3, k4 = jax.random.split(key, 4)
    cls_score = jax.random.normal(k1, (b, C_TOT, h, w), jnp.float32)
    cls_score_ori = jax.random.normal(k2, (b, C_TOT, h, w), jnp.float32)
    label = jax.random.randint(k3, (b, h, w), 0, NUM_PARTS)
    void_mask = jax.random.uniform(k4, (b, h, w)) < 0.1
    label = jnp.where(void_mask, 255, label).astype(jnp.int32)
    step = 35000

    loss = jax.block_until_ready(
        hiera_loss_pascal_part(cls_score, label, cls_score_ori, step))
    ref = jax.block_until_ready(
        _reference_loss(cls_score, label, cls_score_ori, step))
    assert np.allclose(np.asarray(loss), np.asarray(ref), rtol=2e-3, atol=1e-4), (loss, ref)
    print("KERNEL_OK")
</pallas_src>

<mosaic_0001>
module attributes {stable_mosaic.version = 11 : i64} {
  func.func @kernel(%arg0: i32, %arg1: i32, %arg2: memref<129x129xf32, #tpu.memory_space<vmem>>, %arg3: memref<1x129x256xf32, #tpu.memory_space<vmem>>, %arg4: memref<1x129x256xf32, #tpu.memory_space<vmem>>, %arg5: memref<1x1x256xi32, #tpu.memory_space<vmem>>, %arg6: memref<1x1x8x256xf32, #tpu.memory_space<vmem>>) attributes {dimension_semantics = [#tpu.dimension_semantics<parallel>, #tpu.dimension_semantics<parallel>], iteration_bounds = array<i64: 2, 1>, scalar_prefetch = 0 : i64, scratch_operands = 0 : i64, tpu.core_type = #tpu.core_type<tc>, window_params = [{pipeline_mode = #tpu.pipeline_mode<synchronous>, transform_indices = @transform_0, window_bounds = array<i64: 129, 129>}, {transform_indices = @transform_1, window_bounds = array<i64: 1, 129, 256>}, {transform_indices = @transform_2, window_bounds = array<i64: 1, 129, 256>}, {transform_indices = @transform_3, window_bounds = array<i64: 1, 1, 256>}, {transform_indices = @transform_4, window_bounds = array<i64: 1, 1, 8, 256>}]} {
    %c0 = arith.constant 0 : index
    %c0_0 = arith.constant 0 : index
    %c0_1 = arith.constant 0 : index
    %0 = vector.load %arg5[%c0, %c0_0, %c0_1] : memref<1x1x256xi32, #tpu.memory_space<vmem>>, vector<1x1x256xi32>
    %1 = vector.shape_cast %0 : vector<1x1x256xi32> to vector<1x256xi32>
    %2 = tpu.iota {dimensions = array<i32: 1>} : vector<1x256xi32>
    %c256_i32 = arith.constant 256 : i32
    %3 = arith.muli %arg1, %c256_i32 : i32
    %4 = vector.broadcast %3 : i32 to vector<1x256xi32>
    %5 = arith.addi %4, %2 : vector<1x256xi32>
    %c256_i32_2 = arith.constant 256 : i32
    %6 = vector.broadcast %c256_i32_2 : i32 to vector<1x256xi32>
    %7 = arith.cmpi slt, %5, %6 : vector<1x256xi32>
    %8 = arith.extui %7 : vector<1x256xi1> to vector<1x256xi32>
    %9 = arith.sitofp %8 : vector<1x256xi32> to vector<1x256xf32>
    %c255_i32 = arith.constant 255 : i32
    %10 = vector.broadcast %c255_i32 : i32 to vector<1x256xi32>
    %11 = arith.cmpi ne, %1, %10 : vector<1x256xi32>
    %12 = arith.extui %11 : vector<1x256xi1> to vector<1x256xi32>
    %13 = arith.sitofp %12 : vector<1x256xi32> to vector<1x256xf32>
    %14 = arith.mulf %9, %13 : vector<1x256xf32>
    %c255_i32_3 = arith.constant 255 : i32
    %15 = vector.broadcast %c255_i32_3 : i32 to vector<1x256xi32>
    %16 = arith.cmpi eq, %1, %15 : vector<1x256xi32>
    %c0_i32 = arith.constant 0 : i32
    %17 = vector.broadcast %c0_i32 : i32 to vector<1x256xi32>
    %18 = arith.select %16, %17, %1 : vector<1x256xi1>, vector<1x256xi32>
    %c0_i32_4 = arith.constant 0 : i32
    %19 = vector.broadcast %c0_i32_4 : i32 to vector<1x256xi32>
    %c1_i32 = arith.constant 1 : i32
    %20 = vector.broadcast %c1_i32 : i32 to vector<1x256xi32>
    %21 = arith.cmpi sge, %18, %20 : vector<1x256xi32>
    %22 = arith.extui %21 : vector<1x256xi1> to vector<1x256xi32>
    %23 = arith.addi %19, %22 : vector<1x256xi32>
    %c6_i32 = arith.constant 6 : i32
    %24 = vector.broadcast %c6_i32 : i32 to vector<1x256xi32>
    %25 = arith.cmpi sge, %18, %24 : vector<1x256xi32>
    %26 = arith.extui %25 : vector<1x256xi1> to vector<1x256xi32>
    %27 = arith.addi %23, %26 : vector<1x256xi32>
    %c10_i32 = arith.constant 10 : i32
    %28 = vector.broadcast %c10_i32 : i32 to vector<1x256xi32>
    %29 = arith.cmpi sge, %18, %28 : vector<1x256xi32>
    %30 = arith.extui %29 : vector<1x256xi1> to vector<1x256xi32>
    %31 = arith.addi %27, %30 : vector<1x256xi32>
    %c18_i32 = arith.constant 18 : i32
    %32 = vector.broadcast %c18_i32 : i32 to vector<1x256xi32>
    %33 = arith.cmpi sge, %18, %32 : vector<1x256xi32>
    %34 = arith.extui %33 : vector<1x256xi1> to vector<1x256xi32>
    %35 = arith.addi %31, %34 : vector<1x256xi32>
    %c19_i32 = arith.constant 19 : i32
    %36 = vector.broadcast %c19_i32 : i32 to vector<1x256xi32>
    %37 = arith.cmpi sge, %18, %36 : vector<1x256xi32>
    %38 = arith.extui %37 : vector<1x256xi1> to vector<1x256xi32>
    %39 = arith.addi %35, %38 : vector<1x256xi32>
    %c21_i32 = arith.constant 21 : i32
    %40 = vector.broadcast %c21_i32 : i32 to vector<1x256xi32>
    %41 = arith.cmpi sge, %18, %40 : vector<1x256xi32>
    %42 = arith.extui %41 : vector<1x256xi1> to vector<1x256xi32>
    %43 = arith.addi %39, %42 : vector<1x256xi32>
    %c29_i32 = arith.constant 29 : i32
    %44 = vector.broadcast %c29_i32 : i32 to vector<1x256xi32>
    %45 = arith.cmpi sge, %18, %44 : vector<1x256xi32>
    %46 = arith.extui %45 : vector<1x256xi1> to vector<1x256xi32>
    %47 = arith.addi %43, %46 : vector<1x256xi32>
    %c36_i32 = arith.constant 36 : i32
    %48 = vector.broadcast %c36_i32 : i32 to vector<1x256xi32>
    %49 = arith.cmpi sge, %18, %48 : vector<1x256xi32>
    %50 = arith.extui %49 : vector<1x256xi1> to vector<1x256xi32>
    %51 = arith.addi %47, %50 : vector<1x256xi32>
    %c45_i32 = arith.constant 45 : i32
    %52 = vector.broadcast %c45_i32 : i32 to vector<1x256xi32>
    %53 = arith.cmpi sge, %18, %52 : vector<1x256xi32>
    %54 = arith.extui %53 : vector<1x256xi1> to vector<1x256xi32>
    %55 = arith.addi %51, %54 : vector<1x256xi32>
    %c46_i32 = arith.constant 46 : i32
    %56 = vector.broadcast %c46_i32 : i32 to vector<1x256xi32>
    %57 = arith.cmpi sge, %18, %56 : vector<1x256xi32>
    %58 = arith.extui %57 : vector<1x256xi1> to vector<1x256xi32>
    %59 = arith.addi %55, %58 : vector<1x256xi32>
    %c54_i32 = arith.constant 54 : i32
    %60 = vector.broadcast %c54_i32 : i32 to vector<1x256xi32>
    %61 = arith.cmpi sge, %18, %60 : vector<1x256xi32>
    %62 = arith.extui %61 : vector<1x256xi1> to vector<1x256xi32>
    %63 = arith.addi %59, %62 : vector<1x256xi32>
    %c55_i32 = arith.constant 55 : i32
    %64 = vector.broadcast %c55_i32 : i32 to vector<1x256xi32>
    %65 = arith.cmpi sge, %18, %64 : vector<1x256xi32>
    %66 = arith.extui %65 : vector<1x256xi1> to vector<1x256xi32>
    %67 = arith.addi %63, %66 : vector<1x256xi32>
    %c65_i32 = arith.constant 65 : i32
    %68 = vector.broadcast %c65_i32 : i32 to vector<1x256xi32>
    %69 = arith.cmpi sge, %18, %68 : vector<1x256xi32>
    %70 = arith.extui %69 : vector<1x256xi1> to vector<1x256xi32>
    %71 = arith.addi %67, %70 : vector<1x256xi32>
    %c73_i32 = arith.constant 73 : i32
    %72 = vector.broadcast %c73_i32 : i32 to vector<1x256xi32>
    %73 = arith.cmpi sge, %18, %72 : vector<1x256xi32>
    %74 = arith.extui %73 : vector<1x256xi1> to vector<1x256xi32>
    %75 = arith.addi %71, %74 : vector<1x256xi32>
    %c77_i32 = arith.constant 77 : i32
    %76 = vector.broadcast %c77_i32 : i32 to vector<1x256xi32>
    %77 = arith.cmpi sge, %18, %76 : vector<1x256xi32>
    %78 = arith.extui %77 : vector<1x256xi1> to vector<1x256xi32>
    %79 = arith.addi %75, %78 : vector<1x256xi32>
    %c89_i32 = arith.constant 89 : i32
    %80 = vector.broadcast %c89_i32 : i32 to vector<1x256xi32>
    %81 = arith.cmpi sge, %18, %80 : vector<1x256xi32>
    %82 = arith.extui %81 : vector<1x256xi1> to vector<1x256xi32>
    %83 = arith.addi %79, %82 : vector<1x256xi32>
    %c91_i32 = arith.constant 91 : i32
    %84 = vector.broadcast %c91_i32 : i32 to vector<1x256xi32>
    %85 = arith.cmpi sge, %18, %84 : vector<1x256xi32>
    %86 = arith.extui %85 : vector<1x256xi1> to vector<1x256xi32>
    %87 = arith.addi %83, %86 : vector<1x256xi32>
    %c99_i32 = arith.constant 99 : i32
    %88 = vector.broadcast %c99_i32 : i32 to vector<1x256xi32>
    %89 = arith.cmpi sge, %18, %88 : vector<1x256xi32>
    %90 = arith.extui %89 : vector<1x256xi1> to vector<1x256xi32>
    %91 = arith.addi %87, %90 : vector<1x256xi32>
    %c100_i32 = arith.constant 100 : i32
    %92 = vector.broadcast %c100_i32 : i32 to vector<1x256xi32>
    %93 = arith.cmpi sge, %18, %92 : vector<1x256xi32>
    %94 = arith.extui %93 : vector<1x256xi1> to vector<1x256xi32>
    %95 = arith.addi %91, %94 : vector<1x256xi32>
    %c107_i32 = arith.constant 107 : i32
    %96 = vector.broadcast %c107_i32 : i32 to vector<1x256xi32>
    %97 = arith.cmpi sge, %18, %96 : vector<1x256xi32>
    %98 = arith.extui %97 : vector<1x256xi1> to vector<1x256xi32>
    %99 = arith.addi %95, %98 : vector<1x256xi32>
    %100 = tpu.iota {dimensions = array<i32: 0>} : vector<129x256xi32>
    %c108_i32 = arith.constant 108 : i32
    %101 = vector.broadcast %c108_i32 : i32 to vector<129x256xi32>
    %102 = arith.cmpi slt, %100, %101 : vector<129x256xi32>
    %103 = vector.broadcast %18 : vector<1x256xi32> to vector<129x256xi32>
    %104 = arith.cmpi eq, %100, %103 : vector<129x256xi32>
    %c108_i32_5 = arith.constant 108 : i32
    %105 = vector.broadcast %c108_i32_5 : i32 to vector<1x256xi32>
    %106 = arith.addi %99, %105 : vector<1x256xi32>
    %107 = vector.broadcast %106 : vector<1x256xi32> to vector<129x256xi32>
    %108 = arith.cmpi eq, %100, %107 : vector<129x256xi32>
    %c0_6 = arith.constant 0 : index
    %c0_7 = arith.constant 0 : index
    %c0_8 = arith.constant 0 : index
    %109 = vector.load %arg3[%c0_6, %c0_7, %c0_8] : memref<1x129x256xf32, #tpu.memory_space<vmem>>, vector<1x129x256xf32>
    %110 = vector.shape_cast %109 : vector<1x129x256xf32> to vector<129x256xf32>
    %cst = arith.constant 5.000000e-01 : f32
    %111 = vector.broadcast %cst : f32 to vector<129x256xf32>
    %112 = arith.mulf %111, %110 : vector<129x256xf32>
    %113 = math.tanh %112 : vector<129x256xf32>
    %cst_9 = arith.constant 5.000000e-01 : f32
    %114 = vector.broadcast %cst_9 : f32 to vector<129x256xf32>
    %115 = arith.mulf %114, %113 : vector<129x256xf32>
    %cst_10 = arith.constant 5.000000e-01 : f32
    %116 = vector.broadcast %cst_10 : f32 to vector<129x256xf32>
    %117 = arith.addf %115, %116 : vector<129x256xf32>
    %118 = arith.mulf %117, %117 : vector<129x256xf32>
    %cst_11 = arith.constant 1.000000e+00 : f32
    %119 = vector.broadcast %cst_11 : f32 to vector<129x256xf32>
    %120 = arith.subf %119, %117 : vector<129x256xf32>
    %cst_12 = arith.constant 9.99999993E-9 : f32
    %121 = vector.broadcast %cst_12 : f32 to vector<129x256xf32>
    %122 = arith.addf %120, %121 : vector<129x256xf32>
    %123 = math.log %122 : vector<129x256xf32>
    %124 = arith.mulf %118, %123 : vector<129x256xf32>
    %cst_13 = arith.constant dense<0.000000e+00> : vector<256xf32>
    %125 = vector.multi_reduction <add>, %124, %cst_13 [0] : vector<129x256xf32> to vector<256xf32>
    %126 = vector.shape_cast %125 : vector<256xf32> to vector<1x256xf32>
    %cst_14 = arith.constant 0.000000e+00 : f32
    %127 = vector.broadcast %cst_14 : f32 to vector<129x256xf32>
    %128 = arith.select %104, %117, %127 : vector<129x256xi1>, vector<129x256xf32>
    %cst_15 = arith.constant dense<0.000000e+00> : vector<256xf32>
    %129 = vector.multi_reduction <add>, %128, %cst_15 [0] : vector<129x256xf32> to vector<256xf32>
    %130 = vector.shape_cast %129 : vector<256xf32> to vector<1x256xf32>
    %cst_16 = arith.constant 0.000000e+00 : f32
    %131 = vector.broadcast %cst_16 : f32 to vector<129x256xf32>
    %132 = arith.select %108, %117, %131 : vector<129x256xi1>, vector<129x256xf32>
    %cst_17 = arith.constant dense<0.000000e+00> : vector<256xf32>
    %133 = vector.multi_reduction <add>, %132, %cst_17 [0] : vector<129x256xf32> to vector<256xf32>
    %134 = vector.shape_cast %133 : vector<256xf32> to vector<1x256xf32>
    %cst_18 = arith.constant 1.000000e+00 : f32
    %135 = vector.broadcast %cst_18 : f32 to vector<1x256xf32>
    %136 = arith.subf %135, %130 : vector<1x256xf32>
    %137 = arith.mulf %136, %136 : vector<1x256xf32>
    %cst_19 = arith.constant 9.99999993E-9 : f32
    %138 = vector.broadcast %cst_19 : f32 to vector<1x256xf32>
    %139 = arith.addf %130, %138 : vector<1x256xf32>
    %140 = math.log %139 : vector<1x256xf32>
    %141 = arith.mulf %137, %140 : vector<1x256xf32>
    %cst_20 = arith.constant 1.000000e+00 : f32
    %142 = vector.broadcast %cst_20 : f32 to vector<1x256xf32>
    %143 = arith.subf %142, %134 : vector<1x256xf32>
    %144 = arith.mulf %143, %143 : vector<1x256xf32>
    %cst_21 = arith.constant 9.99999993E-9 : f32
    %145 = vector.broadcast %cst_21 : f32 to vector<1x256xf32>
    %146 = arith.addf %134, %145 : vector<1x256xf32>
    %147 = math.log %146 : vector<1x256xf32>
    %148 = arith.mulf %144, %147 : vector<1x256xf32>
    %149 = arith.addf %141, %148 : vector<1x256xf32>
    %cst_22 = arith.constant 5.000000e-01 : f32
    %150 = vector.broadcast %cst_22 : f32 to vector<1x256xf32>
    %151 = arith.mulf %150, %149 : vector<1x256xf32>
    %152 = arith.mulf %130, %130 : vector<1x256xf32>
    %cst_23 = arith.constant 1.000000e+00 : f32
    %153 = vector.broadcast %cst_23 : f32 to vector<1x256xf32>
    %154 = arith.subf %153, %130 : vector<1x256xf32>
    %cst_24 = arith.constant 9.99999993E-9 : f32
    %155 = vector.broadcast %cst_24 : f32 to vector<1x256xf32>
    %156 = arith.addf %154, %155 : vector<1x256xf32>
    %157 = math.log %156 : vector<1x256xf32>
    %158 = arith.mulf %152, %157 : vector<1x256xf32>
    %159 = arith.subf %126, %158 : vector<1x256xf32>
    %160 = arith.mulf %134, %134 : vector<1x256xf32>
    %cst_25 = arith.constant 1.000000e+00 : f32
    %161 = vector.broadcast %cst_25 : f32 to vector<1x256xf32>
    %162 = arith.subf %161, %134 : vector<1x256xf32>
    %cst_26 = arith.constant 9.99999993E-9 : f32
    %163 = vector.broadcast %cst_26 : f32 to vector<1x256xf32>
    %164 = arith.addf %162, %163 : vector<1x256xf32>
    %165 = math.log %164 : vector<1x256xf32>
    %166 = arith.mulf %160, %165 : vector<1x256xf32>
    %167 = arith.subf %159, %166 : vector<1x256xf32>
    %cst_27 = arith.constant 5.000000e-01 : f32
    %168 = vector.broadcast %cst_27 : f32 to vector<1x256xf32>
    %169 = arith.mulf %168, %167 : vector<1x256xf32>
    %170 = arith.addf %151, %169 : vector<1x256xf32>
    %cst_28 = arith.constant 0.000000e+00 : f32
    %171 = vector.broadcast %cst_28 : f32 to vector<1x256xf32>
    %172 = arith.subf %171, %170 : vector<1x256xf32>
    %173 = arith.mulf %172, %14 : vector<1x256xf32>
    %c0_29 = arith.constant 0 : index
    %c0_30 = arith.constant 0 : index
    %c0_31 = arith.constant 0 : index
    %174 = vector.load %arg4[%c0_29, %c0_30, %c0_31] : memref<1x129x256xf32, #tpu.memory_space<vmem>>, vector<1x129x256xf32>
    %175 = vector.shape_cast %174 : vector<1x129x256xf32> to vector<129x256xf32>
    %cst_32 = arith.constant 5.000000e-01 : f32
    %176 = vector.broadcast %cst_32 : f32 to vector<129x256xf32>
    %177 = arith.mulf %176, %175 : vector<129x256xf32>
    %178 = math.tanh %177 : vector<129x256xf32>
    %cst_33 = arith.constant 5.000000e-01 : f32
    %179 = vector.broadcast %cst_33 : f32 to vector<129x256xf32>
    %180 = arith.mulf %179, %178 : vector<129x256xf32>
    %cst_34 = arith.constant 5.000000e-01 : f32
    %181 = vector.broadcast %cst_34 : f32 to vector<129x256xf32>
    %182 = arith.addf %180, %181 : vector<129x256xf32>
    %c0_35 = arith.constant 0 : index
    %c0_36 = arith.constant 0 : index
    %183 = vector.load %arg2[%c0_35, %c0_36] : memref<129x129xf32, #tpu.memory_space<vmem>>, vector<129x129xf32>
    %cst_37 = arith.constant dense<0.000000e+00> : vector<129x256xf32>
    %184 = tpu.matmul %183, %182, %cst_37 {dimension_numbers = #tpu.dot_dimension_numbers<[1], [0], [0], [1], [0, 0, 1, 1], [], []>} : vector<129x129xf32>, vector<129x256xf32>, vector<129x256xf32> -> vector<129x256xf32>
    %cst_38 = arith.constant 1.000000e+00 : f32
    %185 = vector.broadcast %cst_38 : f32 to vector<129x256xf32>
    %186 = arith.subf %185, %184 : vector<129x256xf32>
    %187 = arith.mulf %182, %186 : vector<129x256xf32>
    %cst_39 = arith.constant 0.000000e+00 : f32
    %188 = vector.broadcast %cst_39 : f32 to vector<129x256xf32>
    %189 = arith.select %102, %187, %188 : vector<129x256xi1>, vector<129x256xf32>
    %190 = arith.mulf %189, %189 : vector<129x256xf32>
    %191 = arith.mulf %190, %190 : vector<129x256xf32>
    %192 = arith.mulf %191, %189 : vector<129x256xf32>
    %cst_40 = arith.constant dense<0.000000e+00> : vector<256xf32>
    %193 = vector.multi_reduction <add>, %192, %cst_40 [0] : vector<129x256xf32> to vector<256xf32>
    %194 = vector.shape_cast %193 : vector<256xf32> to vector<1x256xf32>
    %195 = arith.mulf %194, %9 : vector<1x256xf32>
    %cst_41 = arith.constant 0.000000e+00 : f32
    %196 = vector.broadcast %cst_41 : f32 to vector<1x256xf32>
    %197 = vector.extract_strided_slice %182 {offsets = [0, 0], sizes = [1, 256], strides = [1, 1]} : vector<129x256xf32> to vector<1x256xf32>
    %cst_42 = arith.constant dense<0xFF800000> : vector<256xf32>
    %198 = vector.multi_reduction <maximumf>, %197, %cst_42 [0] : vector<1x256xf32> to vector<256xf32>
    %199 = vector.shape_cast %198 : vector<256xf32> to vector<1x256xf32>
    %200 = vector.extract_strided_slice %182 {offsets = [108, 0], sizes = [1, 256], strides = [1, 1]} : vector<129x256xf32> to vector<1x256xf32>
    %cst_43 = arith.constant 1.000000e+00 : f32
    %201 = vector.broadcast %cst_43 : f32 to vector<1x256xf32>
    %202 = arith.subf %201, %199 : vector<1x256xf32>
    %203 = arith.mulf %200, %202 : vector<1x256xf32>
    %204 = arith.mulf %203, %203 : vector<1x256xf32>
    %205 = arith.mulf %204, %204 : vector<1x256xf32>
    %206 = arith.mulf %205, %203 : vector<1x256xf32>
    %207 = arith.addf %196, %206 : vector<1x256xf32>
    %208 = vector.extract_strided_slice %182 {offsets = [1, 0], sizes = [5, 256], strides = [1, 1]} : vector<129x256xf32> to vector<5x256xf32>
    %cst_44 = arith.constant dense<0xFF800000> : vector<256xf32>
    %209 = vector.multi_reduction <maximumf>, %208, %cst_44 [0] : vector<5x256xf32> to vector<256xf32>
    %210 = vector.shape_cast %209 : vector<256xf32> to vector<1x256xf32>
    %211 = vector.extract_strided_slice %182 {offsets = [109, 0], sizes = [1, 256], strides = [1, 1]} : vector<129x256xf32> to vector<1x256xf32>
    %cst_45 = arith.constant 1.000000e+00 : f32
    %212 = vector.broadcast %cst_45 : f32 to vector<1x256xf32>
    %213 = arith.subf %212, %210 : vector<1x256xf32>
    %214 = arith.mulf %211, %213 : vector<1x256xf32>
    %215 = arith.mulf %214, %214 : vector<1x256xf32>
    %216 = arith.mulf %215, %215 : vector<1x256xf32>
    %217 = arith.mulf %216, %214 : vector<1x256xf32>
    %218 = arith.addf %207, %217 : vector<1x256xf32>
    %219 = vector.extract_strided_slice %182 {offsets = [6, 0], sizes = [4, 256], strides = [1, 1]} : vector<129x256xf32> to vector<4x256xf32>
    %cst_46 = arith.constant dense<0xFF800000> : vector<256xf32>
    %220 = vector.multi_reduction <maximumf>, %219, %cst_46 [0] : vector<4x256xf32> to vector<256xf32>
    %221 = vector.shape_cast %220 : vector<256xf32> to vector<1x256xf32>
    %222 = vector.extract_strided_slice %182 {offsets = [110, 0], sizes = [1, 256], strides = [1, 1]} : vector<129x256xf32> to vector<1x256xf32>
    %cst_47 = arith.constant 1.000000e+00 : f32
    %223 = vector.broadcast %cst_47 : f32 to vector<1x256xf32>
    %224 = arith.subf %223, %221 : vector<1x256xf32>
    %225 = arith.mulf %222, %224 : vector<1x256xf32>
    %226 = arith.mulf %225, %225 : vector<1x256xf32>
    %227 = arith.mulf %226, %226 : vector<1x256xf32>
    %228 = arith.mulf %227, %225 : vector<1x256xf32>
    %229 = arith.addf %218, %228 : vector<1x256xf32>
    %230 = vector.extract_strided_slice %182 {offsets = [10, 0], sizes = [8, 256], strides = [1, 1]} : vector<129x256xf32> to vector<8x256xf32>
    %cst_48 = arith.constant dense<0xFF800000> : vector<256xf32>
    %231 = vector.multi_reduction <maximumf>, %230, %cst_48 [0] : vector<8x256xf32> to vector<256xf32>
    %232 = vector.shape_cast %231 : vector<256xf32> to vector<1x256xf32>
    %233 = vector.extract_strided_slice %182 {offsets = [111, 0], sizes = [1, 256], strides = [1, 1]} : vector<129x256xf32> to vector<1x256xf32>
    %cst_49 = arith.constant 1.000000e+00 : f32
    %234 = vector.broadcast %cst_49 : f32 to vector<1x256xf32>
    %235 = arith.subf %234, %232 : vector<1x256xf32>
    %236 = arith.mulf %233, %235 : vector<1x256xf32>
    %237 = arith.mulf %236, %236 : vector<1x256xf32>
    %238 = arith.mulf %237, %237 : vector<1x256xf32>
    %239 = arith.mulf %238, %236 : vector<1x256xf32>
    %240 = arith.addf %229, %239 : vector<1x256xf32>
    %241 = vector.extract_strided_slice %182 {offsets = [18, 0], sizes = [1, 256], strides = [1, 1]} : vector<129x256xf32> to vector<1x256xf32>
    %cst_50 = arith.constant dense<0xFF800000> : vector<256xf32>
    %242 = vector.multi_reduction <maximumf>, %241, %cst_50 [0] : vector<1x256xf32> to vector<256xf32>
    %243 = vector.shape_cast %242 : vector<256xf32> to vector<1x256xf32>
    %244 = vector.extract_strided_slice %182 {offsets = [112, 0], sizes = [1, 256], strides = [1, 1]} : vector<129x256xf32> to vector<1x256xf32>
    %cst_51 = arith.constant 1.000000e+00 : f32
    %245 = vector.broadcast %cst_51 : f32 to vector<1x256xf32>
    %246 = arith.subf %245, %243 : vector<1x256xf32>
    %247 = arith.mulf %244, %246 : vector<1x256xf32>
    %248 = arith.mulf %247, %247 : vector<1x256xf32>
    %249 = arith.mulf %248, %248 : vector<1x256xf32>
    %250 = arith.mulf %249, %247 : vector<1x256xf32>
    %251 = arith.addf %240, %250 : vector<1x256xf32>
    %252 = vector.extract_strided_slice %182 {offsets = [19, 0], sizes = [2, 256], strides = [1, 1]} : vector<129x256xf32> to vector<2x256xf32>
    %cst_52 = arith.constant dense<0xFF800000> : vector<256xf32>
    %253 = vector.multi_reduction <maximumf>, %252, %cst_52 [0] : vector<2x256xf32> to vector<256xf32>
    %254 = vector.shape_cast %253 : vector<256xf32> to vector<1x256xf32>
    %255 = vector.extract_strided_slice %182 {offsets = [113, 0], sizes = [1, 256], strides = [1, 1]} : vector<129x256xf32> to vector<1x256xf32>
    %cst_53 = arith.constant 1.000000e+00 : f32
    %256 = vector.broadcast %cst_53 : f32 to vector<1x256xf32>
    %257 = arith.subf %256, %254 : vector<1x256xf32>
    %258 = arith.mulf %255, %257 : vector<1x256xf32>
    %259 = arith.mulf %258, %258 : vector<1x256xf32>
    %260 = arith.mulf %259, %259 : vector<1x256xf32>
    %261 = arith.mulf %260, %258 : vector<1x256xf32>
    %262 = arith.addf %251, %261 : vector<1x256xf32>
    %263 = vector.extract_strided_slice %182 {offsets = [21, 0], sizes = [8, 256], strides = [1, 1]} : vector<129x256xf32> to vector<8x256xf32>
    %cst_54 = arith.constant dense<0xFF800000> : vector<256xf32>
    %264 = vector.multi_reduction <maximumf>, %263, %cst_54 [0] : vector<8x256xf32> to vector<256xf32>
    %265 = vector.shape_cast %264 : vector<256xf32> to vector<1x256xf32>
    %266 = vector.extract_strided_slice %182 {offsets = [114, 0], sizes = [1, 256], strides = [1, 1]} : vector<129x256xf32> to vector<1x256xf32>
    %cst_55 = arith.constant 1.000000e+00 : f32
    %267 = vector.broadcast %cst_55 : f32 to vector<1x256xf32>
    %268 = arith.subf %267, %265 : vector<1x256xf32>
    %269 = arith.mulf %266, %268 : vector<1x256xf32>
    %270 = arith.mulf %269, %269 : vector<1x256xf32>
    %271 = arith.mulf %270, %270 : vector<1x256xf32>
    %272 = arith.mulf %271, %269 : vector<1x256xf32>
    %273 = arith.addf %262, %272 : vector<1x256xf32>
    %274 = vector.extract_strided_slice %182 {offsets = [29, 0], sizes = [7, 256], strides = [1, 1]} : vector<129x256xf32> to vector<7x256xf32>
    %cst_56 = arith.constant dense<0xFF800000> : vector<256xf32>
    %275 = vector.multi_reduction <maximumf>, %274, %cst_56 [0] : vector<7x256xf32> to vector<256xf32>
    %276 = vector.shape_cast %275 : vector<256xf32> to vector<1x256xf32>
    %277 = vector.extract_strided_slice %182 {offsets = [115, 0], sizes = [1, 256], strides = [1, 1]} : vector<129x256xf32> to vector<1x256xf32>
    %cst_57 = arith.constant 1.000000e+00 : f32
    %278 = vector.broadcast %cst_57 : f32 to vector<1x256xf32>
    %279 = arith.subf %278, %276 : vector<1x256xf32>
    %280 = arith.mulf %277, %279 : vector<1x256xf32>
    %281 = arith.mulf %280, %280 : vector<1x256xf32>
    %282 = arith.mulf %281, %281 : vector<1x256xf32>
    %283 = arith.mulf %282, %280 : vector<1x256xf32>
    %284 = arith.addf %273, %283 : vector<1x256xf32>
    %285 = vector.extract_strided_slice %182 {offsets = [36, 0], sizes = [9, 256], strides = [1, 1]} : vector<129x256xf32> to vector<9x256xf32>
    %cst_58 = arith.constant dense<0xFF800000> : vector<256xf32>
    %286 = vector.multi_reduction <maximumf>, %285, %cst_58 [0] : vector<9x256xf32> to vector<256xf32>
    %287 = vector.shape_cast %286 : vector<256xf32> to vector<1x256xf32>
    %288 = vector.extract_strided_slice %182 {offsets = [116, 0], sizes = [1, 256], strides = [1, 1]} : vector<129x256xf32> to vector<1x256xf32>
    %cst_59 = arith.constant 1.000000e+00 : f32
    %289 = vector.broadcast %cst_59 : f32 to vector<1x256xf32>
    %290 = arith.subf %289, %287 : vector<1x256xf32>
    %291 = arith.mulf %288, %290 : vector<1x256xf32>
    %292 = arith.mulf %291, %291 : vector<1x256xf32>
    %293 = arith.mulf %292, %292 : vector<1x256xf32>
    %294 = arith.mulf %293, %291 : vector<1x256xf32>
    %295 = arith.addf %284, %294 : vector<1x256xf32>
    %296 = vector.extract_strided_slice %182 {offsets = [45, 0], sizes = [1, 256], strides = [1, 1]} : vector<129x256xf32> to vector<1x256xf32>
    %cst_60 = arith.constant dense<0xFF800000> : vector<256xf32>
    %297 = vector.multi_reduction <maximumf>, %296, %cst_60 [0] : vector<1x256xf32> to vector<256xf32>
    %298 = vector.shape_cast %297 : vector<256xf32> to vector<1x256xf32>
    %299 = vector.extract_strided_slice %182 {offsets = [117, 0], sizes = [1, 256], strides = [1, 1]} : vector<129x256xf32> to vector<1x256xf32>
    %cst_61 = arith.constant 1.000000e+00 : f32
    %300 = vector.broadcast %cst_61 : f32 to vector<1x256xf32>
    %301 = arith.subf %300, %298 : vector<1x256xf32>
    %302 = arith.mulf %299, %301 : vector<1x256xf32>
    %303 = arith.mulf %302, %302 : vector<1x256xf32>
    %304 = arith.mulf %303, %303 : vector<1x256xf32>
    %305 = arith.mulf %304, %302 : vector<1x256xf32>
    %306 = arith.addf %295, %305 : vector<1x256xf32>
    %307 = vector.extract_strided_slice %182 {offsets = [46, 0], sizes = [8, 256], strides = [1, 1]} : vector<129x256xf32> to vector<8x256xf32>
    %cst_62 = arith.constant dense<0xFF800000> : vector<256xf32>
    %308 = vector.multi_reduction <maximumf>, %307, %cst_62 [0] : vector<8x256xf32> to vector<256xf32>
    %309 = vector.shape_cast %308 : vector<256xf32> to vector<1x256xf32>
    %310 = vector.extract_strided_slice %182 {offsets = [118, 0], sizes = [1, 256], strides = [1, 1]} : vector<129x256xf32> to vector<1x256xf32>
    %cst_63 = arith.constant 1.000000e+00 : f32
    %311 = vector.broadcast %cst_63 : f32 to vector<1x256xf32>
    %312 = arith.subf %311, %309 : vector<1x256xf32>
    %313 = arith.mulf %310, %312 : vector<1x256xf32>
    %314 = arith.mulf %313, %313 : vector<1x256xf32>
    %315 = arith.mulf %314, %314 : vector<1x256xf32>
    %316 = arith.mulf %315, %313 : vector<1x256xf32>
    %317 = arith.addf %306, %316 : vector<1x256xf32>
    %318 = vector.extract_strided_slice %182 {offsets = [54, 0], sizes = [1, 256], strides = [1, 1]} : vector<129x256xf32> to vector<1x256xf32>
    %cst_64 = arith.constant dense<0xFF800000> : vector<256xf32>
    %319 = vector.multi_reduction <maximumf>, %318, %cst_64 [0] : vector<1x256xf32> to vector<256xf32>
    %320 = vector.shape_cast %319 : vector<256xf32> to vector<1x256xf32>
    %321 = vector.extract_strided_slice %182 {offsets = [119, 0], sizes = [1, 256], strides = [1, 1]} : vector<129x256xf32> to vector<1x256xf32>
    %cst_65 = arith.constant 1.000000e+00 : f32
    %322 = vector.broadcast %cst_65 : f32 to vector<1x256xf32>
    %323 = arith.subf %322, %320 : vector<1x256xf32>
    %324 = arith.mulf %321, %323 : vector<1x256xf32>
    %325 = arith.mulf %324, %324 : vector<1x256xf32>
    %326 = arith.mulf %325, %325 : vector<1x256xf32>
    %327 = arith.mulf %326, %324 : vector<1x256xf32>
    %328 = arith.addf %317, %327 : vector<1x256xf32>
    %329 = vector.extract_strided_slice %182 {offsets = [55, 0], sizes = [10, 256], strides = [1, 1]} : vector<129x256xf32> to vector<10x256xf32>
    %cst_66 = arith.constant dense<0xFF800000> : vector<256xf32>
    %330 = vector.multi_reduction <maximumf>, %329, %cst_66 [0] : vector<10x256xf32> to vector<256xf32>
    %331 = vector.shape_cast %330 : vector<256xf32> to vector<1x256xf32>
    %332 = vector.extract_strided_slice %182 {offsets = [120, 0], sizes = [1, 256], strides = [1, 1]} : vector<129x256xf32> to vector<1x256xf32>
    %cst_67 = arith.constant 1.000000e+00 : f32
    %333 = vector.broadcast %cst_67 : f32 to vector<1x256xf32>
    %334 = arith.subf %333, %331 : vector<1x256xf32>
    %335 = arith.mulf %332, %334 : vector<1x256xf32>
    %336 = arith.mulf %335, %335 : vector<1x256xf32>
    %337 = arith.mulf %336, %336 : vector<1x256xf32>
    %338 = arith.mulf %337, %335 : vector<1x256xf32>
    %339 = arith.addf %328, %338 : vector<1x256xf32>
    %340 = vector.extract_strided_slice %182 {offsets = [65, 0], sizes = [8, 256], strides = [1, 1]} : vector<129x256xf32> to vector<8x256xf32>
    %cst_68 = arith.constant dense<0xFF800000> : vector<256xf32>
    %341 = vector.multi_reduction <maximumf>, %340, %cst_68 [0] : vector<8x256xf32> to vector<256xf32>
    %342 = vector.shape_cast %341 : vector<256xf32> to vector<1x256xf32>
    %343 = vector.extract_strided_slice %182 {offsets = [121, 0], sizes = [1, 256], strides = [1, 1]} : vector<129x256xf32> to vector<1x256xf32>
    %cst_69 = arith.constant 1.000000e+00 : f32
    %344 = vector.broadcast %cst_69 : f32 to vector<1x256xf32>
    %345 = arith.subf %344, %342 : vector<1x256xf32>
    %346 = arith.mulf %343, %345 : vector<1x256xf32>
    %347 = arith.mulf %346, %346 : vector<1x256xf32>
    %348 = arith.mulf %347, %347 : vector<1x256xf32>
    %349 = arith.mulf %348, %346 : vector<1x256xf32>
    %350 = arith.addf %339, %349 : vector<1x256xf32>
    %351 = vector.extract_strided_slice %182 {offsets = [73, 0], sizes = [4, 256], strides = [1, 1]} : vector<129x256xf32> to vector<4x256xf32>
    %cst_70 = arith.constant dense<0xFF800000> : vector<256xf32>
    %352 = vector.multi_reduction <maximumf>, %351, %cst_70 [0] : vector<4x256xf32> to vector<256xf32>
    %353 = vector.shape_cast %352 : vector<256xf32> to vector<1x256xf32>
    %354 = vector.extract_strided_slice %182 {offsets = [122, 0], sizes = [1, 256], strides = [1, 1]} : vector<129x256xf32> to vector<1x256xf32>
    %cst_71 = arith.constant 1.000000e+00 : f32
    %355 = vector.broadcast %cst_71 : f32 to vector<1x256xf32>
    %356 = arith.subf %355, %353 : vector<1x256xf32>
    %357 = arith.mulf %354, %356 : vector<1x256xf32>
    %358 = arith.mulf %357, %357 : vector<1x256xf32>
    %359 = arith.mulf %358, %358 : vector<1x256xf32>
    %360 = arith.mulf %359, %357 : vector<1x256xf32>
    %361 = arith.addf %350, %360 : vector<1x256xf32>
    %362 = vector.extract_strided_slice %182 {offsets = [77, 0], sizes = [12, 256], strides = [1, 1]} : vector<129x256xf32> to vector<12x256xf32>
    %cst_72 = arith.constant dense<0xFF800000> : vector<256xf32>
    %363 = vector.multi_reduction <maximumf>, %362, %cst_72 [0] : vector<12x256xf32> to vector<256xf32>
    %364 = vector.shape_cast %363 : vector<256xf32> to vector<1x256xf32>
    %365 = vector.extract_strided_slice %182 {offsets = [123, 0], sizes = [1, 256], strides = [1, 1]} : vector<129x256xf32> to vector<1x256xf32>
    %cst_73 = arith.constant 1.000000e+00 : f32
    %366 = vector.broadcast %cst_73 : f32 to vector<1x256xf32>
    %367 = arith.subf %366, %364 : vector<1x256xf32>
    %368 = arith.mulf %365, %367 : vector<1x256xf32>
    %369 = arith.mulf %368, %368 : vector<1x256xf32>
    %370 = arith.mulf %369, %369 : vector<1x256xf32>
    %371 = arith.mulf %370, %368 : vector<1x256xf32>
    %372 = arith.addf %361, %371 : vector<1x256xf32>
    %373 = vector.extract_strided_slice %182 {offsets = [89, 0], sizes = [2, 256], strides = [1, 1]} : vector<129x256xf32> to vector<2x256xf32>
    %cst_74 = arith.constant dense<0xFF800000> : vector<256xf32>
    %374 = vector.multi_reduction <maximumf>, %373, %cst_74 [0] : vector<2x256xf32> to vector<256xf32>
    %375 = vector.shape_cast %374 : vector<256xf32> to vector<1x256xf32>
    %376 = vector.extract_strided_slice %182 {offsets = [124, 0], sizes = [1, 256], strides = [1, 1]} : vector<129x256xf32> to vector<1x256xf32>
    %cst_75 = arith.constant 1.000000e+00 : f32
    %377 = vector.broadcast %cst_75 : f32 to vector<1x256xf32>
    %378 = arith.subf %377, %375 : vector<1x256xf32>
    %379 = arith.mulf %376, %378 : vector<1x256xf32>
    %380 = arith.mulf %379, %379 : vector<1x256xf32>
    %381 = arith.mulf %380, %380 : vector<1x256xf32>
    %382 = arith.mulf %381, %379 : vector<1x256xf32>
    %383 = arith.addf %372, %382 : vector<1x256xf32>
    %384 = vector.extract_strided_slice %182 {offsets = [91, 0], sizes = [8, 256], strides = [1, 1]} : vector<129x256xf32> to vector<8x256xf32>
    %cst_76 = arith.constant dense<0xFF800000> : vector<256xf32>
    %385 = vector.multi_reduction <maximumf>, %384, %cst_76 [0] : vector<8x256xf32> to vector<256xf32>
    %386 = vector.shape_cast %385 : vector<256xf32> to vector<1x256xf32>
    %387 = vector.extract_strided_slice %182 {offsets = [125, 0], sizes = [1, 256], strides = [1, 1]} : vector<129x256xf32> to vector<1x256xf32>
    %cst_77 = arith.constant 1.000000e+00 : f32
    %388 = vector.broadcast %cst_77 : f32 to vector<1x256xf32>
    %389 = arith.subf %388, %386 : vector<1x256xf32>
    %390 = arith.mulf %387, %389 : vector<1x256xf32>
    %391 = arith.mulf %390, %390 : vector<1x256xf32>
    %392 = arith.mulf %391, %391 : vector<1x256xf32>
    %393 = arith.mulf %392, %390 : vector<1x256xf32>
    %394 = arith.addf %383, %393 : vector<1x256xf32>
    %395 = vector.extract_strided_slice %182 {offsets = [99, 0], sizes = [1, 256], strides = [1, 1]} : vector<129x256xf32> to vector<1x256xf32>
    %cst_78 = arith.constant dense<0xFF800000> : vector<256xf32>
    %396 = vector.multi_reduction <maximumf>, %395, %cst_78 [0] : vector<1x256xf32> to vector<256xf32>
    %397 = vector.shape_cast %396 : vector<256xf32> to vector<1x256xf32>
    %398 = vector.extract_strided_slice %182 {offsets = [126, 0], sizes = [1, 256], strides = [1, 1]} : vector<129x256xf32> to vector<1x256xf32>
    %cst_79 = arith.constant 1.000000e+00 : f32
    %399 = vector.broadcast %cst_79 : f32 to vector<1x256xf32>
    %400 = arith.subf %399, %397 : vector<1x256xf32>
    %401 = arith.mulf %398, %400 : vector<1x256xf32>
    %402 = arith.mulf %401, %401 : vector<1x256xf32>
    %403 = arith.mulf %402, %402 : vector<1x256xf32>
    %404 = arith.mulf %403, %401 : vector<1x256xf32>
    %405 = arith.addf %394, %404 : vector<1x256xf32>
    %406 = vector.extract_strided_slice %182 {offsets = [100, 0], sizes = [7, 256], strides = [1, 1]} : vector<129x256xf32> to vector<7x256xf32>
    %cst_80 = arith.constant dense<0xFF800000> : vector<256xf32>
    %407 = vector.multi_reduction <maximumf>, %406, %cst_80 [0] : vector<7x256xf32> to vector<256xf32>
    %408 = vector.shape_cast %407 : vector<256xf32> to vector<1x256xf32>
    %409 = vector.extract_strided_slice %182 {offsets = [127, 0], sizes = [1, 256], strides = [1, 1]} : vector<129x256xf32> to vector<1x256xf32>
    %cst_81 = arith.constant 1.000000e+00 : f32
    %410 = vector.broadcast %cst_81 : f32 to vector<1x256xf32>
    %411 = arith.subf %410, %408 : vector<1x256xf32>
    %412 = arith.mulf %409, %411 : vector<1x256xf32>
    %413 = arith.mulf %412, %412 : vector<1x256xf32>
    %414 = arith.mulf %413, %413 : vector<1x256xf32>
    %415 = arith.mulf %414, %412 : vector<1x256xf32>
    %416 = arith.addf %405, %415 : vector<1x256xf32>
    %417 = vector.extract_strided_slice %182 {offsets = [107, 0], sizes = [1, 256], strides = [1, 1]} : vector<129x256xf32> to vector<1x256xf32>
    %cst_82 = arith.constant dense<0xFF800000> : vector<256xf32>
    %418 = vector.multi_reduction <maximumf>, %417, %cst_82 [0] : vector<1x256xf32> to vector<256xf32>
    %419 = vector.shape_cast %418 : vector<256xf32> to vector<1x256xf32>
    %420 = vector.extract_strided_slice %182 {offsets = [128, 0], sizes = [1, 256], strides = [1, 1]} : vector<129x256xf32> to vector<1x256xf32>
    %cst_83 = arith.constant 1.000000e+00 : f32
    %421 = vector.broadcast %cst_83 : f32 to vector<1x256xf32>
    %422 = arith.subf %421, %419 : vector<1x256xf32>
    %423 = arith.mulf %420, %422 : vector<1x256xf32>
    %424 = arith.mulf %423, %423 : vector<1x256xf32>
    %425 = arith.mulf %424, %424 : vector<1x256xf32>
    %426 = arith.mulf %425, %423 : vector<1x256xf32>
    %427 = arith.addf %416, %426 : vector<1x256xf32>
    %428 = arith.mulf %427, %9 : vector<1x256xf32>
    %429 = arith.mulf %182, %182 : vector<129x256xf32>
    %430 = arith.mulf %429, %182 : vector<129x256xf32>
    %431 = arith.mulf %430, %430 : vector<129x256xf32>
    %cst_84 = arith.constant 0.699999988 : f32
    %432 = vector.broadcast %cst_84 : f32 to vector<129x256xf32>
    %433 = arith.cmpf ogt, %182, %432 : vector<129x256xf32>
    %434 = arith.extui %433 : vector<129x256xi1> to vector<129x256xi32>
    %435 = arith.sitofp %434 : vector<129x256xi32> to vector<129x256xf32>
    %cst_85 = arith.constant 3.000000e-01 : f32
    %436 = vector.broadcast %cst_85 : f32 to vector<129x256xf32>
    %437 = arith.cmpf olt, %182, %436 : vector<129x256xf32>
    %438 = arith.extui %437 : vector<129x256xi1> to vector<129x256xi32>
    %439 = arith.sitofp %438 : vector<129x256xi32> to vector<129x256xf32>
    %cst_86 = arith.constant 0.000000e+00 : f32
    %440 = vector.broadcast %cst_86 : f32 to vector<129x256xf32>
    %441 = arith.select %102, %435, %440 : vector<129x256xi1>, vector<129x256xf32>
    %cst_87 = arith.constant dense<0.000000e+00> : vector<256xf32>
    %442 = vector.multi_reduction <add>, %441, %cst_87 [0] : vector<129x256xf32> to vector<256xf32>
    %443 = vector.shape_cast %442 : vector<256xf32> to vector<1x256xf32>
    %cst_88 = arith.constant dense<0.000000e+00> : vector<256xf32>
    %444 = vector.multi_reduction <add>, %435, %cst_88 [0] : vector<129x256xf32> to vector<256xf32>
    %445 = vector.shape_cast %444 : vector<256xf32> to vector<1x256xf32>
    %446 = arith.subf %445, %443 : vector<1x256xf32>
    %cst_89 = arith.constant 0.000000e+00 : f32
    %447 = vector.broadcast %cst_89 : f32 to vector<129x256xf32>
    %448 = arith.select %102, %439, %447 : vector<129x256xi1>, vector<129x256xf32>
    %cst_90 = arith.constant dense<0.000000e+00> : vector<256xf32>
    %449 = vector.multi_reduction <add>, %448, %cst_90 [0] : vector<129x256xf32> to vector<256xf32>
    %450 = vector.shape_cast %449 : vector<256xf32> to vector<1x256xf32>
    %cst_91 = arith.constant dense<0.000000e+00> : vector<256xf32>
    %451 = vector.multi_reduction <add>, %439, %cst_91 [0] : vector<129x256xf32> to vector<256xf32>
    %452 = vector.shape_cast %451 : vector<256xf32> to vector<1x256xf32>
    %453 = arith.subf %452, %450 : vector<1x256xf32>
    %cst_92 = arith.constant 0.000000e+00 : f32
    %454 = vector.broadcast %cst_92 : f32 to vector<129x256xf32>
    %455 = arith.select %102, %430, %454 : vector<129x256xi1>, vector<129x256xf32>
    %cst_93 = arith.constant dense<0.000000e+00> : vector<256xf32>
    %456 = vector.multi_reduction <add>, %455, %cst_93 [0] : vector<129x256xf32> to vector<256xf32>
    %457 = vector.shape_cast %456 : vector<256xf32> to vector<1x256xf32>
    %cst_94 = arith.constant dense<0.000000e+00> : vector<256xf32>
    %458 = vector.multi_reduction <add>, %430, %cst_94 [0] : vector<129x256xf32> to vector<256xf32>
    %459 = vector.shape_cast %458 : vector<256xf32> to vector<1x256xf32>
    %460 = arith.subf %459, %457 : vector<1x256xf32>
    %cst_95 = arith.constant 0.000000e+00 : f32
    %461 = vector.broadcast %cst_95 : f32 to vector<129x256xf32>
    %462 = arith.select %102, %431, %461 : vector<129x256xi1>, vector<129x256xf32>
    %cst_96 = arith.constant dense<0.000000e+00> : vector<256xf32>
    %463 = vector.multi_reduction <add>, %462, %cst_96 [0] : vector<129x256xf32> to vector<256xf32>
    %464 = vector.shape_cast %463 : vector<256xf32> to vector<1x256xf32>
    %cst_97 = arith.constant dense<0.000000e+00> : vector<256xf32>
    %465 = vector.multi_reduction <add>, %431, %cst_97 [0] : vector<129x256xf32> to vector<256xf32>
    %466 = vector.shape_cast %465 : vector<256xf32> to vector<1x256xf32>
    %467 = arith.subf %466, %464 : vector<1x256xf32>
    %cst_98 = arith.constant 1.000000e+00 : f32
    %468 = vector.broadcast %cst_98 : f32 to vector<1x256xf32>
    %469 = arith.cmpf oeq, %443, %468 : vector<1x256xf32>
    %cst_99 = arith.constant 1.070000e+02 : f32
    %470 = vector.broadcast %cst_99 : f32 to vector<1x256xf32>
    %471 = arith.cmpf oeq, %450, %470 : vector<1x256xf32>
    %472 = arith.andi %469, %471 : vector<1x256xi1>
    %473 = arith.extui %472 : vector<1x256xi1> to vector<1x256xi32>
    %474 = arith.sitofp %473 : vector<1x256xi32> to vector<1x256xf32>
    %cst_100 = arith.constant 1.000000e+00 : f32
    %475 = vector.broadcast %cst_100 : f32 to vector<1x256xf32>
    %476 = arith.cmpf oeq, %446, %475 : vector<1x256xf32>
    %cst_101 = arith.constant 2.000000e+01 : f32
    %477 = vector.broadcast %cst_101 : f32 to vector<1x256xf32>
    %478 = arith.cmpf oeq, %453, %477 : vector<1x256xf32>
    %479 = arith.andi %476, %478 : vector<1x256xi1>
    %480 = arith.extui %479 : vector<1x256xi1> to vector<1x256xi32>
    %481 = arith.sitofp %480 : vector<1x256xi32> to vector<1x256xf32>
    %cst_102 = arith.constant 1.000000e+00 : f32
    %482 = vector.broadcast %cst_102 : f32 to vector<1x256xf32>
    %483 = arith.subf %482, %474 : vector<1x256xf32>
    %484 = arith.mulf %483, %9 : vector<1x256xf32>
    %cst_103 = arith.constant 1.000000e+00 : f32
    %485 = vector.broadcast %cst_103 : f32 to vector<1x256xf32>
    %486 = arith.subf %485, %481 : vector<1x256xf32>
    %487 = arith.mulf %486, %9 : vector<1x256xf32>
    %488 = arith.mulf %457, %457 : vector<1x256xf32>
    %489 = arith.subf %488, %464 : vector<1x256xf32>
    %490 = arith.mulf %484, %489 : vector<1x256xf32>
    %491 = arith.mulf %460, %460 : vector<1x256xf32>
    %492 = arith.subf %491, %467 : vector<1x256xf32>
    %493 = arith.mulf %487, %492 : vector<1x256xf32>
    %494 = tpu.concatenate %173, %14, %195, %428, %490, %484, %493, %487 in 0 : vector<1x256xf32>, vector<1x256xf32>, vector<1x256xf32>, vector<1x256xf32>, vector<1x256xf32>, vector<1x256xf32>, vector<1x256xf32>, vector<1x256xf32> -> vector<8x256xf32>
    %c0_104 = arith.constant 0 : index
    %c0_105 = arith.constant 0 : index
    %c0_106 = arith.constant 0 : index
    %c0_107 = arith.constant 0 : index
    %495 = vector.load %arg6[%c0_104, %c0_105, %c0_106, %c0_107] : memref<1x1x8x256xf32, #tpu.memory_space<vmem>>, vector<1x1x8x256xf32>
    %496 = vector.shape_cast %495 : vector<1x1x8x256xf32> to vector<8x256xf32>
    %497 = vector.shape_cast %494 : vector<8x256xf32> to vector<1x1x8x256xf32>
    tpu.vector_store %arg6[%c0_104, %c0_105, %c0_106, %c0_107], %497 {strides = array<i32>} : memref<1x1x8x256xf32, #tpu.memory_space<vmem>>, vector<1x1x8x256xf32>,
    return
  }
  func.func @transform_0(%arg0: i32, %arg1: i32) -> (i32, i32) {
    %c0_i32 = arith.constant 0 : i32
    %c0_i32_0 = arith.constant 0 : i32
    %c0_i32_1 = arith.constant 0 : i32
    return %c0_i32, %c0_i32_0 : i32, i32
  }
  func.func @transform_1(%arg0: i32, %arg1: i32) -> (i32, i32, i32) {
    %c0_i32 = arith.constant 0 : i32
    %c0_i32_0 = arith.constant 0 : i32
    return %arg0, %c0_i32, %arg1 : i32, i32, i32
  }
  func.func @transform_2(%arg0: i32, %arg1: i32) -> (i32, i32, i32) {
    %c0_i32 = arith.constant 0 : i32
    %c0_i32_0 = arith.constant 0 : i32
    return %arg0, %c0_i32, %arg1 : i32, i32, i32
  }
  func.func @transform_3(%arg0: i32, %arg1: i32) -> (i32, i32, i32) {
    %c0_i32 = arith.constant 0 : i32
    %c0_i32_0 = arith.constant 0 : i32
    return %arg0, %c0_i32, %arg1 : i32, i32, i32
  }
  func.func @transform_4(%arg0: i32, %arg1: i32) -> (i32, i32, i32, i32) {
    %c0_i32 = arith.constant 0 : i32
    %c0_i32_0 = arith.constant 0 : i32
    %c0_i32_1 = arith.constant 0 : i32
    return %arg0, %arg1, %c0_i32, %c0_i32_0 : i32, i32, i32, i32
  }
}

</mosaic_0001>

<llo_original>
// kernel: tpu_custom_call.1
$region0: #{tpu_custom_call.1}
  #allocation0 [shape = 'u32[]', space=smem, size = 0x4, offset = 0x4, fixed_abs, tag = 'smem constant byte address 0x4 - core index']
  #allocation1 [shape = 'u32[144,128]{1,0:T(1,128)}', space=vmem, size = 0x12000, scoped, tag = 'internal scratch']
  %s0 = inlined_call_operand.vmem [shape: f32[129,129], index: 0, kind: input, shape index: {}]
  %s1 = inlined_call_operand.vmem [shape: f32[2,129,256], index: 1, kind: input, shape index: {}]
  %s2 = inlined_call_operand.vmem [shape: f32[2,129,256], index: 2, kind: input, shape index: {}]
  %s3 = inlined_call_operand.vmem [shape: s32[2,1,256], index: 3, kind: input, shape index: {}]
  %s4 = inlined_call_operand.hbm [shape: f32[2,1,8,256], index: 4, kind: output, shape index: {}]
  %s5 = sld [smem:[#allocation0]]
  $region49: #{tpu_custom_call.1} parent=0
    _
  %s7 = ssub.s32 1, %s5
  %s8 = scalar_select 0, %s7, %s5
  $region1: #{tpu_custom_call.1} parent=0
    #allocation2 [shape = 'u8[16384]{0}', space=vmem, size = 0x4000, scoped, tag = 'output window, operand 0']
    #allocation3 [shape = 's32[2]{0}', space=sflag, size = 0x8, scoped, tag = 'scoped memory for tpu_custom_call.1']
    %9 = vsyncpa [#allocation3], 0
    %s10 = scalar_lea.sflag [#allocation3], 1
    %11 = vsyncpa %s10, 0
    loop: start=0, step=1, limit=4
    $region2: #{tpu_custom_call.1} parent=1 // loop_pre_header
      _
    $region3: #{tpu_custom_call.1} parent=1 // loop_header
      %s13 = sphi 0, %s17
      %p14 = scmp.ge.s32.totalorder %s13, 4
      %s20 = sphi 0, %s32
      %s21 = sphi 0, %s28
      %s22 = sphi 0, %s20
      %s23 = sphi 0, %s21
      %s24 = sphi 0, %s22
      %s25 = sphi 0, %s23
      %s33 = sphi 0, %s33
      %s35 = sphi 0, %s33
      %s36 = sphi 0, %s35
      %s50 = sphi 0, %s36
      %s58 = sphi 0, %s60
      %s61 = sphi 0, %s58
      %s62 = sphi 0, %s61
      %s78 = sphi 0, %s62
      %s86 = sphi 0, %s88
      %s89 = sphi 0, %s86
      %s90 = sphi 0, %s89
      %s106 = sphi 0, %s90
      %s114 = sphi 0, %s116
      %s117 = sphi 0, %s114
      %s118 = sphi 0, %s117
      %s134 = sphi 0, %s118
      %s142 = sphi 0, %s144
      %s145 = sphi 0, %s142
      %s146 = sphi 0, %s145
      %s162 = sphi 0, %s146
    $region4: #{tpu_custom_call.1} parent=1 // loop_header_branch
      %16 = sbr.rel (%p14) target = $region8
    $region5: #{tpu_custom_call.1} parent=1 // loop_body
      %s18 = ssub.s32 %s13, 1
      %s19 = ssub.s32 %s13, 2
      %s26 = sadd.s32 1, %s21
      %p27 = scmp.ge.s32.totalorder %s26, 1
      %s28 = scalar_select %p27, 0, %s26
      %s29 = sadd.s32 1, %s20
      %s30 = scalar_select %p27, %s29, %s20
      %p31 = scmp.ge.s32.totalorder %s30, 2
      %s32 = scalar_select %p31, 0, %s30
      %s34 = sadd.s32 %s33, 1
      %p37 = scmp.eq.s32.totalorder %s13, 1
      %p38 = scmp.ne.s32.totalorder %s33, %s35
      %p39 = scmp.eq.s32.totalorder %s13, 0
      %p40 = por %p38, %p39
      %p41 = scmp.ne.s32.totalorder %s33, %s35
      %p42 = scmp.eq.s32.totalorder %s18, 1
      %p43 = por %p41, %p42
      %p44 = scmp.ne.s32.totalorder %s35, %s36
      %p45 = scmp.eq.s32.totalorder %s18, 0
      %p46 = por %p44, %p45
      %p47 = scmp.ne.s32.totalorder %s35, %s36
      %p48 = scmp.eq.s32.totalorder %s19, 1
      %p49 = por %p47, %p48
      %p51 = scmp.ne.s32.totalorder %s36, %s50
      %p52 = scmp.eq.s32.totalorder %s19, 0
      %p53 = por %p51, %p52
      %s54 = ssub.s32 %s20, %s32
      %s55 = ssub.s32 %s21, %s28
      %s56 = sor.u32 %s54, %s55
      %p57 = scmp.eq.s32.totalorder %s56, 0
      %s59 = sadd.s32 %s58, 1
      %s60 = scalar_select %p57, %s58, %s59
      %p63 = pneg %p57
      %p64 = scmp.eq.s32.totalorder %s13, 1
      %p65 = por %p63, %p64
      %p66 = scmp.ne.s32.totalorder %s58, %s61
      %p67 = scmp.eq.s32.totalorder %s13, 0
      %p68 = por %p66, %p67
      %p69 = scmp.ne.s32.totalorder %s58, %s61
      %p70 = scmp.eq.s32.totalorder %s18, 1
      %p71 = por %p69, %p70
      %p72 = scmp.ne.s32.totalorder %s61, %s62
      %p73 = scmp.eq.s32.totalorder %s18, 0
      %p74 = por %p72, %p73
      %p75 = scmp.ne.s32.totalorder %s61, %s62
      %p76 = scmp.eq.s32.totalorder %s19, 1
      %p77 = por %p75, %p76
      %p79 = scmp.ne.s32.totalorder %s62, %s78
      %p80 = scmp.eq.s32.totalorder %s19, 0
      %p81 = por %p79, %p80
      %s82 = ssub.s32 %s20, %s32
      %s83 = ssub.s32 %s21, %s28
      %s84 = sor.u32 %s82, %s83
      %p85 = scmp.eq.s32.totalorder %s84, 0
      %s87 = sadd.s32 %s86, 1
      %s88 = scalar_select %p85, %s86, %s87
      %p91 = pneg %p85
      %p92 = scmp.eq.s32.totalorder %s13, 1
      %p93 = por %p91, %p92
      %p94 = scmp.ne.s32.totalorder %s86, %s89
      %p95 = scmp.eq.s32.totalorder %s13, 0
      %p96 = por %p94, %p95
      %p97 = scmp.ne.s32.totalorder %s86, %s89
      %p98 = scmp.eq.s32.totalorder %s18, 1
      %p99 = por %p97, %p98
      %p100 = scmp.ne.s32.totalorder %s89, %s90
      %p101 = scmp.eq.s32.totalorder %s18, 0
      %p102 = por %p100, %p101
      %p103 = scmp.ne.s32.totalorder %s89, %s90
      %p104 = scmp.eq.s32.totalorder %s19, 1
      %p105 = por %p103, %p104
      %p107 = scmp.ne.s32.totalorder %s90, %s106
      %p108 = scmp.eq.s32.totalorder %s19, 0
      %p109 = por %p107, %p108
      %s110 = ssub.s32 %s20, %s32
      %s111 = ssub.s32 %s21, %s28
      %s112 = sor.u32 %s110, %s111
      %p113 = scmp.eq.s32.totalorder %s112, 0
      %s115 = sadd.s32 %s114, 1
      %s116 = scalar_select %p113, %s114, %s115
      %p119 = pneg %p113
      %p120 = scmp.eq.s32.totalorder %s13, 1
      %p121 = por %p119, %p120
      %p122 = scmp.ne.s32.totalorder %s114, %s117
      %p123 = scmp.eq.s32.totalorder %s13, 0
      %p124 = por %p122, %p123
      %p125 = scmp.ne.s32.totalorder %s114, %s117
      %p126 = scmp.eq.s32.totalorder %s18, 1
      %p127 = por %p125, %p126
      %p128 = scmp.ne.s32.totalorder %s117, %s118
      %p129 = scmp.eq.s32.totalorder %s18, 0
      %p130 = por %p128, %p129
      %p131 = scmp.ne.s32.totalorder %s117, %s118
      %p132 = scmp.eq.s32.totalorder %s19, 1
      %p133 = por %p131, %p132
      %p135 = scmp.ne.s32.totalorder %s118, %s134
      %p136 = scmp.eq.s32.totalorder %s19, 0
      %p137 = por %p135, %p136
      %s138 = ssub.s32 %s20, %s32
      %s139 = ssub.s32 %s21, %s28
      %s140 = sor.u32 %s138, %s139
      %p141 = scmp.eq.s32.totalorder %s140, 0
      %s143 = sadd.s32 %s142, 1
      %s144 = scalar_select %p141, %s142, %s143
      %p147 = pneg %p141
      %p148 = scmp.eq.s32.totalorder %s13, 1
      %p149 = por %p147, %p148
      %p150 = scmp.ne.s32.totalorder %s142, %s145
      %p151 = scmp.eq.s32.totalorder %s13, 0
      %p152 = por %p150, %p151
      %p153 = scmp.ne.s32.totalorder %s142, %s145
      %p154 = scmp.eq.s32.totalorder %s18, 1
      %p155 = por %p153, %p154
      %p156 = scmp.ne.s32.totalorder %s145, %s146
      %p157 = scmp.eq.s32.totalorder %s18, 0
      %p158 = por %p156, %p157
      %p159 = scmp.ne.s32.totalorder %s145, %s146
      %p160 = scmp.eq.s32.totalorder %s19, 1
      %p161 = por %p159, %p160
      %p163 = scmp.ne.s32.totalorder %s146, %s162
      %p164 = scmp.eq.s32.totalorder %s19, 0
      %p165 = por %p163, %p164
      %p166 = scmp.le.s32.totalorder 1, %s13
      %p167 = scmp.lt.s32.totalorder %s13, 3
      %p168 = pnand %p166, %p167
      %p169 = pneg %p168
      // Predicated region
      $region9: #{tpu_custom_call.1} parent=5 // pred_check
        _
      $region10: #{tpu_custom_call.1} parent=5 // pred_check_branch
        %171 = sbr.rel (%p168) target = $region12
      $region11: #{tpu_custom_call.1} parent=5 // pred_region
        %s172 = ssub.s32 %s13, 1
        // Predicated region
        $region13: #{tpu_custom_call.1} parent=11 // pred_check
          %p173 = pneg %p46
        $region14: #{tpu_custom_call.1} parent=11 // pred_check_branch
          %175 = sbr.rel (%p173) target = $region16
        $region15: #{tpu_custom_call.1} parent=11 // pred_region
          _
        $region16: #{tpu_custom_call.1} parent=11 // pred_fallthru
          _
      $region12: #{tpu_custom_call.1} parent=5 // pred_fallthru
        _
      %p176 = scmp.lt.s32.totalorder %s13, 2
      // Predicated region
      $region17: #{tpu_custom_call.1} parent=5 // pred_check
        %p177 = pneg %p176
      $region18: #{tpu_custom_call.1} parent=5 // pred_check_branch
        %179 = sbr.rel (%p177) target = $region20
      $region19: #{tpu_custom_call.1} parent=5 // pred_region
        // Predicated region
        $region21: #{tpu_custom_call.1} parent=19 // pred_check
          %p180 = pneg %p68
        $region22: #{tpu_custom_call.1} parent=19 // pred_check_branch
          %182 = sbr.rel (%p180) target = $region24
        $region23: #{tpu_custom_call.1} parent=19 // pred_region
          %s183 = smul.u32 2, %s21
          %p184 = scmp.lt.s32.totalorder %s20, 1
          %s185 = scalar_select %p184, %s20, 1
          %p186 = scmp.lt.s32.totalorder %s183, 1
          %s187 = scalar_select %p186, %s183, 1
          %s188 = smul.addr %s185, 34
          %s189 = sadd.s32 %s187, %s188
          %s190 = smul.addr %s189, 8
          %s191 = scalar_lea.vmem %s1, %s190
          %s192 = smul.u32 2, %s21
        $region24: #{tpu_custom_call.1} parent=19 // pred_fallthru
          _
        // Predicated region
        $region25: #{tpu_custom_call.1} parent=19 // pred_check
          %p193 = pneg %p96
        $region26: #{tpu_custom_call.1} parent=19 // pred_check_branch
          %195 = sbr.rel (%p193) target = $region28
        $region27: #{tpu_custom_call.1} parent=19 // pred_region
          %s196 = smul.u32 2, %s21
          %p197 = scmp.lt.s32.totalorder %s20, 1
          %s198 = scalar_select %p197, %s20, 1
          %p199 = scmp.lt.s32.totalorder %s196, 1
          %s200 = scalar_select %p199, %s196, 1
          %s201 = smul.addr %s198, 34
          %s202 = sadd.s32 %s200, %s201
          %s203 = smul.addr %s202, 8
          %s204 = scalar_lea.vmem %s2, %s203
          %s205 = smul.u32 2, %s21
        $region28: #{tpu_custom_call.1} parent=19 // pred_fallthru
          _
        // Predicated region
        $region29: #{tpu_custom_call.1} parent=19 // pred_check
          %p206 = pneg %p124
        $region30: #{tpu_custom_call.1} parent=19 // pred_check_branch
          %208 = sbr.rel (%p206) target = $region32
        $region31: #{tpu_custom_call.1} parent=19 // pred_region
          %s209 = smul.u32 2, %s21
          %p210 = scmp.lt.s32.totalorder %s20, 1
          %s211 = scalar_select %p210, %s20, 1
          %p212 = scmp.lt.s32.totalorder %s209, 1
          %s213 = scalar_select %p212, %s209, 1
          %s214 = smul.addr %s211, 2
          %s215 = sadd.s32 %s213, %s214
          %s216 = scalar_lea.vmem %s3, %s215
          %s217 = smul.u32 2, %s21
        $region32: #{tpu_custom_call.1} parent=19 // pred_fallthru
          _
      $region20: #{tpu_custom_call.1} parent=5 // pred_fallthru
        _
      %p218 = scmp.le.s32.totalorder 1, %s13
      %p219 = scmp.lt.s32.totalorder %s13, 3
      %p220 = pnand %p218, %p219
      %p221 = pneg %p220
      // Predicated region
      $region33: #{tpu_custom_call.1} parent=5 // pred_check
        _
      $region34: #{tpu_custom_call.1} parent=5 // pred_check_branch
        %223 = sbr.rel (%p220) target = $region36
      $region35: #{tpu_custom_call.1} parent=5 // pred_region
        %s224 = ssub.s32 %s13, 1
        %p225 = pneg %p46
        %p226 = pneg %p43
        %s227 = smul.u32 2, %s23
        %p228 = scmp.lt.s32.totalorder %s22, 1
        %s229 = scalar_select %p228, %s22, 1
        %p230 = scmp.lt.s32.totalorder %s227, 1
        %s231 = scalar_select %p230, %s227, 1
        %s232 = smul.addr %s229, 34
        %s233 = sadd.s32 %s231, %s232
        %s234 = smul.addr %s233, 8
        %s235 = scalar_lea.vmem %s1, %s234
        %p236 = pneg %p74
        %p237 = pneg %p71
        %s238 = smul.u32 2, %s23
        %p239 = scmp.lt.s32.totalorder %s22, 1
        %s240 = scalar_select %p239, %s22, 1
        %p241 = scmp.lt.s32.totalorder %s238, 1
        %s242 = scalar_select %p241, %s238, 1
        %s243 = smul.addr %s240, 34
        %s244 = sadd.s32 %s242, %s243
        %s245 = smul.addr %s244, 8
        %s246 = scalar_lea.vmem %s2, %s245
        %p247 = pneg %p102
        %p248 = pneg %p99
        %s249 = smul.u32 2, %s23
        %p250 = scmp.lt.s32.totalorder %s22, 1
        %s251 = scalar_select %p250, %s22, 1
        %p252 = scmp.lt.s32.totalorder %s249, 1
        %s253 = scalar_select %p252, %s249, 1
        %s254 = smul.addr %s251, 2
        %s255 = sadd.s32 %s253, %s254
        %s256 = scalar_lea.vmem %s3, %s255
        %p257 = pneg %p130
        %p258 = pneg %p127
        %p259 = pneg %p158
        %p260 = pneg %p155
        %s261 = sand.u32 %s145, 1
        %s262 = scalar_lea.sflag [#allocation3], %s261
        %s263 = sand.u32 %s145, 1
        %s264 = smul.addr %s263, 16
        %s265 = scalar_lea.vmem [#allocation2], %s264
        %s266 = smul.u32 2, %s23
        %p267 = scmp.lt.s32.totalorder %s22, 1
        %s268 = scalar_select %p267, %s22, 1
        %p269 = scmp.lt.s32.totalorder %s266, 1
        %s270 = scalar_select %p269, %s266, 1
        %s271 = smul.addr %s268, 34
        %s272 = sadd.s32 %s270, %s271
        %s273 = smul.addr %s272, 8
        %s274 = scalar_lea.vmem %s1, %s273
        %s275 = smul.u32 2, %s23
        %s276 = smul.u32 2, %s23
        %p277 = scmp.lt.s32.totalorder %s22, 1
        %s278 = scalar_select %p277, %s22, 1
        %p279 = scmp.lt.s32.totalorder %s276, 1
        %s280 = scalar_select %p279, %s276, 1
        %s281 = smul.addr %s278, 34
        %s282 = sadd.s32 %s280, %s281
        %s283 = smul.addr %s282, 8
        %s284 = scalar_lea.vmem %s2, %s283
        %s285 = smul.u32 2, %s23
        %s286 = smul.u32 2, %s23
        %p287 = scmp.lt.s32.totalorder %s22, 1
        %s288 = scalar_select %p287, %s22, 1
        %p289 = scmp.lt.s32.totalorder %s286, 1
        %s290 = scalar_select %p289, %s286, 1
        %s291 = smul.addr %s288, 2
        %s292 = sadd.s32 %s290, %s291
        %s293 = scalar_lea.vmem %s3, %s292
        %s294 = smul.u32 2, %s23
        %v295 = vld [vmem:[%s293] sm:$0x3]
        %v296 = vlaneseq
        %v297 = vand.u32 %v296, 127
        %v298 = vadd.s32 %v297, 128
        %s299 = smul.u32 %s23, 256
        %v300 = vstv %s299
        %v301 = vadd.s32 %v300, %v297
        %v302 = vadd.s32 %v300, %v298
        %vm303 = vcmp.lt.s32.totalorder %v301, 256
        %vm304 = vcmp.lt.s32.totalorder %v302, 256
        %v305 = vsel %vm303, 1, 0
        %v306 = vsel %vm304, 1, 0
        %v307 = vcvt.s32.f32 %v305
        %v308 = vcvt.s32.f32 %v306
        %vm309 = vcmp.ne.s32.totalorder %v295, 255
        %v310 = vsel %vm309, 1, 0
        %v311 = vcvt.s32.f32 %v310
        %v313 = vlaneseq
        %v314 = vshrl.u32 %v313, 7
        %v315 = vsub.s32 0, %v314
        %v316 = vrot.slane %v311, %v315
        %v317 = vlaneseq
        %v318 = vshrl.u32 %v317, 7
        %v319 = vsub.s32 1, %v318
        %v320 = vrot.slane %v311, %v319
        %v323 = vmul.f32 %v307, %v316
        %v324 = vmul.f32 %v308, %v320
        %vm325 = vcmp.eq.s32.totalorder %v295, 255
        %v326 = vsel %vm325, 0, %v295
        %vm327 = vcmp.ge.s32.totalorder %v326, 1
        %v328 = vsel %vm327, 1, 0
        %vm329 = vcmp.ge.s32.totalorder %v326, 6
        %v330 = vsel %vm329, 1, 0
        %v331 = vadd.s32 %v328, %v330
        %vm332 = vcmp.ge.s32.totalorder %v326, 10
        %v333 = vsel %vm332, 1, 0
        %v334 = vadd.s32 %v331, %v333
        %vm335 = vcmp.ge.s32.totalorder %v326, 18
        %v336 = vsel %vm335, 1, 0
        %v337 = vadd.s32 %v334, %v336
        %vm338 = vcmp.ge.s32.totalorder %v326, 19
        %v339 = vsel %vm338, 1, 0
        %v340 = vadd.s32 %v337, %v339
        %vm341 = vcmp.ge.s32.totalorder %v326, 21
        %v342 = vsel %vm341, 1, 0
        %v343 = vadd.s32 %v340, %v342
        %vm344 = vcmp.ge.s32.totalorder %v326, 29
        %v345 = vsel %vm344, 1, 0
        %v346 = vadd.s32 %v343, %v345
        %vm347 = vcmp.ge.s32.totalorder %v326, 36
        %v348 = vsel %vm347, 1, 0
        %v349 = vadd.s32 %v346, %v348
        %vm350 = vcmp.ge.s32.totalorder %v326, 45
        %v351 = vsel %vm350, 1, 0
        %v352 = vadd.s32 %v349, %v351
        %vm353 = vcmp.ge.s32.totalorder %v326, 46
        %v354 = vsel %vm353, 1, 0
        %v355 = vadd.s32 %v352, %v354
        %vm356 = vcmp.ge.s32.totalorder %v326, 54
        %v357 = vsel %vm356, 1, 0
        %v358 = vadd.s32 %v355, %v357
        %vm359 = vcmp.ge.s32.totalorder %v326, 55
        %v360 = vsel %vm359, 1, 0
        %v361 = vadd.s32 %v358, %v360
        %vm362 = vcmp.ge.s32.totalorder %v326, 65
        %v363 = vsel %vm362, 1, 0
        %v364 = vadd.s32 %v361, %v363
        %vm365 = vcmp.ge.s32.totalorder %v326, 73
        %v366 = vsel %vm365, 1, 0
        %v367 = vadd.s32 %v364, %v366
        %vm368 = vcmp.ge.s32.totalorder %v326, 77
        %v369 = vsel %vm368, 1, 0
        %v370 = vadd.s32 %v367, %v369
        %vm371 = vcmp.ge.s32.totalorder %v326, 89
        %v372 = vsel %vm371, 1, 0
        %v373 = vadd.s32 %v370, %v372
        %vm374 = vcmp.ge.s32.totalorder %v326, 91
        %v375 = vsel %vm374, 1, 0
        %v376 = vadd.s32 %v373, %v375
        %vm377 = vcmp.ge.s32.totalorder %v326, 99
        %v378 = vsel %vm377, 1, 0
        %v379 = vadd.s32 %v376, %v378
        %vm380 = vcmp.ge.s32.totalorder %v326, 100
        %v381 = vsel %vm380, 1, 0
        %v382 = vadd.s32 %v379, %v381
        %vm383 = vcmp.ge.s32.totalorder %v326, 107
        %v384 = vsel %vm383, 1, 0
        %v385 = vadd.s32 %v382, %v384
        %v386 = vlaneseq
        %v387 = vshrl.u32 %v386, 7
        %v388 = vadd.s32 %v387, 8
        %v389 = vadd.s32 %v387, 16
        %v390 = vadd.s32 %v387, 24
        %v391 = vadd.s32 %v387, 32
        %v392 = vadd.s32 %v387, 40
        %v393 = vadd.s32 %v387, 48
        %v394 = vadd.s32 %v387, 56
        %v395 = vadd.s32 %v387, 64
        %v396 = vadd.s32 %v387, 72
        %v397 = vadd.s32 %v387, 80
        %v398 = vadd.s32 %v387, 88
        %v399 = vadd.s32 %v387, 96
        %v400 = vadd.s32 %v387, 104
        %v401 = vadd.s32 %v387, 112
        %v402 = vadd.s32 %v387, 120
        %v403 = vadd.s32 %v387, 128
        %vm404 = vcmp.lt.s32.totalorder %v387, 108
        %vm405 = vcmp.lt.s32.totalorder %v388, 108
        %vm406 = vcmp.lt.s32.totalorder %v389, 108
        %vm407 = vcmp.lt.s32.totalorder %v390, 108
        %vm408 = vcmp.lt.s32.totalorder %v391, 108
        %vm409 = vcmp.lt.s32.totalorder %v392, 108
        %vm410 = vcmp.lt.s32.totalorder %v393, 108
        %vm411 = vcmp.lt.s32.totalorder %v394, 108
        %vm412 = vcmp.lt.s32.totalorder %v395, 108
        %vm413 = vcmp.lt.s32.totalorder %v396, 108
        %vm414 = vcmp.lt.s32.totalorder %v397, 108
        %vm415 = vcmp.lt.s32.totalorder %v398, 108
        %vm416 = vcmp.lt.s32.totalorder %v399, 108
        %vm417 = vcmp.lt.s32.totalorder %v400, 108
        %vm418 = vcmp.lt.s32.totalorder %v401, 108
        %vm419 = vcmp.lt.s32.totalorder %v402, 108
        %vm420 = vcmp.lt.s32.totalorder %v403, 108
        %v421 = vlaneseq
        %v422 = vshrl.u32 %v421, 7
        %v423 = vsub.s32 0, %v422
        %v424 = vrot.slane %v326, %v423
        %v425 = vlaneseq
        %v426 = vshrl.u32 %v425, 7
        %v427 = vsub.s32 1, %v426
        %v428 = vrot.slane %v326, %v427
        %vm429 = vcmp.eq.s32.totalorder %v387, %v424
        %vm430 = vcmp.eq.s32.totalorder %v387, %v428
        %vm431 = vcmp.eq.s32.totalorder %v388, %v424
        %vm432 = vcmp.eq.s32.totalorder %v388, %v428
        %vm433 = vcmp.eq.s32.totalorder %v389, %v424
        %vm434 = vcmp.eq.s32.totalorder %v389, %v428
        %vm435 = vcmp.eq.s32.totalorder %v390, %v424
        %vm436 = vcmp.eq.s32.totalorder %v390, %v428
        %vm437 = vcmp.eq.s32.totalorder %v391, %v424
        %vm438 = vcmp.eq.s32.totalorder %v391, %v428
        %vm439 = vcmp.eq.s32.totalorder %v392, %v424
        %vm440 = vcmp.eq.s32.totalorder %v392, %v428
        %vm441 = vcmp.eq.s32.totalorder %v393, %v424
        %vm442 = vcmp.eq.s32.totalorder %v393, %v428
        %vm443 = vcmp.eq.s32.totalorder %v394, %v424
        %vm444 = vcmp.eq.s32.totalorder %v394, %v428
        %vm445 = vcmp.eq.s32.totalorder %v395, %v424
        %vm446 = vcmp.eq.s32.totalorder %v395, %v428
        %vm447 = vcmp.eq.s32.totalorder %v396, %v424
        %vm448 = vcmp.eq.s32.totalorder %v396, %v428
        %vm449 = vcmp.eq.s32.totalorder %v397, %v424
        %vm450 = vcmp.eq.s32.totalorder %v397, %v428
        %vm451 = vcmp.eq.s32.totalorder %v398, %v424
        %vm452 = vcmp.eq.s32.totalorder %v398, %v428
        %vm453 = vcmp.eq.s32.totalorder %v399, %v424
        %vm454 = vcmp.eq.s32.totalorder %v399, %v428
        %vm455 = vcmp.eq.s32.totalorder %v400, %v424
        %vm456 = vcmp.eq.s32.totalorder %v400, %v428
        %vm457 = vcmp.eq.s32.totalorder %v401, %v424
        %vm458 = vcmp.eq.s32.totalorder %v401, %v428
        %vm459 = vcmp.eq.s32.totalorder %v402, %v424
        %vm460 = vcmp.eq.s32.totalorder %v402, %v428
        %vm461 = vcmp.eq.s32.totalorder %v403, %v424
        %vm462 = vcmp.eq.s32.totalorder %v403, %v428
        %v463 = vadd.s32 %v385, 108
        %v464 = vlaneseq
        %v465 = vshrl.u32 %v464, 7
        %v466 = vsub.s32 0, %v465
        %v467 = vrot.slane %v463, %v466
        %v468 = vlaneseq
        %v469 = vshrl.u32 %v468, 7
        %v470 = vsub.s32 1, %v469
        %v471 = vrot.slane %v463, %v470
        %vm472 = vcmp.eq.s32.totalorder %v387, %v467
        %vm473 = vcmp.eq.s32.totalorder %v387, %v471
        %vm474 = vcmp.eq.s32.totalorder %v388, %v467
        %vm475 = vcmp.eq.s32.totalorder %v388, %v471
        %vm476 = vcmp.eq.s32.totalorder %v389, %v467
        %vm477 = vcmp.eq.s32.totalorder %v389, %v471
        %vm478 = vcmp.eq.s32.totalorder %v390, %v467
        %vm479 = vcmp.eq.s32.totalorder %v390, %v471
        %vm480 = vcmp.eq.s32.totalorder %v391, %v467
        %vm481 = vcmp.eq.s32.totalorder %v391, %v471
        %vm482 = vcmp.eq.s32.totalorder %v392, %v467
        %vm483 = vcmp.eq.s32.totalorder %v392, %v471
        %vm484 = vcmp.eq.s32.totalorder %v393, %v467
        %vm485 = vcmp.eq.s32.totalorder %v393, %v471
        %vm486 = vcmp.eq.s32.totalorder %v394, %v467
        %vm487 = vcmp.eq.s32.totalorder %v394, %v471
        %vm488 = vcmp.eq.s32.totalorder %v395, %v467
        %vm489 = vcmp.eq.s32.totalorder %v395, %v471
        %vm490 = vcmp.eq.s32.totalorder %v396, %v467
        %vm491 = vcmp.eq.s32.totalorder %v396, %v471
        %vm492 = vcmp.eq.s32.totalorder %v397, %v467
        %vm493 = vcmp.eq.s32.totalorder %v397, %v471
        %vm494 = vcmp.eq.s32.totalorder %v398, %v467
        %vm495 = vcmp.eq.s32.totalorder %v398, %v471
        %vm496 = vcmp.eq.s32.totalorder %v399, %v467
        %vm497 = vcmp.eq.s32.totalorder %v399, %v471
        %vm498 = vcmp.eq.s32.totalorder %v400, %v467
        %vm499 = vcmp.eq.s32.totalorder %v400, %v471
        %vm500 = vcmp.eq.s32.totalorder %v401, %v467
        %vm501 = vcmp.eq.s32.totalorder %v401, %v471
        %vm502 = vcmp.eq.s32.totalorder %v402, %v467
        %vm503 = vcmp.eq.s32.totalorder %v402, %v471
        %vm504 = vcmp.eq.s32.totalorder %v403, %v467
        %vm505 = vcmp.eq.s32.totalorder %v403, %v471
        %v506 = vld [vmem:[%s274] sm:$0xff]
        %v507 = vld [vmem:[%s274 + $0x8] sm:$0xff]
        %v508 = vld [vmem:[%s274 + $0x10] sm:$0xff]
        %v509 = vld [vmem:[%s274 + $0x18] sm:$0xff]
        %v510 = vld [vmem:[%s274 + $0x20] sm:$0xff]
        %v511 = vld [vmem:[%s274 + $0x28] sm:$0xff]
        %v512 = vld [vmem:[%s274 + $0x30] sm:$0xff]
        %v513 = vld [vmem:[%s274 + $0x38] sm:$0xff]
        %v514 = vld [vmem:[%s274 + $0x40] sm:$0xff]
        %v515 = vld [vmem:[%s274 + $0x48] sm:$0xff]
        %v516 = vld [vmem:[%s274 + $0x50] sm:$0xff]
        %v517 = vld [vmem:[%s274 + $0x58] sm:$0xff]
        %v518 = vld [vmem:[%s274 + $0x60] sm:$0xff]
        %v519 = vld [vmem:[%s274 + $0x68] sm:$0xff]
        %v520 = vld [vmem:[%s274 + $0x70] sm:$0xff]
        %v521 = vld [vmem:[%s274 + $0x78] sm:$0xff]
        %v522 = vld [vmem:[%s274 + $0x80] sm:$0xff]
        %v523 = vld [vmem:[%s274 + $0x88] sm:$0xff]
        %v524 = vld [vmem:[%s274 + $0x90] sm:$0xff]
        %v525 = vld [vmem:[%s274 + $0x98] sm:$0xff]
        %v526 = vld [vmem:[%s274 + $0xa0] sm:$0xff]
        %v527 = vld [vmem:[%s274 + $0xa8] sm:$0xff]
        %v528 = vld [vmem:[%s274 + $0xb0] sm:$0xff]
        %v529 = vld [vmem:[%s274 + $0xb8] sm:$0xff]
        %v530 = vld [vmem:[%s274 + $0xc0] sm:$0xff]
        %v531 = vld [vmem:[%s274 + $0xc8] sm:$0xff]
        %v532 = vld [vmem:[%s274 + $0xd0] sm:$0xff]
        %v533 = vld [vmem:[%s274 + $0xd8] sm:$0xff]
        %v534 = vld [vmem:[%s274 + $0xe0] sm:$0xff]
        %v535 = vld [vmem:[%s274 + $0xe8] sm:$0xff]
        %v536 = vld [vmem:[%s274 + $0xf0] sm:$0xff]
        %v537 = vld [vmem:[%s274 + $0xf8] sm:$0xff]
        %v538 = vld [vmem:[%s274 + $0x100] sm:$0x1]
        %v539 = vld [vmem:[%s274 + $0x108] sm:$0x1]
        %v540 = vmul.f32 %v506, 0.5
        %v541 = vmul.f32 %v507, 0.5
        %v542 = vmul.f32 %v508, 0.5
        %v543 = vmul.f32 %v509, 0.5
        %v544 = vmul.f32 %v510, 0.5
        %v545 = vmul.f32 %v511, 0.5
        %v546 = vmul.f32 %v512, 0.5
        %v547 = vmul.f32 %v513, 0.5
        %v548 = vmul.f32 %v514, 0.5
        %v549 = vmul.f32 %v515, 0.5
        %v550 = vmul.f32 %v516, 0.5
        %v551 = vmul.f32 %v517, 0.5
        %v552 = vmul.f32 %v518, 0.5
        %v553 = vmul.f32 %v519, 0.5
        %v554 = vmul.f32 %v520, 0.5
        %v555 = vmul.f32 %v521, 0.5
        %v556 = vmul.f32 %v522, 0.5
        %v557 = vmul.f32 %v523, 0.5
        %v558 = vmul.f32 %v524, 0.5
        %v559 = vmul.f32 %v525, 0.5
        %v560 = vmul.f32 %v526, 0.5
        %v561 = vmul.f32 %v527, 0.5
        %v562 = vmul.f32 %v528, 0.5
        %v563 = vmul.f32 %v529, 0.5
        %v564 = vmul.f32 %v530, 0.5
        %v565 = vmul.f32 %v531, 0.5
        %v566 = vmul.f32 %v532, 0.5
        %v567 = vmul.f32 %v533, 0.5
        %v568 = vmul.f32 %v534, 0.5
        %v569 = vmul.f32 %v535, 0.5
        %v570 = vmul.f32 %v536, 0.5
        %v571 = vmul.f32 %v537, 0.5
        %v572 = vmul.f32 %v538, 0.5
        %v573 = vmul.f32 %v539, 0.5
        %v574 = vtanh.pop %v540
        %v575 = vtanh.pop %v541
        %v576 = vtanh.pop %v542
        %v577 = vtanh.pop %v543
        %v578 = vtanh.pop %v544
        %v579 = vtanh.pop %v545
        %v580 = vtanh.pop %v546
        %v581 = vtanh.pop %v547
        %v582 = vtanh.pop %v548
        %v583 = vtanh.pop %v549
        %v584 = vtanh.pop %v550
        %v585 = vtanh.pop %v551
        %v586 = vtanh.pop %v552
        %v587 = vtanh.pop %v553
        %v588 = vtanh.pop %v554
        %v589 = vtanh.pop %v555
        %v590 = vtanh.pop %v556
        %v591 = vtanh.pop %v557
        %v592 = vtanh.pop %v558
        %v593 = vtanh.pop %v559
        %v594 = vtanh.pop %v560
        %v595 = vtanh.pop %v561
        %v596 = vtanh.pop %v562
        %v597 = vtanh.pop %v563
        %v598 = vtanh.pop %v564
        %v599 = vtanh.pop %v565
        %v600 = vtanh.pop %v566
        %v601 = vtanh.pop %v567
        %v602 = vtanh.pop %v568
        %v603 = vtanh.pop %v569
        %v604 = vtanh.pop %v570
        %v605 = vtanh.pop %v571
        %v606 = vtanh.pop %v572
        %v607 = vtanh.pop %v573
        %v608 = vmul.f32 %v574, 0.5
        %v609 = vmul.f32 %v575, 0.5
        %v610 = vmul.f32 %v576, 0.5
        %v611 = vmul.f32 %v577, 0.5
        %v612 = vmul.f32 %v578, 0.5
        %v613 = vmul.f32 %v579, 0.5
        %v614 = vmul.f32 %v580, 0.5
        %v615 = vmul.f32 %v581, 0.5
        %v616 = vmul.f32 %v582, 0.5
        %v617 = vmul.f32 %v583, 0.5
        %v618 = vmul.f32 %v584, 0.5
        %v619 = vmul.f32 %v585, 0.5
        %v620 = vmul.f32 %v586, 0.5
        %v621 = vmul.f32 %v587, 0.5
        %v622 = vmul.f32 %v588, 0.5
        %v623 = vmul.f32 %v589, 0.5
        %v624 = vmul.f32 %v590, 0.5
        %v625 = vmul.f32 %v591, 0.5
        %v626 = vmul.f32 %v592, 0.5
        %v627 = vmul.f32 %v593, 0.5
        %v628 = vmul.f32 %v594, 0.5
        %v629 = vmul.f32 %v595, 0.5
        %v630 = vmul.f32 %v596, 0.5
        %v631 = vmul.f32 %v597, 0.5
        %v632 = vmul.f32 %v598, 0.5
        %v633 = vmul.f32 %v599, 0.5
        %v634 = vmul.f32 %v600, 0.5
        %v635 = vmul.f32 %v601, 0.5
        %v636 = vmul.f32 %v602, 0.5
        %v637 = vmul.f32 %v603, 0.5
        %v638 = vmul.f32 %v604, 0.5
        %v639 = vmul.f32 %v605, 0.5
        %v640 = vmul.f32 %v606, 0.5
        %v641 = vmul.f32 %v607, 0.5
        %v642 = vadd.f32 %v608, 0.5
        %v643 = vadd.f32 %v609, 0.5
        %v644 = vadd.f32 %v610, 0.5
        %v645 = vadd.f32 %v611, 0.5
        %v646 = vadd.f32 %v612, 0.5
        %v647 = vadd.f32 %v613, 0.5
        %v648 = vadd.f32 %v614, 0.5
        %v649 = vadd.f32 %v615, 0.5
        %v650 = vadd.f32 %v616, 0.5
        %v651 = vadd.f32 %v617, 0.5
        %v652 = vadd.f32 %v618, 0.5
        %v653 = vadd.f32 %v619, 0.5
        %v654 = vadd.f32 %v620, 0.5
        %v655 = vadd.f32 %v621, 0.5
        %v656 = vadd.f32 %v622, 0.5
        %v657 = vadd.f32 %v623, 0.5
        %v658 = vadd.f32 %v624, 0.5
        %v659 = vadd.f32 %v625, 0.5
        %v660 = vadd.f32 %v626, 0.5
        %v661 = vadd.f32 %v627, 0.5
        %v662 = vadd.f32 %v628, 0.5
        %v663 = vadd.f32 %v629, 0.5
        %v664 = vadd.f32 %v630, 0.5
        %v665 = vadd.f32 %v631, 0.5
        %v666 = vadd.f32 %v632, 0.5
        %v667 = vadd.f32 %v633, 0.5
        %v668 = vadd.f32 %v634, 0.5
        %v669 = vadd.f32 %v635, 0.5
        %v670 = vadd.f32 %v636, 0.5
        %v671 = vadd.f32 %v637, 0.5
        %v672 = vadd.f32 %v638, 0.5
        %v673 = vadd.f32 %v639, 0.5
        %v674 = vadd.f32 %v640, 0.5
        %v675 = vadd.f32 %v641, 0.5
        %v676 = vmul.f32 %v642, %v642
        %v677 = vmul.f32 %v643, %v643
        %v678 = vmul.f32 %v644, %v644
        %v679 = vmul.f32 %v645, %v645
        %v680 = vmul.f32 %v646, %v646
        %v681 = vmul.f32 %v647, %v647
        %v682 = vmul.f32 %v648, %v648
        %v683 = vmul.f32 %v649, %v649
        %v684 = vmul.f32 %v650, %v650
        %v685 = vmul.f32 %v651, %v651
        %v686 = vmul.f32 %v652, %v652
        %v687 = vmul.f32 %v653, %v653
        %v688 = vmul.f32 %v654, %v654
        %v689 = vmul.f32 %v655, %v655
        %v690 = vmul.f32 %v656, %v656
        %v691 = vmul.f32 %v657, %v657
        %v692 = vmul.f32 %v658, %v658
        %v693 = vmul.f32 %v659, %v659
        %v694 = vmul.f32 %v660, %v660
        %v695 = vmul.f32 %v661, %v661
        %v696 = vmul.f32 %v662, %v662
        %v697 = vmul.f32 %v663, %v663
        %v698 = vmul.f32 %v664, %v664
        %v699 = vmul.f32 %v665, %v665
        %v700 = vmul.f32 %v666, %v666
        %v701 = vmul.f32 %v667, %v667
        %v702 = vmul.f32 %v668, %v668
        %v703 = vmul.f32 %v669, %v669
        %v704 = vmul.f32 %v670, %v670
        %v705 = vmul.f32 %v671, %v671
        %v706 = vmul.f32 %v672, %v672
        %v707 = vmul.f32 %v673, %v673
        %v708 = vmul.f32 %v674, %v674
        %v709 = vmul.f32 %v675, %v675
        %v710 = vsub.f32 1.0, %v642
        %v711 = vsub.f32 1.0, %v643
        %v712 = vsub.f32 1.0, %v644
        %v713 = vsub.f32 1.0, %v645
        %v714 = vsub.f32 1.0, %v646
        %v715 = vsub.f32 1.0, %v647
        %v716 = vsub.f32 1.0, %v648
        %v717 = vsub.f32 1.0, %v649
        %v718 = vsub.f32 1.0, %v650
        %v719 = vsub.f32 1.0, %v651
        %v720 = vsub.f32 1.0, %v652
        %v721 = vsub.f32 1.0, %v653
        %v722 = vsub.f32 1.0, %v654
        %v723 = vsub.f32 1.0, %v655
        %v724 = vsub.f32 1.0, %v656
        %v725 = vsub.f32 1.0, %v657
        %v726 = vsub.f32 1.0, %v658
        %v727 = vsub.f32 1.0, %v659
        %v728 = vsub.f32 1.0, %v660
        %v729 = vsub.f32 1.0, %v661
        %v730 = vsub.f32 1.0, %v662
        %v731 = vsub.f32 1.0, %v663
        %v732 = vsub.f32 1.0, %v664
        %v733 = vsub.f32 1.0, %v665
        %v734 = vsub.f32 1.0, %v666
        %v735 = vsub.f32 1.0, %v667
        %v736 = vsub.f32 1.0, %v668
        %v737 = vsub.f32 1.0, %v669
        %v738 = vsub.f32 1.0, %v670
        %v739 = vsub.f32 1.0, %v671
        %v740 = vsub.f32 1.0, %v672
        %v741 = vsub.f32 1.0, %v673
        %v742 = vsub.f32 1.0, %v674
        %v743 = vsub.f32 1.0, %v675
        %v744 = vadd.f32 %v710, 1e-08
        %v745 = vadd.f32 %v711, 1e-08
        %v746 = vadd.f32 %v712, 1e-08
        %v747 = vadd.f32 %v713, 1e-08
        %v748 = vadd.f32 %v714, 1e-08
        %v749 = vadd.f32 %v715, 1e-08
        %v750 = vadd.f32 %v716, 1e-08
        %v751 = vadd.f32 %v717, 1e-08
        %v752 = vadd.f32 %v718, 1e-08
        %v753 = vadd.f32 %v719, 1e-08
        %v754 = vadd.f32 %v720, 1e-08
        %v755 = vadd.f32 %v721, 1e-08
        %v756 = vadd.f32 %v722, 1e-08
        %v757 = vadd.f32 %v723, 1e-08
        %v758 = vadd.f32 %v724, 1e-08
        %v759 = vadd.f32 %v725, 1e-08
        %v760 = vadd.f32 %v726, 1e-08
        %v761 = vadd.f32 %v727, 1e-08
        %v762 = vadd.f32 %v728, 1e-08
        %v763 = vadd.f32 %v729, 1e-08
        %v764 = vadd.f32 %v730, 1e-08
        %v765 = vadd.f32 %v731, 1e-08
        %v766 = vadd.f32 %v732, 1e-08
        %v767 = vadd.f32 %v733, 1e-08
        %v768 = vadd.f32 %v734, 1e-08
        %v769 = vadd.f32 %v735, 1e-08
        %v770 = vadd.f32 %v736, 1e-08
        %v771 = vadd.f32 %v737, 1e-08
        %v772 = vadd.f32 %v738, 1e-08
        %v773 = vadd.f32 %v739, 1e-08
        %v774 = vadd.f32 %v740, 1e-08
        %v775 = vadd.f32 %v741, 1e-08
        %v776 = vadd.f32 %v742, 1e-08
        %v777 = vadd.f32 %v743, 1e-08
        %v778 = vlog2.pop %v744
        %v779 = vmul.f32 %v778, 0.6931472
        %v780 = vlog2.pop %v745
        %v781 = vmul.f32 %v780, 0.6931472
        %v782 = vlog2.pop %v746
        %v783 = vmul.f32 %v782, 0.6931472
        %v784 = vlog2.pop %v747
        %v785 = vmul.f32 %v784, 0.6931472
        %v786 = vlog2.pop %v748
        %v787 = vmul.f32 %v786, 0.6931472
        %v788 = vlog2.pop %v749
        %v789 = vmul.f32 %v788, 0.6931472
        %v790 = vlog2.pop %v750
        %v791 = vmul.f32 %v790, 0.6931472
        %v792 = vlog2.pop %v751
        %v793 = vmul.f32 %v792, 0.6931472
        %v794 = vlog2.pop %v752
        %v795 = vmul.f32 %v794, 0.6931472
        %v796 = vlog2.pop %v753
        %v797 = vmul.f32 %v796, 0.6931472
        %v798 = vlog2.pop %v754
        %v799 = vmul.f32 %v798, 0.6931472
        %v800 = vlog2.pop %v755
        %v801 = vmul.f32 %v800, 0.6931472
        %v802 = vlog2.pop %v756
        %v803 = vmul.f32 %v802, 0.6931472
        %v804 = vlog2.pop %v757
        %v805 = vmul.f32 %v804, 0.6931472
        %v806 = vlog2.pop %v758
        %v807 = vmul.f32 %v806, 0.6931472
        %v808 = vlog2.pop %v759
        %v809 = vmul.f32 %v808, 0.6931472
        %v810 = vlog2.pop %v760
        %v811 = vmul.f32 %v810, 0.6931472
        %v812 = vlog2.pop %v761
        %v813 = vmul.f32 %v812, 0.6931472
        %v814 = vlog2.pop %v762
        %v815 = vmul.f32 %v814, 0.6931472
        %v816 = vlog2.pop %v763
        %v817 = vmul.f32 %v816, 0.6931472
        %v818 = vlog2.pop %v764
        %v819 = vmul.f32 %v818, 0.6931472
        %v820 = vlog2.pop %v765
        %v821 = vmul.f32 %v820, 0.6931472
        %v822 = vlog2.pop %v766
        %v823 = vmul.f32 %v822, 0.6931472
        %v824 = vlog2.pop %v767
        %v825 = vmul.f32 %v824, 0.6931472
        %v826 = vlog2.pop %v768
        %v827 = vmul.f32 %v826, 0.6931472
        %v828 = vlog2.pop %v769
        %v829 = vmul.f32 %v828, 0.6931472
        %v830 = vlog2.pop %v770
        %v831 = vmul.f32 %v830, 0.6931472
        %v832 = vlog2.pop %v771
        %v833 = vmul.f32 %v832, 0.6931472
        %v834 = vlog2.pop %v772
        %v835 = vmul.f32 %v834, 0.6931472
        %v836 = vlog2.pop %v773
        %v837 = vmul.f32 %v836, 0.6931472
        %v838 = vlog2.pop %v774
        %v839 = vmul.f32 %v838, 0.6931472
        %v840 = vlog2.pop %v775
        %v841 = vmul.f32 %v840, 0.6931472
        %v842 = vlog2.pop %v776
        %v843 = vmul.f32 %v842, 0.6931472
        %v844 = vlog2.pop %v777
        %v845 = vmul.f32 %v844, 0.6931472
        %v846 = vmul.f32 %v676, %v779
        %v847 = vmul.f32 %v677, %v781
        %v848 = vmul.f32 %v678, %v783
        %v849 = vmul.f32 %v679, %v785
        %v850 = vmul.f32 %v680, %v787
        %v851 = vmul.f32 %v681, %v789
        %v852 = vmul.f32 %v682, %v791
        %v853 = vmul.f32 %v683, %v793
        %v854 = vmul.f32 %v684, %v795
        %v855 = vmul.f32 %v685, %v797
        %v856 = vmul.f32 %v686, %v799
        %v857 = vmul.f32 %v687, %v801
        %v858 = vmul.f32 %v688, %v803
        %v859 = vmul.f32 %v689, %v805
        %v860 = vmul.f32 %v690, %v807
        %v861 = vmul.f32 %v691, %v809
        %v862 = vmul.f32 %v692, %v811
        %v863 = vmul.f32 %v693, %v813
        %v864 = vmul.f32 %v694, %v815
        %v865 = vmul.f32 %v695, %v817
        %v866 = vmul.f32 %v696, %v819
        %v867 = vmul.f32 %v697, %v821
        %v868 = vmul.f32 %v698, %v823
        %v869 = vmul.f32 %v699, %v825
        %v870 = vmul.f32 %v700, %v827
        %v871 = vmul.f32 %v701, %v829
        %v872 = vmul.f32 %v702, %v831
        %v873 = vmul.f32 %v703, %v833
        %v874 = vmul.f32 %v704, %v835
        %v875 = vmul.f32 %v705, %v837
        %v876 = vmul.f32 %v706, %v839
        %v877 = vmul.f32 %v707, %v841
        %v878 = vmul.f32 %v708, %v843
        %v879 = vmul.f32 %v709, %v845
        %v880 = vadd.f32 %v846, %v848
        %v881 = vadd.f32 %v880, %v850
        %v882 = vadd.f32 %v881, %v852
        %v883 = vadd.f32 %v882, %v854
        %v884 = vadd.f32 %v883, %v856
        %v885 = vadd.f32 %v884, %v858
        %v886 = vadd.f32 %v885, %v860
        %v887 = vadd.f32 %v886, %v862
        %v888 = vadd.f32 %v887, %v864
        %v889 = vadd.f32 %v888, %v866
        %v890 = vadd.f32 %v889, %v868
        %v891 = vadd.f32 %v890, %v870
        %v892 = vadd.f32 %v891, %v872
        %v893 = vadd.f32 %v892, %v874
        %v894 = vadd.f32 %v893, %v876
        %vm895 = vcmask 1040384
        %v896 = vsel %vm895, %v878, 0.0
        %v897 = vadd.f32 %v894, %v896
        %v898 = vrot.slane %v897, 4
        %v899 = vadd.f32 %v897, %v898
        %v900 = vrot.slane %v899, 2
        %v901 = vadd.f32 %v899, %v900
        %v902 = vrot.slane %v901, 1
        %v903 = vadd.f32 %v901, %v902
        %v904 = vadd.f32 %v847, %v849
        %v905 = vadd.f32 %v904, %v851
        %v906 = vadd.f32 %v905, %v853
        %v907 = vadd.f32 %v906, %v855
        %v908 = vadd.f32 %v907, %v857
        %v909 = vadd.f32 %v908, %v859
        %v910 = vadd.f32 %v909, %v861
        %v911 = vadd.f32 %v910, %v863
        %v912 = vadd.f32 %v911, %v865
        %v913 = vadd.f32 %v912, %v867
        %v914 = vadd.f32 %v913, %v869
        %v915 = vadd.f32 %v914, %v871
        %v916 = vadd.f32 %v915, %v873
        %v917 = vadd.f32 %v916, %v875
        %v918 = vadd.f32 %v917, %v877
        %v919 = vsel %vm895, %v879, 0.0
        %v920 = vadd.f32 %v918, %v919
        %v921 = vrot.slane %v920, 4
        %v922 = vadd.f32 %v920, %v921
        %v923 = vrot.slane %v922, 2
        %v924 = vadd.f32 %v922, %v923
        %v925 = vrot.slane %v924, 1
        %v926 = vadd.f32 %v924, %v925
        %v927 = vsel %vm429, %v642, 0.0
        %v928 = vsel %vm430, %v643, 0.0
        %v929 = vsel %vm431, %v644, 0.0
        %v930 = vsel %vm432, %v645, 0.0
        %v931 = vsel %vm433, %v646, 0.0
        %v932 = vsel %vm434, %v647, 0.0
        %v933 = vsel %vm435, %v648, 0.0
        %v934 = vsel %vm436, %v649, 0.0
        %v935 = vsel %vm437, %v650, 0.0
        %v936 = vsel %vm438, %v651, 0.0
        %v937 = vsel %vm439, %v652, 0.0
        %v938 = vsel %vm440, %v653, 0.0
        %v939 = vsel %vm441, %v654, 0.0
        %v940 = vsel %vm442, %v655, 0.0
        %v941 = vsel %vm443, %v656, 0.0
        %v942 = vsel %vm444, %v657, 0.0
        %v943 = vsel %vm445, %v658, 0.0
        %v944 = vsel %vm446, %v659, 0.0
        %v945 = vsel %vm447, %v660, 0.0
        %v946 = vsel %vm448, %v661, 0.0
        %v947 = vsel %vm449, %v662, 0.0
        %v948 = vsel %vm450, %v663, 0.0
        %v949 = vsel %vm451, %v664, 0.0
        %v950 = vsel %vm452, %v665, 0.0
        %v951 = vsel %vm453, %v666, 0.0
        %v952 = vsel %vm454, %v667, 0.0
        %v953 = vsel %vm455, %v668, 0.0
        %v954 = vsel %vm456, %v669, 0.0
        %v955 = vsel %vm457, %v670, 0.0
        %v956 = vsel %vm458, %v671, 0.0
        %v957 = vsel %vm459, %v672, 0.0
        %v958 = vsel %vm460, %v673, 0.0
        %v959 = vsel %vm461, %v674, 0.0
        %v960 = vsel %vm462, %v675, 0.0
        %v961 = vadd.f32 %v927, %v929
        %v962 = vadd.f32 %v961, %v931
        %v963 = vadd.f32 %v962, %v933
        %v964 = vadd.f32 %v963, %v935
        %v965 = vadd.f32 %v964, %v937
        %v966 = vadd.f32 %v965, %v939
        %v967 = vadd.f32 %v966, %v941
        %v968 = vadd.f32 %v967, %v943
        %v969 = vadd.f32 %v968, %v945
        %v970 = vadd.f32 %v969, %v947
        %v971 = vadd.f32 %v970, %v949
        %v972 = vadd.f32 %v971, %v951
        %v973 = vadd.f32 %v972, %v953
        %v974 = vadd.f32 %v973, %v955
        %v975 = vadd.f32 %v974, %v957
        %v976 = vsel %vm895, %v959, 0.0
        %v977 = vadd.f32 %v975, %v976
        %v978 = vrot.slane %v977, 4
        %v979 = vadd.f32 %v977, %v978
        %v980 = vrot.slane %v979, 2
        %v981 = vadd.f32 %v979, %v980
        %v982 = vrot.slane %v981, 1
        %v983 = vadd.f32 %v981, %v982
        %v984 = vadd.f32 %v928, %v930
        %v985 = vadd.f32 %v984, %v932
        %v986 = vadd.f32 %v985, %v934
        %v987 = vadd.f32 %v986, %v936
        %v988 = vadd.f32 %v987, %v938
        %v989 = vadd.f32 %v988, %v940
        %v990 = vadd.f32 %v989, %v942
        %v991 = vadd.f32 %v990, %v944
        %v992 = vadd.f32 %v991, %v946
        %v993 = vadd.f32 %v992, %v948
        %v994 = vadd.f32 %v993, %v950
        %v995 = vadd.f32 %v994, %v952
        %v996 = vadd.f32 %v995, %v954
        %v997 = vadd.f32 %v996, %v956
        %v998 = vadd.f32 %v997, %v958
        %v999 = vsel %vm895, %v960, 0.0
        %v1000 = vadd.f32 %v998, %v999
        %v1001 = vrot.slane %v1000, 4
        %v1002 = vadd.f32 %v1000, %v1001
        %v1003 = vrot.slane %v1002, 2
        %v1004 = vadd.f32 %v1002, %v1003
        %v1005 = vrot.slane %v1004, 1
        %v1006 = vadd.f32 %v1004, %v1005
        %v1007 = vsel %vm472, %v642, 0.0
        %v1008 = vsel %vm473, %v643, 0.0
        %v1009 = vsel %vm474, %v644, 0.0
        %v1010 = vsel %vm475, %v645, 0.0
        %v1011 = vsel %vm476, %v646, 0.0
        %v1012 = vsel %vm477, %v647, 0.0
        %v1013 = vsel %vm478, %v648, 0.0
        %v1014 = vsel %vm479, %v649, 0.0
        %v1015 = vsel %vm480, %v650, 0.0
        %v1016 = vsel %vm481, %v651, 0.0
        %v1017 = vsel %vm482, %v652, 0.0
        %v1018 = vsel %vm483, %v653, 0.0
        %v1019 = vsel %vm484, %v654, 0.0
        %v1020 = vsel %vm485, %v655, 0.0
        %v1021 = vsel %vm486, %v656, 0.0
        %v1022 = vsel %vm487, %v657, 0.0
        %v1023 = vsel %vm488, %v658, 0.0
        %v1024 = vsel %vm489, %v659, 0.0
        %v1025 = vsel %vm490, %v660, 0.0
        %v1026 = vsel %vm491, %v661, 0.0
        %v1027 = vsel %vm492, %v662, 0.0
        %v1028 = vsel %vm493, %v663, 0.0
        %v1029 = vsel %vm494, %v664, 0.0
        %v1030 = vsel %vm495, %v665, 0.0
        %v1031 = vsel %vm496, %v666, 0.0
        %v1032 = vsel %vm497, %v667, 0.0
        %v1033 = vsel %vm498, %v668, 0.0
        %v1034 = vsel %vm499, %v669, 0.0
        %v1035 = vsel %vm500, %v670, 0.0
        %v1036 = vsel %vm501, %v671, 0.0
        %v1037 = vsel %vm502, %v672, 0.0
        %v1038 = vsel %vm503, %v673, 0.0
        %v1039 = vsel %vm504, %v674, 0.0
        %v1040 = vsel %vm505, %v675, 0.0
        %v1041 = vadd.f32 %v1007, %v1009
        %v1042 = vadd.f32 %v1041, %v1011
        %v1043 = vadd.f32 %v1042, %v1013
        %v1044 = vadd.f32 %v1043, %v1015
        %v1045 = vadd.f32 %v1044, %v1017
        %v1046 = vadd.f32 %v1045, %v1019
        %v1047 = vadd.f32 %v1046, %v1021
        %v1048 = vadd.f32 %v1047, %v1023
        %v1049 = vadd.f32 %v1048, %v1025
        %v1050 = vadd.f32 %v1049, %v1027
        %v1051 = vadd.f32 %v1050, %v1029
        %v1052 = vadd.f32 %v1051, %v1031
        %v1053 = vadd.f32 %v1052, %v1033
        %v1054 = vadd.f32 %v1053, %v1035
        %v1055 = vadd.f32 %v1054, %v1037
        %v1056 = vsel %vm895, %v1039, 0.0
        %v1057 = vadd.f32 %v1055, %v1056
        %v1058 = vrot.slane %v1057, 4
        %v1059 = vadd.f32 %v1057, %v1058
        %v1060 = vrot.slane %v1059, 2
        %v1061 = vadd.f32 %v1059, %v1060
        %v1062 = vrot.slane %v1061, 1
        %v1063 = vadd.f32 %v1061, %v1062
        %v1064 = vadd.f32 %v1008, %v1010
        %v1065 = vadd.f32 %v1064, %v1012
        %v1066 = vadd.f32 %v1065, %v1014
        %v1067 = vadd.f32 %v1066, %v1016
        %v1068 = vadd.f32 %v1067, %v1018
        %v1069 = vadd.f32 %v1068, %v1020
        %v1070 = vadd.f32 %v1069, %v1022
        %v1071 = vadd.f32 %v1070, %v1024
        %v1072 = vadd.f32 %v1071, %v1026
        %v1073 = vadd.f32 %v1072, %v1028
        %v1074 = vadd.f32 %v1073, %v1030
        %v1075 = vadd.f32 %v1074, %v1032
        %v1076 = vadd.f32 %v1075, %v1034
        %v1077 = vadd.f32 %v1076, %v1036
        %v1078 = vadd.f32 %v1077, %v1038
        %v1079 = vsel %vm895, %v1040, 0.0
        %v1080 = vadd.f32 %v1078, %v1079
        %v1081 = vrot.slane %v1080, 4
        %v1082 = vadd.f32 %v1080, %v1081
        %v1083 = vrot.slane %v1082, 2
        %v1084 = vadd.f32 %v1082, %v1083
        %v1085 = vrot.slane %v1084, 1
        %v1086 = vadd.f32 %v1084, %v1085
        %v1087 = vsub.f32 1.0, %v983
        %v1088 = vsub.f32 1.0, %v1006
        %v1089 = vmul.f32 %v1087, %v1087
        %v1090 = vmul.f32 %v1088, %v1088
        %v1091 = vadd.f32 %v983, 1e-08
        %v1092 = vadd.f32 %v1006, 1e-08
        %v1093 = vlog2.pop %v1091
        %v1094 = vmul.f32 %v1093, 0.6931472
        %v1095 = vlog2.pop %v1092
        %v1096 = vmul.f32 %v1095, 0.6931472
        %v1097 = vmul.f32 %v1089, %v1094
        %v1098 = vmul.f32 %v1090, %v1096
        %v1099 = vsub.f32 1.0, %v1063
        %v1100 = vsub.f32 1.0, %v1086
        %v1101 = vmul.f32 %v1099, %v1099
        %v1102 = vmul.f32 %v1100, %v1100
        %v1103 = vadd.f32 %v1063, 1e-08
        %v1104 = vadd.f32 %v1086, 1e-08
        %v1105 = vlog2.pop %v1103
        %v1106 = vmul.f32 %v1105, 0.6931472
        %v1107 = vlog2.pop %v1104
        %v1108 = vmul.f32 %v1107, 0.6931472
        %v1109 = vmul.f32 %v1101, %v1106
        %v1110 = vmul.f32 %v1102, %v1108
        %v1111 = vadd.f32 %v1097, %v1109
        %v1112 = vadd.f32 %v1098, %v1110
        %v1113 = vmul.f32 %v1111, 0.5
        %v1114 = vmul.f32 %v1112, 0.5
        %v1115 = vmul.f32 %v983, %v983
        %v1116 = vmul.f32 %v1006, %v1006
        %v1117 = vadd.f32 %v1087, 1e-08
        %v1118 = vadd.f32 %v1088, 1e-08
        %v1119 = vlog2.pop %v1117
        %v1120 = vmul.f32 %v1119, 0.6931472
        %v1121 = vlog2.pop %v1118
        %v1122 = vmul.f32 %v1121, 0.6931472
        %v1123 = vmul.f32 %v1115, %v1120
        %v1124 = vmul.f32 %v1116, %v1122
        %v1125 = vsub.f32 %v903, %v1123
        %v1126 = vsub.f32 %v926, %v1124
        %v1127 = vmul.f32 %v1063, %v1063
        %v1128 = vmul.f32 %v1086, %v1086
        %v1129 = vadd.f32 %v1099, 1e-08
        %v1130 = vadd.f32 %v1100, 1e-08
        %v1131 = vlog2.pop %v1129
        %v1132 = vmul.f32 %v1131, 0.6931472
        %v1133 = vlog2.pop %v1130
        %v1134 = vmul.f32 %v1133, 0.6931472
        %v1135 = vmul.f32 %v1127, %v1132
        %v1136 = vmul.f32 %v1128, %v1134
        %v1137 = vsub.f32 %v1125, %v1135
        %v1138 = vsub.f32 %v1126, %v1136
        %v1139 = vmul.f32 %v1137, 0.5
        %v1140 = vmul.f32 %v1138, 0.5
        %v1141 = vadd.f32 %v1113, %v1139
        %v1142 = vadd.f32 %v1114, %v1140
        %v1143 = vsub.f32 0.0, %v1141
        %v1144 = vsub.f32 0.0, %v1142
        %v1145 = vmul.f32 %v1143, %v323
        %v1146 = vmul.f32 %v1144, %v324
        %v1147 = vld [vmem:[%s284] sm:$0xff]
        %v1148 = vld [vmem:[%s284 + $0x8] sm:$0xff]
        %v1149 = vld [vmem:[%s284 + $0x10] sm:$0xff]
        %v1150 = vld [vmem:[%s284 + $0x18] sm:$0xff]
        %v1151 = vld [vmem:[%s284 + $0x20] sm:$0xff]
        %v1152 = vld [vmem:[%s284 + $0x28] sm:$0xff]
        %v1153 = vld [vmem:[%s284 + $0x30] sm:$0xff]
        %v1154 = vld [vmem:[%s284 + $0x38] sm:$0xff]
        %v1155 = vld [vmem:[%s284 + $0x40] sm:$0xff]
        %v1156 = vld [vmem:[%s284 + $0x48] sm:$0xff]
        %v1157 = vld [vmem:[%s284 + $0x50] sm:$0xff]
        %v1158 = vld [vmem:[%s284 + $0x58] sm:$0xff]
        %v1159 = vld [vmem:[%s284 + $0x60] sm:$0xff]
        %v1160 = vld [vmem:[%s284 + $0x68] sm:$0xff]
        %v1161 = vld [vmem:[%s284 + $0x70] sm:$0xff]
        %v1162 = vld [vmem:[%s284 + $0x78] sm:$0xff]
        %v1163 = vld [vmem:[%s284 + $0x80] sm:$0xff]
        %v1164 = vld [vmem:[%s284 + $0x88] sm:$0xff]
        %v1165 = vld [vmem:[%s284 + $0x90] sm:$0xff]
        %v1166 = vld [vmem:[%s284 + $0x98] sm:$0xff]
        %v1167 = vld [vmem:[%s284 + $0xa0] sm:$0xff]
        %v1168 = vld [vmem:[%s284 + $0xa8] sm:$0xff]
        %v1169 = vld [vmem:[%s284 + $0xb0] sm:$0xff]
        %v1170 = vld [vmem:[%s284 + $0xb8] sm:$0xff]
        %v1171 = vld [vmem:[%s284 + $0xc0] sm:$0xff]
        %v1172 = vld [vmem:[%s284 + $0xc8] sm:$0xff]
        %v1173 = vld [vmem:[%s284 + $0xd0] sm:$0xff]
        %v1174 = vld [vmem:[%s284 + $0xd8] sm:$0xff]
        %v1175 = vld [vmem:[%s284 + $0xe0] sm:$0xff]
        %v1176 = vld [vmem:[%s284 + $0xe8] sm:$0xff]
        %v1177 = vld [vmem:[%s284 + $0xf0] sm:$0xff]
        %v1178 = vld [vmem:[%s284 + $0xf8] sm:$0xff]
        %v1179 = vld [vmem:[%s284 + $0x100] sm:$0x1]
        %v1180 = vld [vmem:[%s284 + $0x108] sm:$0x1]
        %v1181 = vmul.f32 %v1147, 0.5
        %v1182 = vmul.f32 %v1148, 0.5
        %v1183 = vmul.f32 %v1149, 0.5
        %v1184 = vmul.f32 %v1150, 0.5
        %v1185 = vmul.f32 %v1151, 0.5
        %v1186 = vmul.f32 %v1152, 0.5
        %v1187 = vmul.f32 %v1153, 0.5
        %v1188 = vmul.f32 %v1154, 0.5
        %v1189 = vmul.f32 %v1155, 0.5
        %v1190 = vmul.f32 %v1156, 0.5
        %v1191 = vmul.f32 %v1157, 0.5
        %v1192 = vmul.f32 %v1158, 0.5
        %v1193 = vmul.f32 %v1159, 0.5
        %v1194 = vmul.f32 %v1160, 0.5
        %v1195 = vmul.f32 %v1161, 0.5
        %v1196 = vmul.f32 %v1162, 0.5
        %v1197 = vmul.f32 %v1163, 0.5
        %v1198 = vmul.f32 %v1164, 0.5
        %v1199 = vmul.f32 %v1165, 0.5
        %v1200 = vmul.f32 %v1166, 0.5
        %v1201 = vmul.f32 %v1167, 0.5
        %v1202 = vmul.f32 %v1168, 0.5
        %v1203 = vmul.f32 %v1169, 0.5
        %v1204 = vmul.f32 %v1170, 0.5
        %v1205 = vmul.f32 %v1171, 0.5
        %v1206 = vmul.f32 %v1172, 0.5
        %v1207 = vmul.f32 %v1173, 0.5
        %v1208 = vmul.f32 %v1174, 0.5
        %v1209 = vmul.f32 %v1175, 0.5
        %v1210 = vmul.f32 %v1176, 0.5
        %v1211 = vmul.f32 %v1177, 0.5
        %v1212 = vmul.f32 %v1178, 0.5
        %v1213 = vmul.f32 %v1179, 0.5
        %v1214 = vmul.f32 %v1180, 0.5
        %v1215 = vtanh.pop %v1181
        %v1216 = vtanh.pop %v1182
        %v1217 = vtanh.pop %v1183
        %v1218 = vtanh.pop %v1184
        %v1219 = vtanh.pop %v1185
        %v1220 = vtanh.pop %v1186
        %v1221 = vtanh.pop %v1187
        %v1222 = vtanh.pop %v1188
        %v1223 = vtanh.pop %v1189
        %v1224 = vtanh.pop %v1190
        %v1225 = vtanh.pop %v1191
        %v1226 = vtanh.pop %v1192
        %v1227 = vtanh.pop %v1193
        %v1228 = vtanh.pop %v1194
        %v1229 = vtanh.pop %v1195
        %v1230 = vtanh.pop %v1196
        %v1231 = vtanh.pop %v1197
        %v1232 = vtanh.pop %v1198
        %v1233 = vtanh.pop %v1199
        %v1234 = vtanh.pop %v1200
        %v1235 = vtanh.pop %v1201
        %v1236 = vtanh.pop %v1202
        %v1237 = vtanh.pop %v1203
        %v1238 = vtanh.pop %v1204
        %v1239 = vtanh.pop %v1205
        %v1240 = vtanh.pop %v1206
        %v1241 = vtanh.pop %v1207
        %v1242 = vtanh.pop %v1208
        %v1243 = vtanh.pop %v1209
        %v1244 = vtanh.pop %v1210
        %v1245 = vtanh.pop %v1211
        %v1246 = vtanh.pop %v1212
        %v1247 = vtanh.pop %v1213
        %v1248 = vtanh.pop %v1214
        %v1249 = vmul.f32 %v1215, 0.5
        %v1250 = vmul.f32 %v1216, 0.5
        %v1251 = vmul.f32 %v1217, 0.5
        %v1252 = vmul.f32 %v1218, 0.5
        %v1253 = vmul.f32 %v1219, 0.5
        %v1254 = vmul.f32 %v1220, 0.5
        %v1255 = vmul.f32 %v1221, 0.5
        %v1256 = vmul.f32 %v1222, 0.5
        %v1257 = vmul.f32 %v1223, 0.5
        %v1258 = vmul.f32 %v1224, 0.5
        %v1259 = vmul.f32 %v1225, 0.5
        %v1260 = vmul.f32 %v1226, 0.5
        %v1261 = vmul.f32 %v1227, 0.5
        %v1262 = vmul.f32 %v1228, 0.5
        %v1263 = vmul.f32 %v1229, 0.5
        %v1264 = vmul.f32 %v1230, 0.5
        %v1265 = vmul.f32 %v1231, 0.5
        %v1266 = vmul.f32 %v1232, 0.5
        %v1267 = vmul.f32 %v1233, 0.5
        %v1268 = vmul.f32 %v1234, 0.5
        %v1269 = vmul.f32 %v1235, 0.5
        %v1270 = vmul.f32 %v1236, 0.5
        %v1271 = vmul.f32 %v1237, 0.5
        %v1272 = vmul.f32 %v1238, 0.5
        %v1273 = vmul.f32 %v1239, 0.5
        %v1274 = vmul.f32 %v1240, 0.5
        %v1275 = vmul.f32 %v1241, 0.5
        %v1276 = vmul.f32 %v1242, 0.5
        %v1277 = vmul.f32 %v1243, 0.5
        %v1278 = vmul.f32 %v1244, 0.5
        %v1279 = vmul.f32 %v1245, 0.5
        %v1280 = vmul.f32 %v1246, 0.5
        %v1281 = vmul.f32 %v1247, 0.5
        %v1282 = vmul.f32 %v1248, 0.5
        %v1283 = vadd.f32 %v1249, 0.5
        %v1284 = vadd.f32 %v1250, 0.5
        %v1285 = vadd.f32 %v1251, 0.5
        %v1286 = vadd.f32 %v1252, 0.5
        %v1287 = vadd.f32 %v1253, 0.5
        %v1288 = vadd.f32 %v1254, 0.5
        %v1289 = vadd.f32 %v1255, 0.5
        %v1290 = vadd.f32 %v1256, 0.5
        %v1291 = vadd.f32 %v1257, 0.5
        %v1292 = vadd.f32 %v1258, 0.5
        %v1293 = vadd.f32 %v1259, 0.5
        %v1294 = vadd.f32 %v1260, 0.5
        %v1295 = vadd.f32 %v1261, 0.5
        %v1296 = vadd.f32 %v1262, 0.5
        %v1297 = vadd.f32 %v1263, 0.5
        %v1298 = vadd.f32 %v1264, 0.5
        %v1299 = vadd.f32 %v1265, 0.5
        %v1300 = vadd.f32 %v1266, 0.5
        %v1301 = vadd.f32 %v1267, 0.5
        %v1302 = vadd.f32 %v1268, 0.5
        %v1303 = vadd.f32 %v1269, 0.5
        %v1304 = vadd.f32 %v1270, 0.5
        %v1305 = vadd.f32 %v1271, 0.5
        %v1306 = vadd.f32 %v1272, 0.5
        %v1307 = vadd.f32 %v1273, 0.5
        %v1308 = vadd.f32 %v1274, 0.5
        %v1309 = vadd.f32 %v1275, 0.5
        %v1310 = vadd.f32 %v1276, 0.5
        %v1311 = vadd.f32 %v1277, 0.5
        %v1312 = vadd.f32 %v1278, 0.5
        %v1313 = vadd.f32 %v1279, 0.5
        %v1314 = vadd.f32 %v1280, 0.5
        %v1315 = vadd.f32 %v1281, 0.5
        %v1316 = vadd.f32 %v1282, 0.5
        %v1317 = vld [vmem:[%s0] sm:$0xff]
        %v1318 = vld [vmem:[%s0 + $0x8] sm:$0xff]
        %v1319 = vld [vmem:[%s0 + $0x10] sm:$0xff]
        %v1320 = vld [vmem:[%s0 + $0x18] sm:$0xff]
        %v1321 = vld [vmem:[%s0 + $0x20] sm:$0xff]
        %v1322 = vld [vmem:[%s0 + $0x28] sm:$0xff]
        %v1323 = vld [vmem:[%s0 + $0x30] sm:$0xff]
        %v1324 = vld [vmem:[%s0 + $0x38] sm:$0xff]
        %v1325 = vld [vmem:[%s0 + $0x40] sm:$0xff]
        %v1326 = vld [vmem:[%s0 + $0x48] sm:$0xff]
        %v1327 = vld [vmem:[%s0 + $0x50] sm:$0xff]
        %v1328 = vld [vmem:[%s0 + $0x58] sm:$0xff]
        %v1329 = vld [vmem:[%s0 + $0x60] sm:$0xff]
        %v1330 = vld [vmem:[%s0 + $0x68] sm:$0xff]
        %v1331 = vld [vmem:[%s0 + $0x70] sm:$0xff]
        %v1332 = vld [vmem:[%s0 + $0x78] sm:$0xff]
        %v1333 = vld [vmem:[%s0 + $0x80] sm:$0xff]
        %v1334 = vld [vmem:[%s0 + $0x88] sm:$0xff]
        %v1335 = vld [vmem:[%s0 + $0x90] sm:$0xff]
        %v1336 = vld [vmem:[%s0 + $0x98] sm:$0xff]
        %v1337 = vld [vmem:[%s0 + $0xa0] sm:$0xff]
        %v1338 = vld [vmem:[%s0 + $0xa8] sm:$0xff]
        %v1339 = vld [vmem:[%s0 + $0xb0] sm:$0xff]
        %v1340 = vld [vmem:[%s0 + $0xb8] sm:$0xff]
        %v1341 = vld [vmem:[%s0 + $0xc0] sm:$0xff]
        %v1342 = vld [vmem:[%s0 + $0xc8] sm:$0xff]
        %v1343 = vld [vmem:[%s0 + $0xd0] sm:$0xff]
        %v1344 = vld [vmem:[%s0 + $0xd8] sm:$0xff]
        %v1345 = vld [vmem:[%s0 + $0xe0] sm:$0xff]
        %v1346 = vld [vmem:[%s0 + $0xe8] sm:$0xff]
        %v1347 = vld [vmem:[%s0 + $0xf0] sm:$0xff]
        %v1348 = vld [vmem:[%s0 + $0xf8] sm:$0xff]
        %v1349 = vld [vmem:[%s0 + $0x100] sm:$0x1]
        %v1350 = vld [vmem:[%s0 + $0x108] sm:$0x1]
        %vm1351 = vcmask 7168
        %v1353 = vsel %vm1351, %v1318, 0
        %v1356 = vsel %vm1351, %v1320, 0
        %v1359 = vsel %vm1351, %v1322, 0
        %v1362 = vsel %vm1351, %v1324, 0
        %v1365 = vsel %vm1351, %v1326, 0
        %v1368 = vsel %vm1351, %v1328, 0
        %v1371 = vsel %vm1351, %v1330, 0
        %v1374 = vsel %vm1351, %v1332, 0
        %v1377 = vsel %vm1351, %v1334, 0
        %v1380 = vsel %vm1351, %v1336, 0
        %v1383 = vsel %vm1351, %v1338, 0
        %v1386 = vsel %vm1351, %v1340, 0
        %v1389 = vsel %vm1351, %v1342, 0
        %v1392 = vsel %vm1351, %v1344, 0
        %v1395 = vsel %vm1351, %v1346, 0
        %v1398 = vsel %vm1351, %v1348, 0
        %v1401 = vsel %vm1351, %v1350, 0
        %v1404 = vsel %vm895, %v1315, 0
        %v1407 = vsel %vm895, %v1316, 0
        %1409 = vmatprep.subr.mxu0 %v1284
        %1410 = vmatpush1.msra.mxu0 %v1283
        %1411 = vmatprep.subr.mxu0 %v1286
        %1412 = vmatpush1.msra.mxu0 %v1285
        %1413 = vmatprep.subr.mxu0 %v1288
        %1414 = vmatpush1.msra.mxu0 %v1287
        %1415 = vmatprep.subr.mxu0 %v1290
        %1416 = vmatpush1.msra.mxu0 %v1289
        %1417 = vmatprep.subr.mxu0 %v1292
        %1418 = vmatpush1.msra.mxu0 %v1291
        %1419 = vmatprep.subr.mxu0 %v1294
        %1420 = vmatpush1.msra.mxu0 %v1293
        %1421 = vmatprep.subr.mxu0 %v1296
        %1422 = vmatpush1.msra.mxu0 %v1295
        %1423 = vmatprep.subr.mxu0 %v1298
        %1424 = vmatpush1.msra.mxu0 %v1297
        %1425 = vmatprep.subr.mxu0 %v1300
        %1426 = vmatpush1.msra.mxu0 %v1299
        %1427 = vmatprep.subr.mxu0 %v1302
        %1428 = vmatpush1.msra.mxu0 %v1301
        %1429 = vmatprep.subr.mxu0 %v1304
        %1430 = vmatpush1.msra.mxu0 %v1303
        %1431 = vmatprep.subr.mxu0 %v1306
        %1432 = vmatpush1.msra.mxu0 %v1305
        %1433 = vmatprep.subr.mxu0 %v1308
        %1434 = vmatpush1.msra.mxu0 %v1307
        %1435 = vmatprep.subr.mxu0 %v1310
        %1436 = vmatpush1.msra.mxu0 %v1309
        %1437 = vmatprep.subr.mxu0 %v1312
        %1438 = vmatpush1.msra.mxu0 %v1311
        %1439 = vmatprep.subr.mxu0 %v1314
        %1440 = vmatpush1.msra.mxu0 %v1313
        %1441 = vmatprep.subr.mxu0 %v1407
        %1442 = vmatpush1.msra.mxu0 %v1404
        %1443 = vmatprep.subr.mxu0 0.0
        %1444 = vmatpush1.msra.mxu0 0.0
        %1445 = vmatprep.subr.mxu0 0.0
        %1446 = vmatpush1.msra.mxu0 0.0
        %1447 = vmatprep.subr.mxu0 0.0
        %1448 = vmatpush1.msra.mxu0 0.0
        %1449 = vmatprep.subr.mxu0 0.0
        %1450 = vmatpush1.msra.mxu0 0.0
        %1451 = vmatprep.subr.mxu0 0.0
        %1452 = vmatpush1.msra.mxu0 0.0
        %1453 = vmatprep.subr.mxu0 0.0
        %1454 = vmatpush1.msra.mxu0 0.0
        %1455 = vmatprep.subr.mxu0 0.0
        %1456 = vmatpush1.msra.mxu0 0.0
        %1457 = vmatprep.subr.mxu0 0.0
        %1458 = vmatpush1.msra.mxu0 0.0
        %1459 = vmatprep.subr.mxu0 0.0
        %1460 = vmatpush1.msra.mxu0 0.0
        %1461 = vmatprep.subr.mxu0 0.0
        %1462 = vmatpush1.msra.mxu0 0.0
        %1463 = vmatprep.subr.mxu0 0.0
        %1464 = vmatpush1.msra.mxu0 0.0
        %1465 = vmatprep.subr.mxu0 0.0
        %1466 = vmatpush1.msra.mxu0 0.0
        %1467 = vmatprep.subr.mxu0 0.0
        %1468 = vmatpush1.msra.mxu0 0.0
        %1469 = vmatprep.subr.mxu0 0.0
        %1470 = vmatpush1.msra.mxu0 0.0
        %1471 = vmatprep.subr.mxu0 0.0
        %1472 = vmatpush1.msra.mxu0 0.0
        %1473 = vmatprep.mubr.f32.mxu0 %v1353
        %1474 = vmatmul.mubr.f32.gmra.mrb[0].mxu0 %v1317
        %v1475 = vpop.f32.mrb[0].mxu0
        %v1476 = vadd.f32 0.0, %v1475
        %v1477 = vpop.f32.mrb[0].mxu0
        %v1478 = vadd.f32 0.0, %v1477
        %1479 = vmatprep.mubr.f32.mxu0 %v1356
        %1480 = vmatmul.mubr.f32.gmra.mrb[0].mxu0 %v1319
        %v1481 = vpop.f32.mrb[0].mxu0
        %v1482 = vadd.f32 0.0, %v1481
        %v1483 = vpop.f32.mrb[0].mxu0
        %v1484 = vadd.f32 0.0, %v1483
        %1485 = vmatprep.mubr.f32.mxu0 %v1359
        %1486 = vmatmul.mubr.f32.gmra.mrb[0].mxu0 %v1321
        %v1487 = vpop.f32.mrb[0].mxu0
        %v1488 = vadd.f32 0.0, %v1487
        %v1489 = vpop.f32.mrb[0].mxu0
        %v1490 = vadd.f32 0.0, %v1489
        %1491 = vmatprep.mubr.f32.mxu0 %v1362
        %1492 = vmatmul.mubr.f32.gmra.mrb[0].mxu0 %v1323
        %v1493 = vpop.f32.mrb[0].mxu0
        %v1494 = vadd.f32 0.0, %v1493
        %v1495 = vpop.f32.mrb[0].mxu0
        %v1496 = vadd.f32 0.0, %v1495
        %1497 = vmatprep.mubr.f32.mxu0 %v1365
        %1498 = vmatmul.mubr.f32.gmra.mrb[0].mxu0 %v1325
        %v1499 = vpop.f32.mrb[0].mxu0
        %v1500 = vadd.f32 0.0, %v1499
        %v1501 = vpop.f32.mrb[0].mxu0
        %v1502 = vadd.f32 0.0, %v1501
        %1503 = vmatprep.mubr.f32.mxu0 %v1368
        %1504 = vmatmul.mubr.f32.gmra.mrb[0].mxu0 %v1327
        %v1505 = vpop.f32.mrb[0].mxu0
        %v1506 = vadd.f32 0.0, %v1505
        %v1507 = vpop.f32.mrb[0].mxu0
        %v1508 = vadd.f32 0.0, %v1507
        %1509 = vmatprep.mubr.f32.mxu0 %v1371
        %1510 = vmatmul.mubr.f32.gmra.mrb[0].mxu0 %v1329
        %v1511 = vpop.f32.mrb[0].mxu0
        %v1512 = vadd.f32 0.0, %v1511
        %v1513 = vpop.f32.mrb[0].mxu0
        %v1514 = vadd.f32 0.0, %v1513
        %1515 = vmatprep.mubr.f32.mxu0 %v1374
        %1516 = vmatmul.mubr.f32.gmra.mrb[0].mxu0 %v1331
        %v1517 = vpop.f32.mrb[0].mxu0
        %v1518 = vadd.f32 0.0, %v1517
        %v1519 = vpop.f32.mrb[0].mxu0
        %v1520 = vadd.f32 0.0, %v1519
        %1521 = vmatprep.mubr.f32.mxu0 %v1377
        %1522 = vmatmul.mubr.f32.gmra.mrb[0].mxu0 %v1333
        %v1523 = vpop.f32.mrb[0].mxu0
        %v1524 = vadd.f32 0.0, %v1523
        %v1525 = vpop.f32.mrb[0].mxu0
        %v1526 = vadd.f32 0.0, %v1525
        %1527 = vmatprep.mubr.f32.mxu0 %v1380
        %1528 = vmatmul.mubr.f32.gmra.mrb[0].mxu0 %v1335
        %v1529 = vpop.f32.mrb[0].mxu0
        %v1530 = vadd.f32 0.0, %v1529
        %v1531 = vpop.f32.mrb[0].mxu0
        %v1532 = vadd.f32 0.0, %v1531
        %1533 = vmatprep.mubr.f32.mxu0 %v1383
        %1534 = vmatmul.mubr.f32.gmra.mrb[0].mxu0 %v1337
        %v1535 = vpop.f32.mrb[0].mxu0
        %v1536 = vadd.f32 0.0, %v1535
        %v1537 = vpop.f32.mrb[0].mxu0
        %v1538 = vadd.f32 0.0, %v1537
        %1539 = vmatprep.mubr.f32.mxu0 %v1386
        %1540 = vmatmul.mubr.f32.gmra.mrb[0].mxu0 %v1339
        %v1541 = vpop.f32.mrb[0].mxu0
        %v1542 = vadd.f32 0.0, %v1541
        %v1543 = vpop.f32.mrb[0].mxu0
        %v1544 = vadd.f32 0.0, %v1543
        %1545 = vmatprep.mubr.f32.mxu0 %v1389
        %1546 = vmatmul.mubr.f32.gmra.mrb[0].mxu0 %v1341
        %v1547 = vpop.f32.mrb[0].mxu0
        %v1548 = vadd.f32 0.0, %v1547
        %v1549 = vpop.f32.mrb[0].mxu0
        %v1550 = vadd.f32 0.0, %v1549
        %1551 = vmatprep.mubr.f32.mxu0 %v1392
        %1552 = vmatmul.mubr.f32.gmra.mrb[0].mxu0 %v1343
        %v1553 = vpop.f32.mrb[0].mxu0
        %v1554 = vadd.f32 0.0, %v1553
        %v1555 = vpop.f32.mrb[0].mxu0
        %v1556 = vadd.f32 0.0, %v1555
        %1557 = vmatprep.mubr.f32.mxu0 %v1395
        %1558 = vmatmul.mubr.f32.gmra.mrb[0].mxu0 %v1345
        %v1559 = vpop.f32.mrb[0].mxu0
        %v1560 = vadd.f32 0.0, %v1559
        %v1561 = vpop.f32.mrb[0].mxu0
        %v1562 = vadd.f32 0.0, %v1561
        %1563 = vmatprep.mubr.f32.mxu0 %v1398
        %1564 = vmatmul.mubr.f32.gmra.mrb[0].mxu0 %v1347
        %v1565 = vpop.f32.mrb[0].mxu0
        %v1566 = vadd.f32 0.0, %v1565
        %v1567 = vpop.f32.mrb[0].mxu0
        %v1568 = vadd.f32 0.0, %v1567
        %1569 = vmatprep.mubr.f32.mxu0 %v1401
        %1570 = vmatmul.mubr.f32.gmra.mrb[0].mxu0 %v1349
        %v1571 = vpop.f32.mrb[0].mxu0
        %v1572 = vadd.f32 0.0, %v1571
        %v1573 = vpop.f32.mrb[0].mxu0
        %v1574 = vadd.f32 0.0, %v1573
        %1575 = vdwg.mxu0
        %v1576 = vsub.f32 1.0, %v1476
        %v1577 = vsub.f32 1.0, %v1478
        %v1578 = vsub.f32 1.0, %v1482
        %v1579 = vsub.f32 1.0, %v1484
        %v1580 = vsub.f32 1.0, %v1488
        %v1581 = vsub.f32 1.0, %v1490
        %v1582 = vsub.f32 1.0, %v1494
        %v1583 = vsub.f32 1.0, %v1496
        %v1584 = vsub.f32 1.0, %v1500
        %v1585 = vsub.f32 1.0, %v1502
        %v1586 = vsub.f32 1.0, %v1506
        %v1587 = vsub.f32 1.0, %v1508
        %v1588 = vsub.f32 1.0, %v1512
        %v1589 = vsub.f32 1.0, %v1514
        %v1590 = vsub.f32 1.0, %v1518
        %v1591 = vsub.f32 1.0, %v1520
        %v1592 = vsub.f32 1.0, %v1524
        %v1593 = vsub.f32 1.0, %v1526
        %v1594 = vsub.f32 1.0, %v1530
        %v1595 = vsub.f32 1.0, %v1532
        %v1596 = vsub.f32 1.0, %v1536
        %v1597 = vsub.f32 1.0, %v1538
        %v1598 = vsub.f32 1.0, %v1542
        %v1599 = vsub.f32 1.0, %v1544
        %v1600 = vsub.f32 1.0, %v1548
        %v1601 = vsub.f32 1.0, %v1550
        %v1602 = vsub.f32 1.0, %v1554
        %v1603 = vsub.f32 1.0, %v1556
        %v1604 = vsub.f32 1.0, %v1560
        %v1605 = vsub.f32 1.0, %v1562
        %v1606 = vsub.f32 1.0, %v1566
        %v1607 = vsub.f32 1.0, %v1568
        %v1608 = vsub.f32 1.0, %v1572
        %v1609 = vsub.f32 1.0, %v1574
        %v1610 = vmul.f32 %v1283, %v1576
        %v1611 = vmul.f32 %v1284, %v1577
        %v1612 = vmul.f32 %v1285, %v1578
        %v1613 = vmul.f32 %v1286, %v1579
        %v1614 = vmul.f32 %v1287, %v1580
        %v1615 = vmul.f32 %v1288, %v1581
        %v1616 = vmul.f32 %v1289, %v1582
        %v1617 = vmul.f32 %v1290, %v1583
        %v1618 = vmul.f32 %v1291, %v1584
        %v1619 = vmul.f32 %v1292, %v1585
        %v1620 = vmul.f32 %v1293, %v1586
        %v1621 = vmul.f32 %v1294, %v1587
        %v1622 = vmul.f32 %v1295, %v1588
        %v1623 = vmul.f32 %v1296, %v1589
        %v1624 = vmul.f32 %v1297, %v1590
        %v1625 = vmul.f32 %v1298, %v1591
        %v1626 = vmul.f32 %v1299, %v1592
        %v1627 = vmul.f32 %v1300, %v1593
        %v1628 = vmul.f32 %v1301, %v1594
        %v1629 = vmul.f32 %v1302, %v1595
        %v1630 = vmul.f32 %v1303, %v1596
        %v1631 = vmul.f32 %v1304, %v1597
        %v1632 = vmul.f32 %v1305, %v1598
        %v1633 = vmul.f32 %v1306, %v1599
        %v1634 = vmul.f32 %v1307, %v1600
        %v1635 = vmul.f32 %v1308, %v1601
        %v1636 = vmul.f32 %v1309, %v1602
        %v1637 = vmul.f32 %v1310, %v1603
        %v1638 = vmul.f32 %v1311, %v1604
        %v1639 = vmul.f32 %v1312, %v1605
        %v1640 = vmul.f32 %v1313, %v1606
        %v1641 = vmul.f32 %v1314, %v1607
        %v1642 = vmul.f32 %v1315, %v1608
        %v1643 = vmul.f32 %v1316, %v1609
        %v1644 = vsel %vm404, %v1610, 0.0
        %v1645 = vsel %vm404, %v1611, 0.0
        %v1646 = vsel %vm405, %v1612, 0.0
        %v1647 = vsel %vm405, %v1613, 0.0
        %v1648 = vsel %vm406, %v1614, 0.0
        %v1649 = vsel %vm406, %v1615, 0.0
        %v1650 = vsel %vm407, %v1616, 0.0
        %v1651 = vsel %vm407, %v1617, 0.0
        %v1652 = vsel %vm408, %v1618, 0.0
        %v1653 = vsel %vm408, %v1619, 0.0
        %v1654 = vsel %vm409, %v1620, 0.0
        %v1655 = vsel %vm409, %v1621, 0.0
        %v1656 = vsel %vm410, %v1622, 0.0
        %v1657 = vsel %vm410, %v1623, 0.0
        %v1658 = vsel %vm411, %v1624, 0.0
        %v1659 = vsel %vm411, %v1625, 0.0
        %v1660 = vsel %vm412, %v1626, 0.0
        %v1661 = vsel %vm412, %v1627, 0.0
        %v1662 = vsel %vm413, %v1628, 0.0
        %v1663 = vsel %vm413, %v1629, 0.0
        %v1664 = vsel %vm414, %v1630, 0.0
        %v1665 = vsel %vm414, %v1631, 0.0
        %v1666 = vsel %vm415, %v1632, 0.0
        %v1667 = vsel %vm415, %v1633, 0.0
        %v1668 = vsel %vm416, %v1634, 0.0
        %v1669 = vsel %vm416, %v1635, 0.0
        %v1670 = vsel %vm417, %v1636, 0.0
        %v1671 = vsel %vm417, %v1637, 0.0
        %v1672 = vsel %vm418, %v1638, 0.0
        %v1673 = vsel %vm418, %v1639, 0.0
        %v1674 = vsel %vm419, %v1640, 0.0
        %v1675 = vsel %vm419, %v1641, 0.0
        %v1676 = vsel %vm420, %v1642, 0.0
        %v1677 = vsel %vm420, %v1643, 0.0
        %v1678 = vmul.f32 %v1644, %v1644
        %v1679 = vmul.f32 %v1645, %v1645
        %v1680 = vmul.f32 %v1646, %v1646
        %v1681 = vmul.f32 %v1647, %v1647
        %v1682 = vmul.f32 %v1648, %v1648
        %v1683 = vmul.f32 %v1649, %v1649
        %v1684 = vmul.f32 %v1650, %v1650
        %v1685 = vmul.f32 %v1651, %v1651
        %v1686 = vmul.f32 %v1652, %v1652
        %v1687 = vmul.f32 %v1653, %v1653
        %v1688 = vmul.f32 %v1654, %v1654
        %v1689 = vmul.f32 %v1655, %v1655
        %v1690 = vmul.f32 %v1656, %v1656
        %v1691 = vmul.f32 %v1657, %v1657
        %v1692 = vmul.f32 %v1658, %v1658
        %v1693 = vmul.f32 %v1659, %v1659
        %v1694 = vmul.f32 %v1660, %v1660
        %v1695 = vmul.f32 %v1661, %v1661
        %v1696 = vmul.f32 %v1662, %v1662
        %v1697 = vmul.f32 %v1663, %v1663
        %v1698 = vmul.f32 %v1664, %v1664
        %v1699 = vmul.f32 %v1665, %v1665
        %v1700 = vmul.f32 %v1666, %v1666
        %v1701 = vmul.f32 %v1667, %v1667
        %v1702 = vmul.f32 %v1668, %v1668
        %v1703 = vmul.f32 %v1669, %v1669
        %v1704 = vmul.f32 %v1670, %v1670
        %v1705 = vmul.f32 %v1671, %v1671
        %v1706 = vmul.f32 %v1672, %v1672
        %v1707 = vmul.f32 %v1673, %v1673
        %v1708 = vmul.f32 %v1674, %v1674
        %v1709 = vmul.f32 %v1675, %v1675
        %v1710 = vmul.f32 %v1676, %v1676
        %v1711 = vmul.f32 %v1677, %v1677
        %v1712 = vmul.f32 %v1678, %v1678
        %v1713 = vmul.f32 %v1679, %v1679
        %v1714 = vmul.f32 %v1680, %v1680
        %v1715 = vmul.f32 %v1681, %v1681
        %v1716 = vmul.f32 %v1682, %v1682
        %v1717 = vmul.f32 %v1683, %v1683
        %v1718 = vmul.f32 %v1684, %v1684
        %v1719 = vmul.f32 %v1685, %v1685
        %v1720 = vmul.f32 %v1686, %v1686
        %v1721 = vmul.f32 %v1687, %v1687
        %v1722 = vmul.f32 %v1688, %v1688
        %v1723 = vmul.f32 %v1689, %v1689
        %v1724 = vmul.f32 %v1690, %v1690
        %v1725 = vmul.f32 %v1691, %v1691
        %v1726 = vmul.f32 %v1692, %v1692
        %v1727 = vmul.f32 %v1693, %v1693
        %v1728 = vmul.f32 %v1694, %v1694
        %v1729 = vmul.f32 %v1695, %v1695
        %v1730 = vmul.f32 %v1696, %v1696
        %v1731 = vmul.f32 %v1697, %v1697
        %v1732 = vmul.f32 %v1698, %v1698
        %v1733 = vmul.f32 %v1699, %v1699
        %v1734 = vmul.f32 %v1700, %v1700
        %v1735 = vmul.f32 %v1701, %v1701
        %v1736 = vmul.f32 %v1702, %v1702
        %v1737 = vmul.f32 %v1703, %v1703
        %v1738 = vmul.f32 %v1704, %v1704
        %v1739 = vmul.f32 %v1705, %v1705
        %v1740 = vmul.f32 %v1706, %v1706
        %v1741 = vmul.f32 %v1707, %v1707
        %v1742 = vmul.f32 %v1708, %v1708
        %v1743 = vmul.f32 %v1709, %v1709
        %v1744 = vmul.f32 %v1710, %v1710
        %v1745 = vmul.f32 %v1711, %v1711
        %v1746 = vmul.f32 %v1712, %v1644
        %v1747 = vmul.f32 %v1713, %v1645
        %v1748 = vmul.f32 %v1714, %v1646
        %v1749 = vmul.f32 %v1715, %v1647
        %v1750 = vmul.f32 %v1716, %v1648
        %v1751 = vmul.f32 %v1717, %v1649
        %v1752 = vmul.f32 %v1718, %v1650
        %v1753 = vmul.f32 %v1719, %v1651
        %v1754 = vmul.f32 %v1720, %v1652
        %v1755 = vmul.f32 %v1721, %v1653
        %v1756 = vmul.f32 %v1722, %v1654
        %v1757 = vmul.f32 %v1723, %v1655
        %v1758 = vmul.f32 %v1724, %v1656
        %v1759 = vmul.f32 %v1725, %v1657
        %v1760 = vmul.f32 %v1726, %v1658
        %v1761 = vmul.f32 %v1727, %v1659
        %v1762 = vmul.f32 %v1728, %v1660
        %v1763 = vmul.f32 %v1729, %v1661
        %v1764 = vmul.f32 %v1730, %v1662
        %v1765 = vmul.f32 %v1731, %v1663
        %v1766 = vmul.f32 %v1732, %v1664
        %v1767 = vmul.f32 %v1733, %v1665
        %v1768 = vmul.f32 %v1734, %v1666
        %v1769 = vmul.f32 %v1735, %v1667
        %v1770 = vmul.f32 %v1736, %v1668
        %v1771 = vmul.f32 %v1737, %v1669
        %v1772 = vmul.f32 %v1738, %v1670
        %v1773 = vmul.f32 %v1739, %v1671
        %v1774 = vmul.f32 %v1740, %v1672
        %v1775 = vmul.f32 %v1741, %v1673
        %v1776 = vmul.f32 %v1742, %v1674
        %v1777 = vmul.f32 %v1743, %v1675
        %v1778 = vmul.f32 %v1744, %v1676
        %v1779 = vmul.f32 %v1745, %v1677
        %v1780 = vadd.f32 %v1746, %v1748
        %v1781 = vadd.f32 %v1780, %v1750
        %v1782 = vadd.f32 %v1781, %v1752
        %v1783 = vadd.f32 %v1782, %v1754
        %v1784 = vadd.f32 %v1783, %v1756
        %v1785 = vadd.f32 %v1784, %v1758
        %v1786 = vadd.f32 %v1785, %v1760
        %v1787 = vadd.f32 %v1786, %v1762
        %v1788 = vadd.f32 %v1787, %v1764
        %v1789 = vadd.f32 %v1788, %v1766
        %v1790 = vadd.f32 %v1789, %v1768
        %v1791 = vadd.f32 %v1790, %v1770
        %v1792 = vadd.f32 %v1791, %v1772
        %v1793 = vadd.f32 %v1792, %v1774
        %v1794 = vadd.f32 %v1793, %v1776
        %v1795 = vsel %vm895, %v1778, 0.0
        %v1796 = vadd.f32 %v1794, %v1795
        %v1797 = vrot.slane %v1796, 4
        %v1798 = vadd.f32 %v1796, %v1797
        %v1799 = vrot.slane %v1798, 2
        %v1800 = vadd.f32 %v1798, %v1799
        %v1801 = vrot.slane %v1800, 1
        %v1802 = vadd.f32 %v1800, %v1801
        %v1803 = vadd.f32 %v1747, %v1749
        %v1804 = vadd.f32 %v1803, %v1751
        %v1805 = vadd.f32 %v1804, %v1753
        %v1806 = vadd.f32 %v1805, %v1755
        %v1807 = vadd.f32 %v1806, %v1757
        %v1808 = vadd.f32 %v1807, %v1759
        %v1809 = vadd.f32 %v1808, %v1761
        %v1810 = vadd.f32 %v1809, %v1763
        %v1811 = vadd.f32 %v1810, %v1765
        %v1812 = vadd.f32 %v1811, %v1767
        %v1813 = vadd.f32 %v1812, %v1769
        %v1814 = vadd.f32 %v1813, %v1771
        %v1815 = vadd.f32 %v1814, %v1773
        %v1816 = vadd.f32 %v1815, %v1775
        %v1817 = vadd.f32 %v1816, %v1777
        %v1818 = vsel %vm895, %v1779, 0.0
        %v1819 = vadd.f32 %v1817, %v1818
        %v1820 = vrot.slane %v1819, 4
        %v1821 = vadd.f32 %v1819, %v1820
        %v1822 = vrot.slane %v1821, 2
        %v1823 = vadd.f32 %v1821, %v1822
        %v1824 = vrot.slane %v1823, 1
        %v1825 = vadd.f32 %v1823, %v1824
        %v1826 = vmul.f32 %v1802, %v307
        %v1827 = vmul.f32 %v1825, %v308
        %v1828 = vsub.f32 1.0, %v1283
        %v1829 = vsub.f32 1.0, %v1284
        %v1832 = vrot.slane %v1828, 4
        %v1833 = vrot.slane %v1829, 4
        %v1836 = vmul.f32 %v1309, %v1832
        %v1837 = vmul.f32 %v1310, %v1833
        %v1838 = vmul.f32 %v1836, %v1836
        %v1839 = vmul.f32 %v1837, %v1837
        %v1840 = vmul.f32 %v1838, %v1838
        %v1841 = vmul.f32 %v1839, %v1839
        %v1842 = vmul.f32 %v1840, %v1836
        %v1843 = vmul.f32 %v1841, %v1837
        %v1844 = vadd.f32 %v1842, 0.0
        %v1845 = vadd.f32 %v1843, 0.0
        %vm1846 = vcmask 1045505
        %v1847 = vsel %vm1846, %v1283, -inf
        %v1848 = vrot.slane %v1847, 4
        %v1849 = vmax.f32 %v1847, %v1848
        %v1850 = vrot.slane %v1849, 2
        %v1851 = vmax.f32 %v1849, %v1850
        %v1852 = vrot.slane %v1851, 1
        %v1853 = vmax.f32 %v1851, %v1852
        %v1854 = vsel %vm1846, %v1284, -inf
        %v1855 = vrot.slane %v1854, 4
        %v1856 = vmax.f32 %v1854, %v1855
        %v1857 = vrot.slane %v1856, 2
        %v1858 = vmax.f32 %v1856, %v1857
        %v1859 = vrot.slane %v1858, 1
        %v1860 = vmax.f32 %v1858, %v1859
        %v1861 = vsub.f32 1.0, %v1853
        %v1862 = vsub.f32 1.0, %v1860
        %v1863 = vmul.f32 %v1309, %v1861
        %v1864 = vmul.f32 %v1310, %v1862
        %v1865 = vmul.f32 %v1863, %v1863
        %v1866 = vmul.f32 %v1864, %v1864
        %v1867 = vmul.f32 %v1865, %v1865
        %v1868 = vmul.f32 %v1866, %v1866
        %v1869 = vmul.f32 %v1867, %v1863
        %v1870 = vmul.f32 %v1868, %v1864
        %v1873 = vrot.slane %v1869, 1
        %v1874 = vrot.slane %v1870, 1
        %v1877 = vadd.f32 %v1844, %v1873
        %v1878 = vadd.f32 %v1845, %v1874
        %vm1879 = vcmask 1047558
        %v1880 = vsel %vm1879, %v1283, -inf
        %vm1881 = vcmask 1041408
        %v1882 = vsel %vm1881, %v1285, -inf
        %v1883 = vmax.f32 %v1880, %v1882
        %v1884 = vrot.slane %v1883, 4
        %v1885 = vmax.f32 %v1883, %v1884
        %v1886 = vrot.slane %v1885, 2
        %v1887 = vmax.f32 %v1885, %v1886
        %v1888 = vrot.slane %v1887, 1
        %v1889 = vmax.f32 %v1887, %v1888
        %v1890 = vsel %vm1879, %v1284, -inf
        %v1891 = vsel %vm1881, %v1286, -inf
        %v1892 = vmax.f32 %v1890, %v1891
        %v1893 = vrot.slane %v1892, 4
        %v1894 = vmax.f32 %v1892, %v1893
        %v1895 = vrot.slane %v1894, 2
        %v1896 = vmax.f32 %v1894, %v1895
        %v1897 = vrot.slane %v1896, 1
        %v1898 = vmax.f32 %v1896, %v1897
        %v1899 = vsub.f32 1.0, %v1889
        %v1900 = vsub.f32 1.0, %v1898
        %v1901 = vmul.f32 %v1309, %v1899
        %v1902 = vmul.f32 %v1310, %v1900
        %v1903 = vmul.f32 %v1901, %v1901
        %v1904 = vmul.f32 %v1902, %v1902
        %v1905 = vmul.f32 %v1903, %v1903
        %v1906 = vmul.f32 %v1904, %v1904
        %v1907 = vmul.f32 %v1905, %v1901
        %v1908 = vmul.f32 %v1906, %v1902
        %v1911 = vrot.slane %v1907, 2
        %v1912 = vrot.slane %v1908, 2
        %v1915 = vadd.f32 %v1877, %v1911
        %v1916 = vadd.f32 %v1878, %v1912
        %vm1917 = vcmask 1047554
        %v1918 = vsel %vm1917, %v1285, -inf
        %v1919 = vsel %vm1881, %v1287, -inf
        %v1920 = vmax.f32 %v1918, %v1919
        %v1921 = vrot.slane %v1920, 4
        %v1922 = vmax.f32 %v1920, %v1921
        %v1923 = vrot.slane %v1922, 2
        %v1924 = vmax.f32 %v1922, %v1923
        %v1925 = vrot.slane %v1924, 1
        %v1926 = vmax.f32 %v1924, %v1925
        %v1927 = vsel %vm1917, %v1286, -inf
        %v1928 = vsel %vm1881, %v1288, -inf
        %v1929 = vmax.f32 %v1927, %v1928
        %v1930 = vrot.slane %v1929, 4
        %v1931 = vmax.f32 %v1929, %v1930
        %v1932 = vrot.slane %v1931, 2
        %v1933 = vmax.f32 %v1931, %v1932
        %v1934 = vrot.slane %v1933, 1
        %v1935 = vmax.f32 %v1933, %v1934
        %v1936 = vsub.f32 1.0, %v1926
        %v1937 = vsub.f32 1.0, %v1935
        %v1938 = vmul.f32 %v1309, %v1936
        %v1939 = vmul.f32 %v1310, %v1937
        %v1940 = vmul.f32 %v1938, %v1938
        %v1941 = vmul.f32 %v1939, %v1939
        %v1942 = vmul.f32 %v1940, %v1940
        %v1943 = vmul.f32 %v1941, %v1941
        %v1944 = vmul.f32 %v1942, %v1938
        %v1945 = vmul.f32 %v1943, %v1939
        %v1948 = vrot.slane %v1944, 3
        %v1949 = vrot.slane %v1945, 3
        %v1952 = vadd.f32 %v1915, %v1948
        %v1953 = vadd.f32 %v1916, %v1949
        %v1954 = vsub.f32 1.0, %v1287
        %v1955 = vsub.f32 1.0, %v1288
        %v1958 = vrot.slane %v1954, 2
        %v1959 = vrot.slane %v1955, 2
        %v1962 = vmul.f32 %v1311, %v1958
        %v1963 = vmul.f32 %v1312, %v1959
        %v1964 = vmul.f32 %v1962, %v1962
        %v1965 = vmul.f32 %v1963, %v1963
        %v1966 = vmul.f32 %v1964, %v1964
        %v1967 = vmul.f32 %v1965, %v1965
        %v1968 = vmul.f32 %v1966, %v1962
        %v1969 = vmul.f32 %v1967, %v1963
        %v1972 = vrot.slane %v1968, 4
        %v1973 = vrot.slane %v1969, 4
        %v1976 = vadd.f32 %v1952, %v1972
        %v1977 = vadd.f32 %v1953, %v1973
        %vm1978 = vcmask 1044483
        %v1979 = vsel %vm1978, %v1287, -inf
        %v1980 = vrot.slane %v1979, 4
        %v1981 = vmax.f32 %v1979, %v1980
        %v1982 = vrot.slane %v1981, 2
        %v1983 = vmax.f32 %v1981, %v1982
        %v1984 = vrot.slane %v1983, 1
        %v1985 = vmax.f32 %v1983, %v1984
        %v1986 = vsel %vm1978, %v1288, -inf
        %v1987 = vrot.slane %v1986, 4
        %v1988 = vmax.f32 %v1986, %v1987
        %v1989 = vrot.slane %v1988, 2
        %v1990 = vmax.f32 %v1988, %v1989
        %v1991 = vrot.slane %v1990, 1
        %v1992 = vmax.f32 %v1990, %v1991
        %v1993 = vsub.f32 1.0, %v1985
        %v1994 = vsub.f32 1.0, %v1992
        %v1995 = vmul.f32 %v1311, %v1993
        %v1996 = vmul.f32 %v1312, %v1994
        %v1997 = vmul.f32 %v1995, %v1995
        %v1998 = vmul.f32 %v1996, %v1996
        %v1999 = vmul.f32 %v1997, %v1997
        %v2000 = vmul.f32 %v1998, %v1998
        %v2001 = vmul.f32 %v1999, %v1995
        %v2002 = vmul.f32 %v2000, %v1996
        %v2005 = vrot.slane %v2001, 5
        %v2006 = vrot.slane %v2002, 5
        %v2009 = vadd.f32 %v1976, %v2005
        %v2010 = vadd.f32 %v1977, %v2006
        %vm2011 = vcmask 1047557
        %v2012 = vsel %vm2011, %v1287, -inf
        %vm2013 = vcmask 1044480
        %v2014 = vsel %vm2013, %v1289, -inf
        %v2015 = vmax.f32 %v2012, %v2014
        %v2016 = vrot.slane %v2015, 4
        %v2017 = vmax.f32 %v2015, %v2016
        %v2018 = vrot.slane %v2017, 2
        %v2019 = vmax.f32 %v2017, %v2018
        %v2020 = vrot.slane %v2019, 1
        %v2021 = vmax.f32 %v2019, %v2020
        %v2022 = vsel %vm2011, %v1288, -inf
        %v2023 = vsel %vm2013, %v1290, -inf
        %v2024 = vmax.f32 %v2022, %v2023
        %v2025 = vrot.slane %v2024, 4
        %v2026 = vmax.f32 %v2024, %v2025
        %v2027 = vrot.slane %v2026, 2
        %v2028 = vmax.f32 %v2026, %v2027
        %v2029 = vrot.slane %v2028, 1
        %v2030 = vmax.f32 %v2028, %v2029
        %v2031 = vsub.f32 1.0, %v2021
        %v2032 = vsub.f32 1.0, %v2030
        %v2033 = vmul.f32 %v1311, %v2031
        %v2034 = vmul.f32 %v1312, %v2032
        %v2035 = vmul.f32 %v2033, %v2033
        %v2036 = vmul.f32 %v2034, %v2034
        %v2037 = vmul.f32 %v2035, %v2035
        %v2038 = vmul.f32 %v2036, %v2036
        %v2039 = vmul.f32 %v2037, %v2033
        %v2040 = vmul.f32 %v2038, %v2034
        %v2043 = vrot.slane %v2039, 6
        %v2044 = vrot.slane %v2040, 6
        %v2047 = vadd.f32 %v2009, %v2043
        %v2048 = vadd.f32 %v2010, %v2044
        %v2049 = vsel %vm2011, %v1289, -inf
        %vm2050 = vcmask 1043456
        %v2051 = vsel %vm2050, %v1291, -inf
        %v2052 = vmax.f32 %v2049, %v2051
        %v2053 = vrot.slane %v2052, 4
        %v2054 = vmax.f32 %v2052, %v2053
        %v2055 = vrot.slane %v2054, 2
        %v2056 = vmax.f32 %v2054, %v2055
        %v2057 = vrot.slane %v2056, 1
        %v2058 = vmax.f32 %v2056, %v2057
        %v2059 = vsel %vm2011, %v1290, -inf
        %v2060 = vsel %vm2050, %v1292, -inf
        %v2061 = vmax.f32 %v2059, %v2060
        %v2062 = vrot.slane %v2061, 4
        %v2063 = vmax.f32 %v2061, %v2062
        %v2064 = vrot.slane %v2063, 2
        %v2065 = vmax.f32 %v2063, %v2064
        %v2066 = vrot.slane %v2065, 1
        %v2067 = vmax.f32 %v2065, %v2066
        %v2068 = vsub.f32 1.0, %v2058
        %v2069 = vsub.f32 1.0, %v2067
        %v2070 = vmul.f32 %v1311, %v2068
        %v2071 = vmul.f32 %v1312, %v2069
        %v2072 = vmul.f32 %v2070, %v2070
        %v2073 = vmul.f32 %v2071, %v2071
        %v2074 = vmul.f32 %v2072, %v2072
        %v2075 = vmul.f32 %v2073, %v2073
        %v2076 = vmul.f32 %v2074, %v2070
        %v2077 = vmul.f32 %v2075, %v2071
        %v2080 = vrot.slane %v2076, 7
        %v2081 = vrot.slane %v2077, 7
        %v2084 = vadd.f32 %v2047, %v2080
        %v2085 = vadd.f32 %v2048, %v2081
        %vm2086 = vcmask 1047556
        %v2087 = vsel %vm2086, %v1291, -inf
        %v2088 = vsel %vm2013, %v1293, -inf
        %v2089 = vmax.f32 %v2087, %v2088
        %v2090 = vrot.slane %v2089, 4
        %v2091 = vmax.f32 %v2089, %v2090
        %v2092 = vrot.slane %v2091, 2
        %v2093 = vmax.f32 %v2091, %v2092
        %v2094 = vrot.slane %v2093, 1
        %v2095 = vmax.f32 %v2093, %v2094
        %v2096 = vsel %vm2086, %v1292, -inf
        %v2097 = vsel %vm2013, %v1294, -inf
        %v2098 = vmax.f32 %v2096, %v2097
        %v2099 = vrot.slane %v2098, 4
        %v2100 = vmax.f32 %v2098, %v2099
        %v2101 = vrot.slane %v2100, 2
        %v2102 = vmax.f32 %v2100, %v2101
        %v2103 = vrot.slane %v2102, 1
        %v2104 = vmax.f32 %v2102, %v2103
        %v2105 = vsub.f32 1.0, %v2095
        %v2106 = vsub.f32 1.0, %v2104
        %v2107 = vmul.f32 %v1311, %v2105
        %v2108 = vmul.f32 %v1312, %v2106
        %v2109 = vmul.f32 %v2107, %v2107
        %v2110 = vmul.f32 %v2108, %v2108
        %v2111 = vmul.f32 %v2109, %v2109
        %v2112 = vmul.f32 %v2110, %v2110
        %v2113 = vmul.f32 %v2111, %v2107
        %v2114 = vmul.f32 %v2112, %v2108
        %v2115 = vadd.f32 %v2084, %v2113
        %v2116 = vadd.f32 %v2085, %v2114
        %v2117 = vsub.f32 1.0, %v1293
        %v2118 = vsub.f32 1.0, %v1294
        %v2119 = vmul.f32 %v1311, %v2117
        %v2120 = vmul.f32 %v1312, %v2118
        %v2121 = vmul.f32 %v2119, %v2119
        %v2122 = vmul.f32 %v2120, %v2120
        %v2123 = vmul.f32 %v2121, %v2121
        %v2124 = vmul.f32 %v2122, %v2122
        %v2125 = vmul.f32 %v2123, %v2119
        %v2126 = vmul.f32 %v2124, %v2120
        %v2129 = vrot.slane %v2125, 1
        %v2130 = vrot.slane %v2126, 1
        %v2133 = vadd.f32 %v2115, %v2129
        %v2134 = vadd.f32 %v2116, %v2130
        %v2135 = vsel %vm1879, %v1293, -inf
        %vm2136 = vcmask 1045504
        %v2137 = vsel %vm2136, %v1295, -inf
        %v2138 = vmax.f32 %v2135, %v2137
        %v2139 = vrot.slane %v2138, 4
        %v2140 = vmax.f32 %v2138, %v2139
        %v2141 = vrot.slane %v2140, 2
        %v2142 = vmax.f32 %v2140, %v2141
        %v2143 = vrot.slane %v2142, 1
        %v2144 = vmax.f32 %v2142, %v2143
        %v2145 = vsel %vm1879, %v1294, -inf
        %v2146 = vsel %vm2136, %v1296, -inf
        %v2147 = vmax.f32 %v2145, %v2146
        %v2148 = vrot.slane %v2147, 4
        %v2149 = vmax.f32 %v2147, %v2148
        %v2150 = vrot.slane %v2149, 2
        %v2151 = vmax.f32 %v2149, %v2150
        %v2152 = vrot.slane %v2151, 1
        %v2153 = vmax.f32 %v2151, %v2152
        %v2154 = vsub.f32 1.0, %v2144
        %v2155 = vsub.f32 1.0, %v2153
        %v2156 = vmul.f32 %v1311, %v2154
        %v2157 = vmul.f32 %v1312, %v2155
        %v2158 = vmul.f32 %v2156, %v2156
        %v2159 = vmul.f32 %v2157, %v2157
        %v2160 = vmul.f32 %v2158, %v2158
        %v2161 = vmul.f32 %v2159, %v2159
        %v2162 = vmul.f32 %v2160, %v2156
        %v2163 = vmul.f32 %v2161, %v2157
        %v2166 = vrot.slane %v2162, 2
        %v2167 = vrot.slane %v2163, 2
        %v2170 = vadd.f32 %v2133, %v2166
        %v2171 = vadd.f32 %v2134, %v2167
        %v2172 = vsub.f32 1.0, %v1295
        %v2173 = vsub.f32 1.0, %v1296
        %v2176 = vrot.slane %v2172, 7
        %v2177 = vrot.slane %v2173, 7
        %v2180 = vmul.f32 %v1311, %v2176
        %v2181 = vmul.f32 %v1312, %v2177
        %v2182 = vmul.f32 %v2180, %v2180
        %v2183 = vmul.f32 %v2181, %v2181
        %v2184 = vmul.f32 %v2182, %v2182
        %v2185 = vmul.f32 %v2183, %v2183
        %v2186 = vmul.f32 %v2184, %v2180
        %v2187 = vmul.f32 %v2185, %v2181
        %v2190 = vrot.slane %v2186, 3
        %v2191 = vrot.slane %v2187, 3
        %v2194 = vadd.f32 %v2170, %v2190
        %v2195 = vadd.f32 %v2171, %v2191
        %vm2196 = vcmask 1047559
        %v2197 = vsel %vm2196, %v1295, -inf
        %v2198 = vsel %vm895, %v1299, -inf
        %v2199 = vmax.f32 %v2197, %v2198
        %v2200 = vmax.f32 %v2199, %v1297
        %v2201 = vrot.slane %v2200, 4
        %v2202 = vmax.f32 %v2200, %v2201
        %v2203 = vrot.slane %v2202, 2
        %v2204 = vmax.f32 %v2202, %v2203
        %v2205 = vrot.slane %v2204, 1
        %v2206 = vmax.f32 %v2204, %v2205
        %v2207 = vsel %vm2196, %v1296, -inf
        %v2208 = vsel %vm895, %v1300, -inf
        %v2209 = vmax.f32 %v2207, %v2208
        %v2210 = vmax.f32 %v2209, %v1298
        %v2211 = vrot.slane %v2210, 4
        %v2212 = vmax.f32 %v2210, %v2211
        %v2213 = vrot.slane %v2212, 2
        %v2214 = vmax.f32 %v2212, %v2213
        %v2215 = vrot.slane %v2214, 1
        %v2216 = vmax.f32 %v2214, %v2215
        %v2217 = vsub.f32 1.0, %v2206
        %v2218 = vsub.f32 1.0, %v2216
        %v2219 = vmul.f32 %v1313, %v2217
        %v2220 = vmul.f32 %v1314, %v2218
        %v2221 = vmul.f32 %v2219, %v2219
        %v2222 = vmul.f32 %v2220, %v2220
        %v2223 = vmul.f32 %v2221, %v2221
        %v2224 = vmul.f32 %v2222, %v2222
        %v2225 = vmul.f32 %v2223, %v2219
        %v2226 = vmul.f32 %v2224, %v2220
        %v2229 = vrot.slane %v2225, 4
        %v2230 = vrot.slane %v2226, 4
        %v2233 = vadd.f32 %v2194, %v2229
        %v2234 = vadd.f32 %v2195, %v2230
        %vm2235 = vcmask 1047553
        %v2236 = vsel %vm2235, %v1299, -inf
        %v2237 = vsel %vm895, %v1301, -inf
        %v2238 = vmax.f32 %v2236, %v2237
        %v2239 = vrot.slane %v2238, 4
        %v2240 = vmax.f32 %v2238, %v2239
        %v2241 = vrot.slane %v2240, 2
        %v2242 = vmax.f32 %v2240, %v2241
        %v2243 = vrot.slane %v2242, 1
        %v2244 = vmax.f32 %v2242, %v2243
        %v2245 = vsel %vm2235, %v1300, -inf
        %v2246 = vsel %vm895, %v1302, -inf
        %v2247 = vmax.f32 %v2245, %v2246
        %v2248 = vrot.slane %v2247, 4
        %v2249 = vmax.f32 %v2247, %v2248
        %v2250 = vrot.slane %v2249, 2
        %v2251 = vmax.f32 %v2249, %v2250
        %v2252 = vrot.slane %v2251, 1
        %v2253 = vmax.f32 %v2251, %v2252
        %v2254 = vsub.f32 1.0, %v2244
        %v2255 = vsub.f32 1.0, %v2253
        %v2256 = vmul.f32 %v1313, %v2254
        %v2257 = vmul.f32 %v1314, %v2255
        %v2258 = vmul.f32 %v2256, %v2256
        %v2259 = vmul.f32 %v2257, %v2257
        %v2260 = vmul.f32 %v2258, %v2258
        %v2261 = vmul.f32 %v2259, %v2259
        %v2262 = vmul.f32 %v2260, %v2256
        %v2263 = vmul.f32 %v2261, %v2257
        %v2266 = vrot.slane %v2262, 5
        %v2267 = vrot.slane %v2263, 5
        %v2270 = vadd.f32 %v2233, %v2266
        %v2271 = vadd.f32 %v2234, %v2267
        %vm2272 = vcmask 1044481
        %v2273 = vsel %vm2272, %v1301, -inf
        %v2274 = vrot.slane %v2273, 4
        %v2275 = vmax.f32 %v2273, %v2274
        %v2276 = vrot.slane %v2275, 2
        %v2277 = vmax.f32 %v2275, %v2276
        %v2278 = vrot.slane %v2277, 1
        %v2279 = vmax.f32 %v2277, %v2278
        %v2280 = vsel %vm2272, %v1302, -inf
        %v2281 = vrot.slane %v2280, 4
        %v2282 = vmax.f32 %v2280, %v2281
        %v2283 = vrot.slane %v2282, 2
        %v2284 = vmax.f32 %v2282, %v2283
        %v2285 = vrot.slane %v2284, 1
        %v2286 = vmax.f32 %v2284, %v2285
        %v2287 = vsub.f32 1.0, %v2279
        %v2288 = vsub.f32 1.0, %v2286
        %v2289 = vmul.f32 %v1313, %v2287
        %v2290 = vmul.f32 %v1314, %v2288
        %v2291 = vmul.f32 %v2289, %v2289
        %v2292 = vmul.f32 %v2290, %v2290
        %v2293 = vmul.f32 %v2291, %v2291
        %v2294 = vmul.f32 %v2292, %v2292
        %v2295 = vmul.f32 %v2293, %v2289
        %v2296 = vmul.f32 %v2294, %v2290
        %v2299 = vrot.slane %v2295, 6
        %v2300 = vrot.slane %v2296, 6
        %v2303 = vadd.f32 %v2270, %v2299
        %v2304 = vadd.f32 %v2271, %v2300
        %v2305 = vsel %vm2011, %v1301, -inf
        %v2306 = vsel %vm895, %v1305, -inf
        %v2307 = vmax.f32 %v2305, %v2306
        %v2308 = vmax.f32 %v2307, %v1303
        %v2309 = vrot.slane %v2308, 4
        %v2310 = vmax.f32 %v2308, %v2309
        %v2311 = vrot.slane %v2310, 2
        %v2312 = vmax.f32 %v2310, %v2311
        %v2313 = vrot.slane %v2312, 1
        %v2314 = vmax.f32 %v2312, %v2313
        %v2315 = vsel %vm2011, %v1302, -inf
        %v2316 = vsel %vm895, %v1306, -inf
        %v2317 = vmax.f32 %v2315, %v2316
        %v2318 = vmax.f32 %v2317, %v1304
        %v2319 = vrot.slane %v2318, 4
        %v2320 = vmax.f32 %v2318, %v2319
        %v2321 = vrot.slane %v2320, 2
        %v2322 = vmax.f32 %v2320, %v2321
        %v2323 = vrot.slane %v2322, 1
        %v2324 = vmax.f32 %v2322, %v2323
        %v2325 = vsub.f32 1.0, %v2314
        %v2326 = vsub.f32 1.0, %v2324
        %v2327 = vmul.f32 %v1313, %v2325
        %v2328 = vmul.f32 %v1314, %v2326
        %v2329 = vmul.f32 %v2327, %v2327
        %v2330 = vmul.f32 %v2328, %v2328
        %v2331 = vmul.f32 %v2329, %v2329
        %v2332 = vmul.f32 %v2330, %v2330
        %v2333 = vmul.f32 %v2331, %v2327
        %v2334 = vmul.f32 %v2332, %v2328
        %v2337 = vrot.slane %v2333, 7
        %v2338 = vrot.slane %v2334, 7
        %v2341 = vadd.f32 %v2303, %v2337
        %v2342 = vadd.f32 %v2304, %v2338
        %vm2343 = vcmask 1042433
        %v2344 = vsel %vm2343, %v1305, -inf
        %v2345 = vrot.slane %v2344, 4
        %v2346 = vmax.f32 %v2344, %v2345
        %v2347 = vrot.slane %v2346, 2
        %v2348 = vmax.f32 %v2346, %v2347
        %v2349 = vrot.slane %v2348, 1
        %v2350 = vmax.f32 %v2348, %v2349
        %v2351 = vsel %vm2343, %v1306, -inf
        %v2352 = vrot.slane %v2351, 4
        %v2353 = vmax.f32 %v2351, %v2352
        %v2354 = vrot.slane %v2353, 2
        %v2355 = vmax.f32 %v2353, %v2354
        %v2356 = vrot.slane %v2355, 1
        %v2357 = vmax.f32 %v2355, %v2356
        %v2358 = vsub.f32 1.0, %v2350
        %v2359 = vsub.f32 1.0, %v2357
        %v2360 = vmul.f32 %v1313, %v2358
        %v2361 = vmul.f32 %v1314, %v2359
        %v2362 = vmul.f32 %v2360, %v2360
        %v2363 = vmul.f32 %v2361, %v2361
        %v2364 = vmul.f32 %v2362, %v2362
        %v2365 = vmul.f32 %v2363, %v2363
        %v2366 = vmul.f32 %v2364, %v2360
        %v2367 = vmul.f32 %v2365, %v2361
        %v2368 = vadd.f32 %v2341, %v2366
        %v2369 = vadd.f32 %v2342, %v2367
        %vm2370 = vcmask 1047555
        %v2371 = vsel %vm2370, %v1305, -inf
        %vm2372 = vcmask 1042432
        %v2373 = vsel %vm2372, %v1307, -inf
        %v2374 = vmax.f32 %v2371, %v2373
        %v2375 = vrot.slane %v2374, 4
        %v2376 = vmax.f32 %v2374, %v2375
        %v2377 = vrot.slane %v2376, 2
        %v2378 = vmax.f32 %v2376, %v2377
        %v2379 = vrot.slane %v2378, 1
        %v2380 = vmax.f32 %v2378, %v2379
        %v2381 = vsel %vm2370, %v1306, -inf
        %v2382 = vsel %vm2372, %v1308, -inf
        %v2383 = vmax.f32 %v2381, %v2382
        %v2384 = vrot.slane %v2383, 4
        %v2385 = vmax.f32 %v2383, %v2384
        %v2386 = vrot.slane %v2385, 2
        %v2387 = vmax.f32 %v2385, %v2386
        %v2388 = vrot.slane %v2387, 1
        %v2389 = vmax.f32 %v2387, %v2388
        %v2390 = vsub.f32 1.0, %v2380
        %v2391 = vsub.f32 1.0, %v2389
        %v2392 = vmul.f32 %v1313, %v2390
        %v2393 = vmul.f32 %v1314, %v2391
        %v2394 = vmul.f32 %v2392, %v2392
        %v2395 = vmul.f32 %v2393, %v2393
        %v2396 = vmul.f32 %v2394, %v2394
        %v2397 = vmul.f32 %v2395, %v2395
        %v2398 = vmul.f32 %v2396, %v2392
        %v2399 = vmul.f32 %v2397, %v2393
        %v2402 = vrot.slane %v2398, 1
        %v2403 = vrot.slane %v2399, 1
        %v2406 = vadd.f32 %v2368, %v2402
        %v2407 = vadd.f32 %v2369, %v2403
        %v2408 = vsub.f32 1.0, %v1307
        %v2409 = vsub.f32 1.0, %v1308
        %v2412 = vrot.slane %v2408, 5
        %v2413 = vrot.slane %v2409, 5
        %v2416 = vmul.f32 %v1313, %v2412
        %v2417 = vmul.f32 %v1314, %v2413
        %v2418 = vmul.f32 %v2416, %v2416
        %v2419 = vmul.f32 %v2417, %v2417
        %v2420 = vmul.f32 %v2418, %v2418
        %v2421 = vmul.f32 %v2419, %v2419
        %v2422 = vmul.f32 %v2420, %v2416
        %v2423 = vmul.f32 %v2421, %v2417
        %v2426 = vrot.slane %v2422, 2
        %v2427 = vrot.slane %v2423, 2
        %v2430 = vadd.f32 %v2406, %v2426
        %v2431 = vadd.f32 %v2407, %v2427
        %v2432 = vsel %vm2086, %v1307, -inf
        %v2433 = vsel %vm2372, %v1309, -inf
        %v2434 = vmax.f32 %v2432, %v2433
        %v2435 = vrot.slane %v2434, 4
        %v2436 = vmax.f32 %v2434, %v2435
        %v2437 = vrot.slane %v2436, 2
        %v2438 = vmax.f32 %v2436, %v2437
        %v2439 = vrot.slane %v2438, 1
        %v2440 = vmax.f32 %v2438, %v2439
        %v2441 = vsel %vm2086, %v1308, -inf
        %v2442 = vsel %vm2372, %v1310, -inf
        %v2443 = vmax.f32 %v2441, %v2442
        %v2444 = vrot.slane %v2443, 4
        %v2445 = vmax.f32 %v2443, %v2444
        %v2446 = vrot.slane %v2445, 2
        %v2447 = vmax.f32 %v2445, %v2446
        %v2448 = vrot.slane %v2447, 1
        %v2449 = vmax.f32 %v2447, %v2448
        %v2450 = vsub.f32 1.0, %v2440
        %v2451 = vsub.f32 1.0, %v2449
        %v2452 = vmul.f32 %v1313, %v2450
        %v2453 = vmul.f32 %v1314, %v2451
        %v2454 = vmul.f32 %v2452, %v2452
        %v2455 = vmul.f32 %v2453, %v2453
        %v2456 = vmul.f32 %v2454, %v2454
        %v2457 = vmul.f32 %v2455, %v2455
        %v2458 = vmul.f32 %v2456, %v2452
        %v2459 = vmul.f32 %v2457, %v2453
        %v2462 = vrot.slane %v2458, 3
        %v2463 = vrot.slane %v2459, 3
        %v2466 = vadd.f32 %v2430, %v2462
        %v2467 = vadd.f32 %v2431, %v2463
        %v2468 = vsub.f32 1.0, %v1309
        %v2469 = vsub.f32 1.0, %v1310
        %v2472 = vrot.slane %v2468, 3
        %v2473 = vrot.slane %v2469, 3
        %v2476 = vmul.f32 %v1315, %v2472
        %v2477 = vmul.f32 %v1316, %v2473
        %v2478 = vmul.f32 %v2476, %v2476
        %v2479 = vmul.f32 %v2477, %v2477
        %v2480 = vmul.f32 %v2478, %v2478
        %v2481 = vmul.f32 %v2479, %v2479
        %v2482 = vmul.f32 %v2480, %v2476
        %v2483 = vmul.f32 %v2481, %v2477
        %v2486 = vrot.slane %v2482, 4
        %v2487 = vrot.slane %v2483, 4
        %v2490 = vadd.f32 %v2466, %v2486
        %v2491 = vadd.f32 %v2467, %v2487
        %v2492 = vmul.f32 %v2490, %v307
        %v2493 = vmul.f32 %v2491, %v308
        %v2494 = vmul.f32 %v1283, %v1283
        %v2495 = vmul.f32 %v1284, %v1284
        %v2496 = vmul.f32 %v1285, %v1285
        %v2497 = vmul.f32 %v1286, %v1286
        %v2498 = vmul.f32 %v1287, %v1287
        %v2499 = vmul.f32 %v1288, %v1288
        %v2500 = vmul.f32 %v1289, %v1289
        %v2501 = vmul.f32 %v1290, %v1290
        %v2502 = vmul.f32 %v1291, %v1291
        %v2503 = vmul.f32 %v1292, %v1292
        %v2504 = vmul.f32 %v1293, %v1293
        %v2505 = vmul.f32 %v1294, %v1294
        %v2506 = vmul.f32 %v1295, %v1295
        %v2507 = vmul.f32 %v1296, %v1296
        %v2508 = vmul.f32 %v1297, %v1297
        %v2509 = vmul.f32 %v1298, %v1298
        %v2510 = vmul.f32 %v1299, %v1299
        %v2511 = vmul.f32 %v1300, %v1300
        %v2512 = vmul.f32 %v1301, %v1301
        %v2513 = vmul.f32 %v1302, %v1302
        %v2514 = vmul.f32 %v1303, %v1303
        %v2515 = vmul.f32 %v1304, %v1304
        %v2516 = vmul.f32 %v1305, %v1305
        %v2517 = vmul.f32 %v1306, %v1306
        %v2518 = vmul.f32 %v1307, %v1307
        %v2519 = vmul.f32 %v1308, %v1308
        %v2520 = vmul.f32 %v1309, %v1309
        %v2521 = vmul.f32 %v1310, %v1310
        %v2522 = vmul.f32 %v1311, %v1311
        %v2523 = vmul.f32 %v1312, %v1312
        %v2524 = vmul.f32 %v1313, %v1313
        %v2525 = vmul.f32 %v1314, %v1314
        %v2526 = vmul.f32 %v1315, %v1315
        %v2527 = vmul.f32 %v1316, %v1316
        %v2528 = vmul.f32 %v2494, %v1283
        %v2529 = vmul.f32 %v2495, %v1284
        %v2530 = vmul.f32 %v2496, %v1285
        %v2531 = vmul.f32 %v2497, %v1286
        %v2532 = vmul.f32 %v2498, %v1287
        %v2533 = vmul.f32 %v2499, %v1288
        %v2534 = vmul.f32 %v2500, %v1289
        %v2535 = vmul.f32 %v2501, %v1290
        %v2536 = vmul.f32 %v2502, %v1291
        %v2537 = vmul.f32 %v2503, %v1292
        %v2538 = vmul.f32 %v2504, %v1293
        %v2539 = vmul.f32 %v2505, %v1294
        %v2540 = vmul.f32 %v2506, %v1295
        %v2541 = vmul.f32 %v2507, %v1296
        %v2542 = vmul.f32 %v2508, %v1297
        %v2543 = vmul.f32 %v2509, %v1298
        %v2544 = vmul.f32 %v2510, %v1299
        %v2545 = vmul.f32 %v2511, %v1300
        %v2546 = vmul.f32 %v2512, %v1301
        %v2547 = vmul.f32 %v2513, %v1302
        %v2548 = vmul.f32 %v2514, %v1303
        %v2549 = vmul.f32 %v2515, %v1304
        %v2550 = vmul.f32 %v2516, %v1305
        %v2551 = vmul.f32 %v2517, %v1306
        %v2552 = vmul.f32 %v2518, %v1307
        %v2553 = vmul.f32 %v2519, %v1308
        %v2554 = vmul.f32 %v2520, %v1309
        %v2555 = vmul.f32 %v2521, %v1310
        %v2556 = vmul.f32 %v2522, %v1311
        %v2557 = vmul.f32 %v2523, %v1312
        %v2558 = vmul.f32 %v2524, %v1313
        %v2559 = vmul.f32 %v2525, %v1314
        %v2560 = vmul.f32 %v2526, %v1315
        %v2561 = vmul.f32 %v2527, %v1316
        %v2562 = vmul.f32 %v2528, %v2528
        %v2563 = vmul.f32 %v2529, %v2529
        %v2564 = vmul.f32 %v2530, %v2530
        %v2565 = vmul.f32 %v2531, %v2531
        %v2566 = vmul.f32 %v2532, %v2532
        %v2567 = vmul.f32 %v2533, %v2533
        %v2568 = vmul.f32 %v2534, %v2534
        %v2569 = vmul.f32 %v2535, %v2535
        %v2570 = vmul.f32 %v2536, %v2536
        %v2571 = vmul.f32 %v2537, %v2537
        %v2572 = vmul.f32 %v2538, %v2538
        %v2573 = vmul.f32 %v2539, %v2539
        %v2574 = vmul.f32 %v2540, %v2540
        %v2575 = vmul.f32 %v2541, %v2541
        %v2576 = vmul.f32 %v2542, %v2542
        %v2577 = vmul.f32 %v2543, %v2543
        %v2578 = vmul.f32 %v2544, %v2544
        %v2579 = vmul.f32 %v2545, %v2545
        %v2580 = vmul.f32 %v2546, %v2546
        %v2581 = vmul.f32 %v2547, %v2547
        %v2582 = vmul.f32 %v2548, %v2548
        %v2583 = vmul.f32 %v2549, %v2549
        %v2584 = vmul.f32 %v2550, %v2550
        %v2585 = vmul.f32 %v2551, %v2551
        %v2586 = vmul.f32 %v2552, %v2552
        %v2587 = vmul.f32 %v2553, %v2553
        %v2588 = vmul.f32 %v2554, %v2554
        %v2589 = vmul.f32 %v2555, %v2555
        %v2590 = vmul.f32 %v2556, %v2556
        %v2591 = vmul.f32 %v2557, %v2557
        %v2592 = vmul.f32 %v2558, %v2558
        %v2593 = vmul.f32 %v2559, %v2559
        %v2594 = vmul.f32 %v2560, %v2560
        %v2595 = vmul.f32 %v2561, %v2561
        %vm2596 = vcmp.gt.f32.partialorder %v1283, 0.7
        %vm2597 = vcmp.gt.f32.partialorder %v1284, 0.7
        %vm2598 = vcmp.gt.f32.partialorder %v1285, 0.7
        %vm2599 = vcmp.gt.f32.partialorder %v1286, 0.7
        %vm2600 = vcmp.gt.f32.partialorder %v1287, 0.7
        %vm2601 = vcmp.gt.f32.partialorder %v1288, 0.7
        %vm2602 = vcmp.gt.f32.partialorder %v1289, 0.7
        %vm2603 = vcmp.gt.f32.partialorder %v1290, 0.7
        %vm2604 = vcmp.gt.f32.partialorder %v1291, 0.7
        %vm2605 = vcmp.gt.f32.partialorder %v1292, 0.7
        %vm2606 = vcmp.gt.f32.partialorder %v1293, 0.7
        %vm2607 = vcmp.gt.f32.partialorder %v1294, 0.7
        %vm2608 = vcmp.gt.f32.partialorder %v1295, 0.7
        %vm2609 = vcmp.gt.f32.partialorder %v1296, 0.7
        %vm2610 = vcmp.gt.f32.partialorder %v1297, 0.7
        %vm2611 = vcmp.gt.f32.partialorder %v1298, 0.7
        %vm2612 = vcmp.gt.f32.partialorder %v1299, 0.7
        %vm2613 = vcmp.gt.f32.partialorder %v1300, 0.7
        %vm2614 = vcmp.gt.f32.partialorder %v1301, 0.7
        %vm2615 = vcmp.gt.f32.partialorder %v1302, 0.7
        %vm2616 = vcmp.gt.f32.partialorder %v1303, 0.7
        %vm2617 = vcmp.gt.f32.partialorder %v1304, 0.7
        %vm2618 = vcmp.gt.f32.partialorder %v1305, 0.7
        %vm2619 = vcmp.gt.f32.partialorder %v1306, 0.7
        %vm2620 = vcmp.gt.f32.partialorder %v1307, 0.7
        %vm2621 = vcmp.gt.f32.partialorder %v1308, 0.7
        %vm2622 = vcmp.gt.f32.partialorder %v1309, 0.7
        %vm2623 = vcmp.gt.f32.partialorder %v1310, 0.7
        %vm2624 = vcmp.gt.f32.partialorder %v1311, 0.7
        %vm2625 = vcmp.gt.f32.partialorder %v1312, 0.7
        %vm2626 = vcmp.gt.f32.partialorder %v1313, 0.7
        %vm2627 = vcmp.gt.f32.partialorder %v1314, 0.7
        %vm2628 = vcmp.gt.f32.partialorder %v1315, 0.7
        %vm2629 = vcmp.gt.f32.partialorder %v1316, 0.7
        %v2630 = vsel %vm2596, 1, 0
        %v2631 = vsel %vm2597, 1, 0
        %v2632 = vsel %vm2598, 1, 0
        %v2633 = vsel %vm2599, 1, 0
        %v2634 = vsel %vm2600, 1, 0
        %v2635 = vsel %vm2601, 1, 0
        %v2636 = vsel %vm2602, 1, 0
        %v2637 = vsel %vm2603, 1, 0
        %v2638 = vsel %vm2604, 1, 0
        %v2639 = vsel %vm2605, 1, 0
        %v2640 = vsel %vm2606, 1, 0
        %v2641 = vsel %vm2607, 1, 0
        %v2642 = vsel %vm2608, 1, 0
        %v2643 = vsel %vm2609, 1, 0
        %v2644 = vsel %vm2610, 1, 0
        %v2645 = vsel %vm2611, 1, 0
        %v2646 = vsel %vm2612, 1, 0
        %v2647 = vsel %vm2613, 1, 0
        %v2648 = vsel %vm2614, 1, 0
        %v2649 = vsel %vm2615, 1, 0
        %v2650 = vsel %vm2616, 1, 0
        %v2651 = vsel %vm2617, 1, 0
        %v2652 = vsel %vm2618, 1, 0
        %v2653 = vsel %vm2619, 1, 0
        %v2654 = vsel %vm2620, 1, 0
        %v2655 = vsel %vm2621, 1, 0
        %v2656 = vsel %vm2622, 1, 0
        %v2657 = vsel %vm2623, 1, 0
        %v2658 = vsel %vm2624, 1, 0
        %v2659 = vsel %vm2625, 1, 0
        %v2660 = vsel %vm2626, 1, 0
        %v2661 = vsel %vm2627, 1, 0
        %v2662 = vsel %vm2628, 1, 0
        %v2663 = vsel %vm2629, 1, 0
        %v2664 = vcvt.s32.f32 %v2630
        %v2665 = vcvt.s32.f32 %v2631
        %v2666 = vcvt.s32.f32 %v2632
        %v2667 = vcvt.s32.f32 %v2633
        %v2668 = vcvt.s32.f32 %v2634
        %v2669 = vcvt.s32.f32 %v2635
        %v2670 = vcvt.s32.f32 %v2636
        %v2671 = vcvt.s32.f32 %v2637
        %v2672 = vcvt.s32.f32 %v2638
        %v2673 = vcvt.s32.f32 %v2639
        %v2674 = vcvt.s32.f32 %v2640
        %v2675 = vcvt.s32.f32 %v2641
        %v2676 = vcvt.s32.f32 %v2642
        %v2677 = vcvt.s32.f32 %v2643
        %v2678 = vcvt.s32.f32 %v2644
        %v2679 = vcvt.s32.f32 %v2645
        %v2680 = vcvt.s32.f32 %v2646
        %v2681 = vcvt.s32.f32 %v2647
        %v2682 = vcvt.s32.f32 %v2648
        %v2683 = vcvt.s32.f32 %v2649
        %v2684 = vcvt.s32.f32 %v2650
        %v2685 = vcvt.s32.f32 %v2651
        %v2686 = vcvt.s32.f32 %v2652
        %v2687 = vcvt.s32.f32 %v2653
        %v2688 = vcvt.s32.f32 %v2654
        %v2689 = vcvt.s32.f32 %v2655
        %v2690 = vcvt.s32.f32 %v2656
        %v2691 = vcvt.s32.f32 %v2657
        %v2692 = vcvt.s32.f32 %v2658
        %v2693 = vcvt.s32.f32 %v2659
        %v2694 = vcvt.s32.f32 %v2660
        %v2695 = vcvt.s32.f32 %v2661
        %v2696 = vcvt.s32.f32 %v2662
        %v2697 = vcvt.s32.f32 %v2663
        %vm2698 = vcmp.lt.f32.partialorder %v1283, 0.3
        %vm2699 = vcmp.lt.f32.partialorder %v1284, 0.3
        %vm2700 = vcmp.lt.f32.partialorder %v1285, 0.3
        %vm2701 = vcmp.lt.f32.partialorder %v1286, 0.3
        %vm2702 = vcmp.lt.f32.partialorder %v1287, 0.3
        %vm2703 = vcmp.lt.f32.partialorder %v1288, 0.3
        %vm2704 = vcmp.lt.f32.partialorder %v1289, 0.3
        %vm2705 = vcmp.lt.f32.partialorder %v1290, 0.3
        %vm2706 = vcmp.lt.f32.partialorder %v1291, 0.3
        %vm2707 = vcmp.lt.f32.partialorder %v1292, 0.3
        %vm2708 = vcmp.lt.f32.partialorder %v1293, 0.3
        %vm2709 = vcmp.lt.f32.partialorder %v1294, 0.3
        %vm2710 = vcmp.lt.f32.partialorder %v1295, 0.3
        %vm2711 = vcmp.lt.f32.partialorder %v1296, 0.3
        %vm2712 = vcmp.lt.f32.partialorder %v1297, 0.3
        %vm2713 = vcmp.lt.f32.partialorder %v1298, 0.3
        %vm2714 = vcmp.lt.f32.partialorder %v1299, 0.3
        %vm2715 = vcmp.lt.f32.partialorder %v1300, 0.3
        %vm2716 = vcmp.lt.f32.partialorder %v1301, 0.3
        %vm2717 = vcmp.lt.f32.partialorder %v1302, 0.3
        %vm2718 = vcmp.lt.f32.partialorder %v1303, 0.3
        %vm2719 = vcmp.lt.f32.partialorder %v1304, 0.3
        %vm2720 = vcmp.lt.f32.partialorder %v1305, 0.3
        %vm2721 = vcmp.lt.f32.partialorder %v1306, 0.3
        %vm2722 = vcmp.lt.f32.partialorder %v1307, 0.3
        %vm2723 = vcmp.lt.f32.partialorder %v1308, 0.3
        %vm2724 = vcmp.lt.f32.partialorder %v1309, 0.3
        %vm2725 = vcmp.lt.f32.partialorder %v1310, 0.3
        %vm2726 = vcmp.lt.f32.partialorder %v1311, 0.3
        %vm2727 = vcmp.lt.f32.partialorder %v1312, 0.3
        %vm2728 = vcmp.lt.f32.partialorder %v1313, 0.3
        %vm2729 = vcmp.lt.f32.partialorder %v1314, 0.3
        %vm2730 = vcmp.lt.f32.partialorder %v1315, 0.3
        %vm2731 = vcmp.lt.f32.partialorder %v1316, 0.3
        %v2732 = vsel %vm2698, 1, 0
        %v2733 = vsel %vm2699, 1, 0
        %v2734 = vsel %vm2700, 1, 0
        %v2735 = vsel %vm2701, 1, 0
        %v2736 = vsel %vm2702, 1, 0
        %v2737 = vsel %vm2703, 1, 0
        %v2738 = vsel %vm2704, 1, 0
        %v2739 = vsel %vm2705, 1, 0
        %v2740 = vsel %vm2706, 1, 0
        %v2741 = vsel %vm2707, 1, 0
        %v2742 = vsel %vm2708, 1, 0
        %v2743 = vsel %vm2709, 1, 0
        %v2744 = vsel %vm2710, 1, 0
        %v2745 = vsel %vm2711, 1, 0
        %v2746 = vsel %vm2712, 1, 0
        %v2747 = vsel %vm2713, 1, 0
        %v2748 = vsel %vm2714, 1, 0
        %v2749 = vsel %vm2715, 1, 0
        %v2750 = vsel %vm2716, 1, 0
        %v2751 = vsel %vm2717, 1, 0
        %v2752 = vsel %vm2718, 1, 0
        %v2753 = vsel %vm2719, 1, 0
        %v2754 = vsel %vm2720, 1, 0
        %v2755 = vsel %vm2721, 1, 0
        %v2756 = vsel %vm2722, 1, 0
        %v2757 = vsel %vm2723, 1, 0
        %v2758 = vsel %vm2724, 1, 0
        %v2759 = vsel %vm2725, 1, 0
        %v2760 = vsel %vm2726, 1, 0
        %v2761 = vsel %vm2727, 1, 0
        %v2762 = vsel %vm2728, 1, 0
        %v2763 = vsel %vm2729, 1, 0
        %v2764 = vsel %vm2730, 1, 0
        %v2765 = vsel %vm2731, 1, 0
        %v2766 = vcvt.s32.f32 %v2732
        %v2767 = vcvt.s32.f32 %v2733
        %v2768 = vcvt.s32.f32 %v2734
        %v2769 = vcvt.s32.f32 %v2735
        %v2770 = vcvt.s32.f32 %v2736
        %v2771 = vcvt.s32.f32 %v2737
        %v2772 = vcvt.s32.f32 %v2738
        %v2773 = vcvt.s32.f32 %v2739
        %v2774 = vcvt.s32.f32 %v2740
        %v2775 = vcvt.s32.f32 %v2741
        %v2776 = vcvt.s32.f32 %v2742
        %v2777 = vcvt.s32.f32 %v2743
        %v2778 = vcvt.s32.f32 %v2744
        %v2779 = vcvt.s32.f32 %v2745
        %v2780 = vcvt.s32.f32 %v2746
        %v2781 = vcvt.s32.f32 %v2747
        %v2782 = vcvt.s32.f32 %v2748
        %v2783 = vcvt.s32.f32 %v2749
        %v2784 = vcvt.s32.f32 %v2750
        %v2785 = vcvt.s32.f32 %v2751
        %v2786 = vcvt.s32.f32 %v2752
        %v2787 = vcvt.s32.f32 %v2753
        %v2788 = vcvt.s32.f32 %v2754
        %v2789 = vcvt.s32.f32 %v2755
        %v2790 = vcvt.s32.f32 %v2756
        %v2791 = vcvt.s32.f32 %v2757
        %v2792 = vcvt.s32.f32 %v2758
        %v2793 = vcvt.s32.f32 %v2759
        %v2794 = vcvt.s32.f32 %v2760
        %v2795 = vcvt.s32.f32 %v2761
        %v2796 = vcvt.s32.f32 %v2762
        %v2797 = vcvt.s32.f32 %v2763
        %v2798 = vcvt.s32.f32 %v2764
        %v2799 = vcvt.s32.f32 %v2765
        %v2800 = vsel %vm404, %v2664, 0.0
        %v2801 = vsel %vm404, %v2665, 0.0
        %v2802 = vsel %vm405, %v2666, 0.0
        %v2803 = vsel %vm405, %v2667, 0.0
        %v2804 = vsel %vm406, %v2668, 0.0
        %v2805 = vsel %vm406, %v2669, 0.0
        %v2806 = vsel %vm407, %v2670, 0.0
        %v2807 = vsel %vm407, %v2671, 0.0
        %v2808 = vsel %vm408, %v2672, 0.0
        %v2809 = vsel %vm408, %v2673, 0.0
        %v2810 = vsel %vm409, %v2674, 0.0
        %v2811 = vsel %vm409, %v2675, 0.0
        %v2812 = vsel %vm410, %v2676, 0.0
        %v2813 = vsel %vm410, %v2677, 0.0
        %v2814 = vsel %vm411, %v2678, 0.0
        %v2815 = vsel %vm411, %v2679, 0.0
        %v2816 = vsel %vm412, %v2680, 0.0
        %v2817 = vsel %vm412, %v2681, 0.0
        %v2818 = vsel %vm413, %v2682, 0.0
        %v2819 = vsel %vm413, %v2683, 0.0
        %v2820 = vsel %vm414, %v2684, 0.0
        %v2821 = vsel %vm414, %v2685, 0.0
        %v2822 = vsel %vm415, %v2686, 0.0
        %v2823 = vsel %vm415, %v2687, 0.0
        %v2824 = vsel %vm416, %v2688, 0.0
        %v2825 = vsel %vm416, %v2689, 0.0
        %v2826 = vsel %vm417, %v2690, 0.0
        %v2827 = vsel %vm417, %v2691, 0.0
        %v2828 = vsel %vm418, %v2692, 0.0
        %v2829 = vsel %vm418, %v2693, 0.0
        %v2830 = vsel %vm419, %v2694, 0.0
        %v2831 = vsel %vm419, %v2695, 0.0
        %v2832 = vsel %vm420, %v2696, 0.0
        %v2833 = vsel %vm420, %v2697, 0.0
        %v2834 = vadd.f32 %v2800, %v2802
        %v2835 = vadd.f32 %v2834, %v2804
        %v2836 = vadd.f32 %v2835, %v2806
        %v2837 = vadd.f32 %v2836, %v2808
        %v2838 = vadd.f32 %v2837, %v2810
        %v2839 = vadd.f32 %v2838, %v2812
        %v2840 = vadd.f32 %v2839, %v2814
        %v2841 = vadd.f32 %v2840, %v2816
        %v2842 = vadd.f32 %v2841, %v2818
        %v2843 = vadd.f32 %v2842, %v2820
        %v2844 = vadd.f32 %v2843, %v2822
        %v2845 = vadd.f32 %v2844, %v2824
        %v2846 = vadd.f32 %v2845, %v2826
        %v2847 = vadd.f32 %v2846, %v2828
        %v2848 = vadd.f32 %v2847, %v2830
        %v2849 = vsel %vm895, %v2832, 0.0
        %v2850 = vadd.f32 %v2848, %v2849
        %v2851 = vrot.slane %v2850, 4
        %v2852 = vadd.f32 %v2850, %v2851
        %v2853 = vrot.slane %v2852, 2
        %v2854 = vadd.f32 %v2852, %v2853
        %v2855 = vrot.slane %v2854, 1
        %v2856 = vadd.f32 %v2854, %v2855
        %v2857 = vadd.f32 %v2801, %v2803
        %v2858 = vadd.f32 %v2857, %v2805
        %v2859 = vadd.f32 %v2858, %v2807
        %v2860 = vadd.f32 %v2859, %v2809
        %v2861 = vadd.f32 %v2860, %v2811
        %v2862 = vadd.f32 %v2861, %v2813
        %v2863 = vadd.f32 %v2862, %v2815
        %v2864 = vadd.f32 %v2863, %v2817
        %v2865 = vadd.f32 %v2864, %v2819
        %v2866 = vadd.f32 %v2865, %v2821
        %v2867 = vadd.f32 %v2866, %v2823
        %v2868 = vadd.f32 %v2867, %v2825
        %v2869 = vadd.f32 %v2868, %v2827
        %v2870 = vadd.f32 %v2869, %v2829
        %v2871 = vadd.f32 %v2870, %v2831
        %v2872 = vsel %vm895, %v2833, 0.0
        %v2873 = vadd.f32 %v2871, %v2872
        %v2874 = vrot.slane %v2873, 4
        %v2875 = vadd.f32 %v2873, %v2874
        %v2876 = vrot.slane %v2875, 2
        %v2877 = vadd.f32 %v2875, %v2876
        %v2878 = vrot.slane %v2877, 1
        %v2879 = vadd.f32 %v2877, %v2878
        %v2880 = vadd.f32 %v2664, %v2666
        %v2881 = vadd.f32 %v2880, %v2668
        %v2882 = vadd.f32 %v2881, %v2670
        %v2883 = vadd.f32 %v2882, %v2672
        %v2884 = vadd.f32 %v2883, %v2674
        %v2885 = vadd.f32 %v2884, %v2676
        %v2886 = vadd.f32 %v2885, %v2678
        %v2887 = vadd.f32 %v2886, %v2680
        %v2888 = vadd.f32 %v2887, %v2682
        %v2889 = vadd.f32 %v2888, %v2684
        %v2890 = vadd.f32 %v2889, %v2686
        %v2891 = vadd.f32 %v2890, %v2688
        %v2892 = vadd.f32 %v2891, %v2690
        %v2893 = vadd.f32 %v2892, %v2692
        %v2894 = vadd.f32 %v2893, %v2694
        %v2895 = vsel %vm895, %v2696, 0.0
        %v2896 = vadd.f32 %v2894, %v2895
        %v2897 = vrot.slane %v2896, 4
        %v2898 = vadd.f32 %v2896, %v2897
        %v2899 = vrot.slane %v2898, 2
        %v2900 = vadd.f32 %v2898, %v2899
        %v2901 = vrot.slane %v2900, 1
        %v2902 = vadd.f32 %v2900, %v2901
        %v2903 = vadd.f32 %v2665, %v2667
        %v2904 = vadd.f32 %v2903, %v2669
        %v2905 = vadd.f32 %v2904, %v2671
        %v2906 = vadd.f32 %v2905, %v2673
        %v2907 = vadd.f32 %v2906, %v2675
        %v2908 = vadd.f32 %v2907, %v2677
        %v2909 = vadd.f32 %v2908, %v2679
        %v2910 = vadd.f32 %v2909, %v2681
        %v2911 = vadd.f32 %v2910, %v2683
        %v2912 = vadd.f32 %v2911, %v2685
        %v2913 = vadd.f32 %v2912, %v2687
        %v2914 = vadd.f32 %v2913, %v2689
        %v2915 = vadd.f32 %v2914, %v2691
        %v2916 = vadd.f32 %v2915, %v2693
        %v2917 = vadd.f32 %v2916, %v2695
        %v2918 = vsel %vm895, %v2697, 0.0
        %v2919 = vadd.f32 %v2917, %v2918
        %v2920 = vrot.slane %v2919, 4
        %v2921 = vadd.f32 %v2919, %v2920
        %v2922 = vrot.slane %v2921, 2
        %v2923 = vadd.f32 %v2921, %v2922
        %v2924 = vrot.slane %v2923, 1
        %v2925 = vadd.f32 %v2923, %v2924
        %v2926 = vsub.f32 %v2902, %v2856
        %v2927 = vsub.f32 %v2925, %v2879
        %v2928 = vsel %vm404, %v2766, 0.0
        %v2929 = vsel %vm404, %v2767, 0.0
        %v2930 = vsel %vm405, %v2768, 0.0
        %v2931 = vsel %vm405, %v2769, 0.0
        %v2932 = vsel %vm406, %v2770, 0.0
        %v2933 = vsel %vm406, %v2771, 0.0
        %v2934 = vsel %vm407, %v2772, 0.0
        %v2935 = vsel %vm407, %v2773, 0.0
        %v2936 = vsel %vm408, %v2774, 0.0
        %v2937 = vsel %vm408, %v2775, 0.0
        %v2938 = vsel %vm409, %v2776, 0.0
        %v2939 = vsel %vm409, %v2777, 0.0
        %v2940 = vsel %vm410, %v2778, 0.0
        %v2941 = vsel %vm410, %v2779, 0.0
        %v2942 = vsel %vm411, %v2780, 0.0
        %v2943 = vsel %vm411, %v2781, 0.0
        %v2944 = vsel %vm412, %v2782, 0.0
        %v2945 = vsel %vm412, %v2783, 0.0
        %v2946 = vsel %vm413, %v2784, 0.0
        %v2947 = vsel %vm413, %v2785, 0.0
        %v2948 = vsel %vm414, %v2786, 0.0
        %v2949 = vsel %vm414, %v2787, 0.0
        %v2950 = vsel %vm415, %v2788, 0.0
        %v2951 = vsel %vm415, %v2789, 0.0
        %v2952 = vsel %vm416, %v2790, 0.0
        %v2953 = vsel %vm416, %v2791, 0.0
        %v2954 = vsel %vm417, %v2792, 0.0
        %v2955 = vsel %vm417, %v2793, 0.0
        %v2956 = vsel %vm418, %v2794, 0.0
        %v2957 = vsel %vm418, %v2795, 0.0
        %v2958 = vsel %vm419, %v2796, 0.0
        %v2959 = vsel %vm419, %v2797, 0.0
        %v2960 = vsel %vm420, %v2798, 0.0
        %v2961 = vsel %vm420, %v2799, 0.0
        %v2962 = vadd.f32 %v2928, %v2930
        %v2963 = vadd.f32 %v2962, %v2932
        %v2964 = vadd.f32 %v2963, %v2934
        %v2965 = vadd.f32 %v2964, %v2936
        %v2966 = vadd.f32 %v2965, %v2938
        %v2967 = vadd.f32 %v2966, %v2940
        %v2968 = vadd.f32 %v2967, %v2942
        %v2969 = vadd.f32 %v2968, %v2944
        %v2970 = vadd.f32 %v2969, %v2946
        %v2971 = vadd.f32 %v2970, %v2948
        %v2972 = vadd.f32 %v2971, %v2950
        %v2973 = vadd.f32 %v2972, %v2952
        %v2974 = vadd.f32 %v2973, %v2954
        %v2975 = vadd.f32 %v2974, %v2956
        %v2976 = vadd.f32 %v2975, %v2958
        %v2977 = vsel %vm895, %v2960, 0.0
        %v2978 = vadd.f32 %v2976, %v2977
        %v2979 = vrot.slane %v2978, 4
        %v2980 = vadd.f32 %v2978, %v2979
        %v2981 = vrot.slane %v2980, 2
        %v2982 = vadd.f32 %v2980, %v2981
        %v2983 = vrot.slane %v2982, 1
        %v2984 = vadd.f32 %v2982, %v2983
        %v2985 = vadd.f32 %v2929, %v2931
        %v2986 = vadd.f32 %v2985, %v2933
        %v2987 = vadd.f32 %v2986, %v2935
        %v2988 = vadd.f32 %v2987, %v2937
        %v2989 = vadd.f32 %v2988, %v2939
        %v2990 = vadd.f32 %v2989, %v2941
        %v2991 = vadd.f32 %v2990, %v2943
        %v2992 = vadd.f32 %v2991, %v2945
        %v2993 = vadd.f32 %v2992, %v2947
        %v2994 = vadd.f32 %v2993, %v2949
        %v2995 = vadd.f32 %v2994, %v2951
        %v2996 = vadd.f32 %v2995, %v2953
        %v2997 = vadd.f32 %v2996, %v2955
        %v2998 = vadd.f32 %v2997, %v2957
        %v2999 = vadd.f32 %v2998, %v2959
        %v3000 = vsel %vm895, %v2961, 0.0
        %v3001 = vadd.f32 %v2999, %v3000
        %v3002 = vrot.slane %v3001, 4
        %v3003 = vadd.f32 %v3001, %v3002
        %v3004 = vrot.slane %v3003, 2
        %v3005 = vadd.f32 %v3003, %v3004
        %v3006 = vrot.slane %v3005, 1
        %v3007 = vadd.f32 %v3005, %v3006
        %v3008 = vadd.f32 %v2766, %v2768
        %v3009 = vadd.f32 %v3008, %v2770
        %v3010 = vadd.f32 %v3009, %v2772
        %v3011 = vadd.f32 %v3010, %v2774
        %v3012 = vadd.f32 %v3011, %v2776
        %v3013 = vadd.f32 %v3012, %v2778
        %v3014 = vadd.f32 %v3013, %v2780
        %v3015 = vadd.f32 %v3014, %v2782
        %v3016 = vadd.f32 %v3015, %v2784
        %v3017 = vadd.f32 %v3016, %v2786
        %v3018 = vadd.f32 %v3017, %v2788
        %v3019 = vadd.f32 %v3018, %v2790
        %v3020 = vadd.f32 %v3019, %v2792
        %v3021 = vadd.f32 %v3020, %v2794
        %v3022 = vadd.f32 %v3021, %v2796
        %v3023 = vsel %vm895, %v2798, 0.0
        %v3024 = vadd.f32 %v3022, %v3023
        %v3025 = vrot.slane %v3024, 4
        %v3026 = vadd.f32 %v3024, %v3025
        %v3027 = vrot.slane %v3026, 2
        %v3028 = vadd.f32 %v3026, %v3027
        %v3029 = vrot.slane %v3028, 1
        %v3030 = vadd.f32 %v3028, %v3029
        %v3031 = vadd.f32 %v2767, %v2769
        %v3032 = vadd.f32 %v3031, %v2771
        %v3033 = vadd.f32 %v3032, %v2773
        %v3034 = vadd.f32 %v3033, %v2775
        %v3035 = vadd.f32 %v3034, %v2777
        %v3036 = vadd.f32 %v3035, %v2779
        %v3037 = vadd.f32 %v3036, %v2781
        %v3038 = vadd.f32 %v3037, %v2783
        %v3039 = vadd.f32 %v3038, %v2785
        %v3040 = vadd.f32 %v3039, %v2787
        %v3041 = vadd.f32 %v3040, %v2789
        %v3042 = vadd.f32 %v3041, %v2791
        %v3043 = vadd.f32 %v3042, %v2793
        %v3044 = vadd.f32 %v3043, %v2795
        %v3045 = vadd.f32 %v3044, %v2797
        %v3046 = vsel %vm895, %v2799, 0.0
        %v3047 = vadd.f32 %v3045, %v3046
        %v3048 = vrot.slane %v3047, 4
        %v3049 = vadd.f32 %v3047, %v3048
        %v3050 = vrot.slane %v3049, 2
        %v3051 = vadd.f32 %v3049, %v3050
        %v3052 = vrot.slane %v3051, 1
        %v3053 = vadd.f32 %v3051, %v3052
        %v3054 = vsub.f32 %v3030, %v2984
        %v3055 = vsub.f32 %v3053, %v3007
        %v3056 = vsel %vm404, %v2528, 0.0
        %v3057 = vsel %vm404, %v2529, 0.0
        %v3058 = vsel %vm405, %v2530, 0.0
        %v3059 = vsel %vm405, %v2531, 0.0
        %v3060 = vsel %vm406, %v2532, 0.0
        %v3061 = vsel %vm406, %v2533, 0.0
        %v3062 = vsel %vm407, %v2534, 0.0
        %v3063 = vsel %vm407, %v2535, 0.0
        %v3064 = vsel %vm408, %v2536, 0.0
        %v3065 = vsel %vm408, %v2537, 0.0
        %v3066 = vsel %vm409, %v2538, 0.0
        %v3067 = vsel %vm409, %v2539, 0.0
        %v3068 = vsel %vm410, %v2540, 0.0
        %v3069 = vsel %vm410, %v2541, 0.0
        %v3070 = vsel %vm411, %v2542, 0.0
        %v3071 = vsel %vm411, %v2543, 0.0
        %v3072 = vsel %vm412, %v2544, 0.0
        %v3073 = vsel %vm412, %v2545, 0.0
        %v3074 = vsel %vm413, %v2546, 0.0
        %v3075 = vsel %vm413, %v2547, 0.0
        %v3076 = vsel %vm414, %v2548, 0.0
        %v3077 = vsel %vm414, %v2549, 0.0
        %v3078 = vsel %vm415, %v2550, 0.0
        %v3079 = vsel %vm415, %v2551, 0.0
        %v3080 = vsel %vm416, %v2552, 0.0
        %v3081 = vsel %vm416, %v2553, 0.0
        %v3082 = vsel %vm417, %v2554, 0.0
        %v3083 = vsel %vm417, %v2555, 0.0
        %v3084 = vsel %vm418, %v2556, 0.0
        %v3085 = vsel %vm418, %v2557, 0.0
        %v3086 = vsel %vm419, %v2558, 0.0
        %v3087 = vsel %vm419, %v2559, 0.0
        %v3088 = vsel %vm420, %v2560, 0.0
        %v3089 = vsel %vm420, %v2561, 0.0
        %v3090 = vadd.f32 %v3056, %v3058
        %v3091 = vadd.f32 %v3090, %v3060
        %v3092 = vadd.f32 %v3091, %v3062
        %v3093 = vadd.f32 %v3092, %v3064
        %v3094 = vadd.f32 %v3093, %v3066
        %v3095 = vadd.f32 %v3094, %v3068
        %v3096 = vadd.f32 %v3095, %v3070
        %v3097 = vadd.f32 %v3096, %v3072
        %v3098 = vadd.f32 %v3097, %v3074
        %v3099 = vadd.f32 %v3098, %v3076
        %v3100 = vadd.f32 %v3099, %v3078
        %v3101 = vadd.f32 %v3100, %v3080
        %v3102 = vadd.f32 %v3101, %v3082
        %v3103 = vadd.f32 %v3102, %v3084
        %v3104 = vadd.f32 %v3103, %v3086
        %v3105 = vsel %vm895, %v3088, 0.0
        %v3106 = vadd.f32 %v3104, %v3105
        %v3107 = vrot.slane %v3106, 4
        %v3108 = vadd.f32 %v3106, %v3107
        %v3109 = vrot.slane %v3108, 2
        %v3110 = vadd.f32 %v3108, %v3109
        %v3111 = vrot.slane %v3110, 1
        %v3112 = vadd.f32 %v3110, %v3111
        %v3113 = vadd.f32 %v3057, %v3059
        %v3114 = vadd.f32 %v3113, %v3061
        %v3115 = vadd.f32 %v3114, %v3063
        %v3116 = vadd.f32 %v3115, %v3065
        %v3117 = vadd.f32 %v3116, %v3067
        %v3118 = vadd.f32 %v3117, %v3069
        %v3119 = vadd.f32 %v3118, %v3071
        %v3120 = vadd.f32 %v3119, %v3073
        %v3121 = vadd.f32 %v3120, %v3075
        %v3122 = vadd.f32 %v3121, %v3077
        %v3123 = vadd.f32 %v3122, %v3079
        %v3124 = vadd.f32 %v3123, %v3081
        %v3125 = vadd.f32 %v3124, %v3083
        %v3126 = vadd.f32 %v3125, %v3085
        %v3127 = vadd.f32 %v3126, %v3087
        %v3128 = vsel %vm895, %v3089, 0.0
        %v3129 = vadd.f32 %v3127, %v3128
        %v3130 = vrot.slane %v3129, 4
        %v3131 = vadd.f32 %v3129, %v3130
        %v3132 = vrot.slane %v3131, 2
        %v3133 = vadd.f32 %v3131, %v3132
        %v3134 = vrot.slane %v3133, 1
        %v3135 = vadd.f32 %v3133, %v3134
        %v3136 = vadd.f32 %v2528, %v2530
        %v3137 = vadd.f32 %v3136, %v2532
        %v3138 = vadd.f32 %v3137, %v2534
        %v3139 = vadd.f32 %v3138, %v2536
        %v3140 = vadd.f32 %v3139, %v2538
        %v3141 = vadd.f32 %v3140, %v2540
        %v3142 = vadd.f32 %v3141, %v2542
        %v3143 = vadd.f32 %v3142, %v2544
        %v3144 = vadd.f32 %v3143, %v2546
        %v3145 = vadd.f32 %v3144, %v2548
        %v3146 = vadd.f32 %v3145, %v2550
        %v3147 = vadd.f32 %v3146, %v2552
        %v3148 = vadd.f32 %v3147, %v2554
        %v3149 = vadd.f32 %v3148, %v2556
        %v3150 = vadd.f32 %v3149, %v2558
        %v3151 = vsel %vm895, %v2560, 0.0
        %v3152 = vadd.f32 %v3150, %v3151
        %v3153 = vrot.slane %v3152, 4
        %v3154 = vadd.f32 %v3152, %v3153
        %v3155 = vrot.slane %v3154, 2
        %v3156 = vadd.f32 %v3154, %v3155
        %v3157 = vrot.slane %v3156, 1
        %v3158 = vadd.f32 %v3156, %v3157
        %v3159 = vadd.f32 %v2529, %v2531
        %v3160 = vadd.f32 %v3159, %v2533
        %v3161 = vadd.f32 %v3160, %v2535
        %v3162 = vadd.f32 %v3161, %v2537
        %v3163 = vadd.f32 %v3162, %v2539
        %v3164 = vadd.f32 %v3163, %v2541
        %v3165 = vadd.f32 %v3164, %v2543
        %v3166 = vadd.f32 %v3165, %v2545
        %v3167 = vadd.f32 %v3166, %v2547
        %v3168 = vadd.f32 %v3167, %v2549
        %v3169 = vadd.f32 %v3168, %v2551
        %v3170 = vadd.f32 %v3169, %v2553
        %v3171 = vadd.f32 %v3170, %v2555
        %v3172 = vadd.f32 %v3171, %v2557
        %v3173 = vadd.f32 %v3172, %v2559
        %v3174 = vsel %vm895, %v2561, 0.0
        %v3175 = vadd.f32 %v3173, %v3174
        %v3176 = vrot.slane %v3175, 4
        %v3177 = vadd.f32 %v3175, %v3176
        %v3178 = vrot.slane %v3177, 2
        %v3179 = vadd.f32 %v3177, %v3178
        %v3180 = vrot.slane %v3179, 1
        %v3181 = vadd.f32 %v3179, %v3180
        %v3182 = vsub.f32 %v3158, %v3112
        %v3183 = vsub.f32 %v3181, %v3135
        %v3184 = vsel %vm404, %v2562, 0.0
        %v3185 = vsel %vm404, %v2563, 0.0
        %v3186 = vsel %vm405, %v2564, 0.0
        %v3187 = vsel %vm405, %v2565, 0.0
        %v3188 = vsel %vm406, %v2566, 0.0
        %v3189 = vsel %vm406, %v2567, 0.0
        %v3190 = vsel %vm407, %v2568, 0.0
        %v3191 = vsel %vm407, %v2569, 0.0
        %v3192 = vsel %vm408, %v2570, 0.0
        %v3193 = vsel %vm408, %v2571, 0.0
        %v3194 = vsel %vm409, %v2572, 0.0
        %v3195 = vsel %vm409, %v2573, 0.0
        %v3196 = vsel %vm410, %v2574, 0.0
        %v3197 = vsel %vm410, %v2575, 0.0
        %v3198 = vsel %vm411, %v2576, 0.0
        %v3199 = vsel %vm411, %v2577, 0.0
        %v3200 = vsel %vm412, %v2578, 0.0
        %v3201 = vsel %vm412, %v2579, 0.0
        %v3202 = vsel %vm413, %v2580, 0.0
        %v3203 = vsel %vm413, %v2581, 0.0
        %v3204 = vsel %vm414, %v2582, 0.0
        %v3205 = vsel %vm414, %v2583, 0.0
        %v3206 = vsel %vm415, %v2584, 0.0
        %v3207 = vsel %vm415, %v2585, 0.0
        %v3208 = vsel %vm416, %v2586, 0.0
        %v3209 = vsel %vm416, %v2587, 0.0
        %v3210 = vsel %vm417, %v2588, 0.0
        %v3211 = vsel %vm417, %v2589, 0.0
        %v3212 = vsel %vm418, %v2590, 0.0
        %v3213 = vsel %vm418, %v2591, 0.0
        %v3214 = vsel %vm419, %v2592, 0.0
        %v3215 = vsel %vm419, %v2593, 0.0
        %v3216 = vsel %vm420, %v2594, 0.0
        %v3217 = vsel %vm420, %v2595, 0.0
        %v3218 = vadd.f32 %v3184, %v3186
        %v3219 = vadd.f32 %v3218, %v3188
        %v3220 = vadd.f32 %v3219, %v3190
        %v3221 = vadd.f32 %v3220, %v3192
        %v3222 = vadd.f32 %v3221, %v3194
        %v3223 = vadd.f32 %v3222, %v3196
        %v3224 = vadd.f32 %v3223, %v3198
        %v3225 = vadd.f32 %v3224, %v3200
        %v3226 = vadd.f32 %v3225, %v3202
        %v3227 = vadd.f32 %v3226, %v3204
        %v3228 = vadd.f32 %v3227, %v3206
        %v3229 = vadd.f32 %v3228, %v3208
        %v3230 = vadd.f32 %v3229, %v3210
        %v3231 = vadd.f32 %v3230, %v3212
        %v3232 = vadd.f32 %v3231, %v3214
        %v3233 = vsel %vm895, %v3216, 0.0
        %v3234 = vadd.f32 %v3232, %v3233
        %v3235 = vrot.slane %v3234, 4
        %v3236 = vadd.f32 %v3234, %v3235
        %v3237 = vrot.slane %v3236, 2
        %v3238 = vadd.f32 %v3236, %v3237
        %v3239 = vrot.slane %v3238, 1
        %v3240 = vadd.f32 %v3238, %v3239
        %v3241 = vadd.f32 %v3185, %v3187
        %v3242 = vadd.f32 %v3241, %v3189
        %v3243 = vadd.f32 %v3242, %v3191
        %v3244 = vadd.f32 %v3243, %v3193
        %v3245 = vadd.f32 %v3244, %v3195
        %v3246 = vadd.f32 %v3245, %v3197
        %v3247 = vadd.f32 %v3246, %v3199
        %v3248 = vadd.f32 %v3247, %v3201
        %v3249 = vadd.f32 %v3248, %v3203
        %v3250 = vadd.f32 %v3249, %v3205
        %v3251 = vadd.f32 %v3250, %v3207
        %v3252 = vadd.f32 %v3251, %v3209
        %v3253 = vadd.f32 %v3252, %v3211
        %v3254 = vadd.f32 %v3253, %v3213
        %v3255 = vadd.f32 %v3254, %v3215
        %v3256 = vsel %vm895, %v3217, 0.0
        %v3257 = vadd.f32 %v3255, %v3256
        %v3258 = vrot.slane %v3257, 4
        %v3259 = vadd.f32 %v3257, %v3258
        %v3260 = vrot.slane %v3259, 2
        %v3261 = vadd.f32 %v3259, %v3260
        %v3262 = vrot.slane %v3261, 1
        %v3263 = vadd.f32 %v3261, %v3262
        %v3264 = vadd.f32 %v2562, %v2564
        %v3265 = vadd.f32 %v3264, %v2566
        %v3266 = vadd.f32 %v3265, %v2568
        %v3267 = vadd.f32 %v3266, %v2570
        %v3268 = vadd.f32 %v3267, %v2572
        %v3269 = vadd.f32 %v3268, %v2574
        %v3270 = vadd.f32 %v3269, %v2576
        %v3271 = vadd.f32 %v3270, %v2578
        %v3272 = vadd.f32 %v3271, %v2580
        %v3273 = vadd.f32 %v3272, %v2582
        %v3274 = vadd.f32 %v3273, %v2584
        %v3275 = vadd.f32 %v3274, %v2586
        %v3276 = vadd.f32 %v3275, %v2588
        %v3277 = vadd.f32 %v3276, %v2590
        %v3278 = vadd.f32 %v3277, %v2592
        %v3279 = vsel %vm895, %v2594, 0.0
        %v3280 = vadd.f32 %v3278, %v3279
        %v3281 = vrot.slane %v3280, 4
        %v3282 = vadd.f32 %v3280, %v3281
        %v3283 = vrot.slane %v3282, 2
        %v3284 = vadd.f32 %v3282, %v3283
        %v3285 = vrot.slane %v3284, 1
        %v3286 = vadd.f32 %v3284, %v3285
        %v3287 = vadd.f32 %v2563, %v2565
        %v3288 = vadd.f32 %v3287, %v2567
        %v3289 = vadd.f32 %v3288, %v2569
        %v3290 = vadd.f32 %v3289, %v2571
        %v3291 = vadd.f32 %v3290, %v2573
        %v3292 = vadd.f32 %v3291, %v2575
        %v3293 = vadd.f32 %v3292, %v2577
        %v3294 = vadd.f32 %v3293, %v2579
        %v3295 = vadd.f32 %v3294, %v2581
        %v3296 = vadd.f32 %v3295, %v2583
        %v3297 = vadd.f32 %v3296, %v2585
        %v3298 = vadd.f32 %v3297, %v2587
        %v3299 = vadd.f32 %v3298, %v2589
        %v3300 = vadd.f32 %v3299, %v2591
        %v3301 = vadd.f32 %v3300, %v2593
        %v3302 = vsel %vm895, %v2595, 0.0
        %v3303 = vadd.f32 %v3301, %v3302
        %v3304 = vrot.slane %v3303, 4
        %v3305 = vadd.f32 %v3303, %v3304
        %v3306 = vrot.slane %v3305, 2
        %v3307 = vadd.f32 %v3305, %v3306
        %v3308 = vrot.slane %v3307, 1
        %v3309 = vadd.f32 %v3307, %v3308
        %v3310 = vsub.f32 %v3286, %v3240
        %v3311 = vsub.f32 %v3309, %v3263
        %vm3312 = vcmp.eq.f32.partialorder %v2856, 1.0
        %vm3313 = vcmp.eq.f32.partialorder %v2879, 1.0
        %vm3314 = vcmp.eq.f32.partialorder %v2984, 107.0
        %vm3315 = vcmp.eq.f32.partialorder %v3007, 107.0
        %vm3316 = vmand %vm3312, %vm3314
        %vm3317 = vmand %vm3313, %vm3315
        %v3318 = vsel %vm3316, 1, 0
        %v3319 = vsel %vm3317, 1, 0
        %v3320 = vcvt.s32.f32 %v3318
        %v3321 = vcvt.s32.f32 %v3319
        %vm3322 = vcmp.eq.f32.partialorder %v2926, 1.0
        %vm3323 = vcmp.eq.f32.partialorder %v2927, 1.0
        %vm3324 = vcmp.eq.f32.partialorder %v3054, 20.0
        %vm3325 = vcmp.eq.f32.partialorder %v3055, 20.0
        %vm3326 = vmand %vm3322, %vm3324
        %vm3327 = vmand %vm3323, %vm3325
        %v3328 = vsel %vm3326, 1, 0
        %v3329 = vsel %vm3327, 1, 0
        %v3330 = vcvt.s32.f32 %v3328
        %v3331 = vcvt.s32.f32 %v3329
        %v3332 = vsub.f32 1.0, %v3320
        %v3333 = vsub.f32 1.0, %v3321
        %v3334 = vmul.f32 %v3332, %v307
        %v3335 = vmul.f32 %v3333, %v308
        %v3336 = vsub.f32 1.0, %v3330
        %v3337 = vsub.f32 1.0, %v3331
        %v3338 = vmul.f32 %v3336, %v307
        %v3339 = vmul.f32 %v3337, %v308
        %v3340 = vmul.f32 %v3112, %v3112
        %v3341 = vmul.f32 %v3135, %v3135
        %v3342 = vsub.f32 %v3340, %v3240
        %v3343 = vsub.f32 %v3341, %v3263
        %v3344 = vmul.f32 %v3334, %v3342
        %v3345 = vmul.f32 %v3335, %v3343
        %v3346 = vmul.f32 %v3182, %v3182
        %v3347 = vmul.f32 %v3183, %v3183
        %v3348 = vsub.f32 %v3346, %v3310
        %v3349 = vsub.f32 %v3347, %v3311
        %v3350 = vmul.f32 %v3338, %v3348
        %v3351 = vmul.f32 %v3339, %v3349
        %v3354 = vrot.slane %v323, 7
        %v3355 = vrot.slane %v324, 7
        %v3360 = vrot.slane %v2492, 1
        %v3361 = vrot.slane %v2493, 1
        %v3364 = vsel %vm895, %v1145, %v3354
        %v3365 = vsel %vm895, %v1146, %v3355
        %v3366 = vsel %vm1881, %v3364, %v1826
        %v3367 = vsel %vm1881, %v3365, %v1827
        %v3368 = vsel %vm2372, %v3366, %v3360
        %v3369 = vsel %vm2372, %v3367, %v3361
        %v3370 = vsel %vm2050, %v3368, %v3344
        %v3371 = vsel %vm2050, %v3369, %v3345
        %v3372 = vsel %vm2013, %v3370, %v3334
        %v3373 = vsel %vm2013, %v3371, %v3335
        %v3374 = vsel %vm2136, %v3372, %v3350
        %v3375 = vsel %vm2136, %v3373, %v3351
        %vm3376 = vcmask 1046528
        %v3377 = vsel %vm3376, %v3374, %v3338
        %v3378 = vsel %vm3376, %v3375, %v3339
        %3379 = vst [vmem:[%s265] sm:$0xff] %v3377
        %3380 = vst [vmem:[%s265 + $0x8] sm:$0xff] %v3378
        %s3381 = sand.u32 %s145, 1
        %s3382 = scalar_lea.sflag [#allocation3], %s3381
        %s3383 = sand.u32 %s145, 1
        %s3384 = smul.addr %s3383, 16
        %s3385 = scalar_lea.vmem [#allocation2], %s3384
        // Predicated region
        $region37: #{tpu_custom_call.1} parent=35 // pred_check
          %p3386 = pneg %p155
        $region38: #{tpu_custom_call.1} parent=35 // pred_check_branch
          %3388 = sbr.rel (%p3386) target = $region40
        $region39: #{tpu_custom_call.1} parent=35 // pred_region
          %s3390 = ssub.s32 256, 256
          %3391 = vsyncadd %s3382, %s3390
          %s3392 = smul.addr %s23, 2
          %s3393 = smul.addr %s22, 2
          %s3394 = sadd.s32 %s3392, %s3393
          %s3395 = smul.addr %s3394, 128
          %s3396 = scalar_lea.hbm %s4, %s3395
          %s3398 = sshll.u32 %s3385, 4
          %s3399 = int_to_ptr.vmem [resolvable:$true] %s3398
          %3401 = dma.vmem_to_hbm [thread:$0]  %s3399, 256, %s3396, %s3382
        $region40: #{tpu_custom_call.1} parent=35 // pred_fallthru
          _
      $region36: #{tpu_custom_call.1} parent=5 // pred_fallthru
        _
      %p3402 = scmp.le.s32.totalorder 2, %s13
      // Predicated region
      $region41: #{tpu_custom_call.1} parent=5 // pred_check
        %p3403 = pneg %p3402
      $region42: #{tpu_custom_call.1} parent=5 // pred_check_branch
        %3405 = sbr.rel (%p3403) target = $region44
      $region43: #{tpu_custom_call.1} parent=5 // pred_region
        %s3406 = ssub.s32 %s13, 2
        // Predicated region
        $region45: #{tpu_custom_call.1} parent=43 // pred_check
          %p3407 = pneg %p161
        $region46: #{tpu_custom_call.1} parent=43 // pred_check_branch
          %3409 = sbr.rel (%p3407) target = $region48
        $region47: #{tpu_custom_call.1} parent=43 // pred_region
          %s3410 = sand.u32 %s146, 1
          %s3411 = scalar_lea.sflag [#allocation3], %s3410
          %s3412 = sand.u32 %s146, 1
          %s3413 = smul.addr %s3412, 16
          %s3414 = scalar_lea.vmem [#allocation2], %s3413
          %3415 = dma.done %s3411, 256
        $region48: #{tpu_custom_call.1} parent=43 // pred_fallthru
          _
      $region44: #{tpu_custom_call.1} parent=5 // pred_fallthru
        _
    $region6: #{tpu_custom_call.1} parent=1 // loop_footer
      %s17 = sadd.s32 1, %s13
    $region7: #{tpu_custom_call.1} parent=1 // loop_footer_branch
      %12 = sbr.rel target = $region3
    $region8: #{tpu_custom_call.1} parent=1 // loop_exit
      _
    %3416 = vsyncpa [#allocation3], 1
    %s3417 = scalar_lea.sflag [#allocation3], 1
    %3418 = vsyncpa %s3417, 1

</llo_original>
